<compile_context>
chip_gen: v7x
topology: tpu7x:2x2x1
jax: 0.10.0
libtpu: 0.0.40
codegen_flags: <defaults>
</compile_context>

<pallas_src>
import numpy as np
import jax
import jax.numpy as jnp
from jax.experimental import pallas as pl
from jax.experimental.pallas import tpu as pltpu

N_QUBITS = 10
N_LAYERS = 4
DIM = 1 << N_QUBITS          # 1024
N_CLASSES = 10
IN_FEATURES = 784
N_LO = 7                     # wires 3..9 -> low 7 bits of the basis index (128 values)
N_HI = 3                     # wires 0..2 -> high 3 bits of the basis index (8 values)


# ----------------------------------------------------------------------------
# Host-side (NumPy) construction: weights-only unitary, PauliZ(5) diagonal, and
# the fully-folded real observable M_fold = Re(diag(conj(s)) C^H V^H Z5 V C diag(s)),
# where s_b = (-i)^popcount(b) is the phase of the RX product state.
# ----------------------------------------------------------------------------
def _rx(theta):
    c, s = np.cos(theta / 2.0), np.sin(theta / 2.0)
    return np.array([[c, -1j * s], [-1j * s, c]], dtype=np.complex128)


def _rz(theta):
    return np.array([[np.exp(-1j * theta / 2.0), 0.0],
                     [0.0, np.exp(1j * theta / 2.0)]], dtype=np.complex128)


def _apply_1q(W, g, wire):
    W = np.tensordot(g, W, axes=([1], [wire]))
    return np.moveaxis(W, 0, wire)


def _apply_cnot(W, c, t):
    W2 = np.moveaxis(W, (c, t), (0, 1))
    W2 = np.stack([W2[0], W2[1][::-1]], axis=0)   # flip target where control == 1
    return np.moveaxis(W2, (0, 1), (c, t))


def build_observable(qweights_np):
    """Return (W_mat, z5, M_fold): weights-only unitary, Z5 diagonal, folded real observable."""
    W = np.eye(DIM, dtype=np.complex128).reshape((2,) * N_QUBITS + (DIM,))
    # feature_encoding CNOTs (the RX AngleEmbedding lives in the product state)
    for i in range(0, N_QUBITS - 1, 2):
        W = _apply_cnot(W, i, i + 1)
    for i in range(1, N_QUBITS - 1, 2):
        W = _apply_cnot(W, i, i + 1)
    # variational layers
    for layer in range(N_LAYERS):
        p = qweights_np[layer]  # (3, n_qubits)
        for i in range(N_QUBITS):
            W = _apply_1q(W, _rx(float(p[0, i])), i)
            W = _apply_1q(W, _rz(float(p[1, i])), i)
            W = _apply_1q(W, _rx(float(p[2, i])), i)
        for i in range(0, N_QUBITS - 1, 2):
            W = _apply_cnot(W, i, i + 1)
        for i in range(1, N_QUBITS - 1, 2):
            W = _apply_cnot(W, i, i + 1)
    W_mat = W.reshape(DIM, DIM)

    idx = np.arange(DIM)
    # PennyLane convention: wire 0 is the most-significant bit; observable wire = 5.
    z5 = (1.0 - 2.0 * ((idx >> (N_QUBITS - 1 - 5)) & 1)).astype(np.float64)

    M = (W_mat.conj().T * z5[None, :]) @ W_mat                     # Hermitian, ||M||_2 = 1

    # fold the (-i)^popcount phase of the RX product state into M
    popcnt = np.zeros(DIM, dtype=np.int64)
    for w in range(N_QUBITS):
        popcnt += (idx >> (N_QUBITS - 1 - w)) & 1
    s = (-1j) ** (popcnt % 4)                                      # (1024,) complex
    M_fold = np.real(np.conj(s)[:, None] * M * s[None, :])         # real; antisym part drops
    return W_mat, z5, M_fold.astype(np.float32)


def build_bits_lo():
    """bits_lo[j, l] = bit of wire (3+j) at low-index l (l in [0,128)). Padded to (8, 128)."""
    l = np.arange(1 << N_LO)
    tbl = (((l[None, :] >> (N_LO - 1 - np.arange(N_LO)[:, None])) & 1).astype(np.float32))
    out = np.zeros((8, 1 << N_LO), np.float32)
    out[:N_LO] = tbl
    return out


# ----------------------------------------------------------------------------
# Pallas kernel: full forward pass for one batch tile.
# ----------------------------------------------------------------------------
def qc_kernel(x_ref, wc_ref, bc_ref, bits_lo_ref, m_ref, wout_ref, bout_ref, o_ref):
    # compression: (tb, 784) @ (784, 10) + (1, 10); bf16 inputs, f32 accumulation (MXU)
    theta = jnp.dot(x_ref[...], wc_ref[...],
                    preferred_element_type=jnp.float32) + bc_ref[...]
    c = jnp.cos(theta * 0.5)                       # (tb, 10) f32
    s = jnp.sin(theta * 0.5)

    # product-state amplitudes, factored by wire groups:
    #   basis index b = hi*128 + lo; wires 0..2 live in `hi`, wires 3..9 live in `lo`.
    # low 7 wires -> (tb, 128) slab, 7 cheap passes
    prod_lo = None
    for j in range(N_LO):
        cj = c[:, 3 + j:4 + j]                     # (tb, 1)
        sj = s[:, 3 + j:4 + j]
        bit = bits_lo_ref[j:j + 1, :]              # (1, 128)
        f = cj + (sj - cj) * bit                   # (tb, 128)
        prod_lo = f if prod_lo is None else prod_lo * f
    # high 3 wires -> 8 static (tb, 1) columns
    cols = []
    for h in range(1 << N_HI):
        f0 = s[:, 0:1] if (h >> 2) & 1 else c[:, 0:1]
        f1 = s[:, 1:2] if (h >> 1) & 1 else c[:, 1:2]
        f2 = s[:, 2:3] if (h >> 0) & 1 else c[:, 2:3]
        cols.append(f0 * f1 * f2)
    # combine -> one full-width (tb, 1024) pass, laid out as [hi=0 | hi=1 | ... | hi=7]
    prod = jnp.concatenate([cols[h] * prod_lo for h in range(1 << N_HI)], axis=1)

    # expval of PauliZ(5): z = prod^T M_fold prod  (single bf16 MXU matmul, f32 accum)
    q = jnp.dot(prod.astype(jnp.bfloat16), m_ref[...],
                preferred_element_type=jnp.float32)                # (tb, 1024) f32
    z = jnp.sum(prod * q, axis=1, keepdims=True)                   # (tb, 1)

    # output Linear(1, 10) + log_softmax(dim=1)   (f32 on the VPU/EUP — v5e-safe)
    logits = z * wout_ref[...] + bout_ref[...]     # (tb,1)*(1,10)+(1,10) -> (tb,10)
    m = jnp.max(logits, axis=1, keepdims=True)
    lse = jnp.log(jnp.sum(jnp.exp(logits - m), axis=1, keepdims=True)) + m
    o_ref[...] = logits - lse


def _round_up(a, b):
    return ((a + b - 1) // b) * b


def _choose_batch_tile(B):
    """8-aligned batch tile, capped at 512; >=2 tiles whenever possible (v7x megacore)."""
    B8 = _round_up(B, 8)
    if B8 >= 1024:
        return 512
    if B8 >= 16:
        return min(512, _round_up(B8 // 2, 8))
    return B8


def quantum_classifier_forward(x, wc_t, bc2, bits_lo, m_fold_bf16, wout_t, bout2,
                               *, block_b=None):
    """x: (B, 784) f32.  m_fold_bf16: (1024, 1024) bf16.  Returns (B, 10) log-probs (f32)."""
    B = x.shape[0]
    tb = block_b if block_b is not None else _choose_batch_tile(B)
    tb = max(8, _round_up(min(tb, 512), 8))        # sublane-aligned, VMEM-safe cap
    B_pad = _round_up(B, tb)
    x = x.astype(jnp.bfloat16)                     # theta only feeds cos/sin; halves HBM stream
    if B_pad != B:
        x = jnp.pad(x, ((0, B_pad - B), (0, 0)))
    grid = (B_pad // tb,)

    const = lambda shp: pl.BlockSpec(shp, lambda i: (0,) * len(shp))
    out = pl.pallas_call(
        qc_kernel,
        out_shape=jax.ShapeDtypeStruct((B_pad, N_CLASSES), jnp.float32),
        grid=grid,
        in_specs=[
            pl.BlockSpec((tb, IN_FEATURES), lambda i: (i, 0)),     # x (bf16): tiled over batch
            const((IN_FEATURES, N_QUBITS)),                        # Wc^T (bf16)
            const((1, N_QUBITS)),                                  # bc
            const((8, 1 << N_LO)),                                 # low-wire bits table
            const((DIM, DIM)),                                     # M_fold (bf16), VMEM-resident
            const((1, N_CLASSES)),                                 # Wout^T
            const((1, N_CLASSES)),                                 # bout
        ],
        out_specs=pl.BlockSpec((tb, N_CLASSES), lambda i: (i, 0)),
        compiler_params=pltpu.CompilerParams(
            dimension_semantics=("parallel",),                     # megacore splits batch tiles
            vmem_limit_bytes=32 * 1024 * 1024),                    # fits v7x (64 MiB/TC)
    )(x, wc_t.astype(jnp.bfloat16), bc2, bits_lo, m_fold_bf16, wout_t, bout2)
    return out[:B]


# ----------------------------------------------------------------------------
# Pure-NumPy reference (direct statevector simulation) for a sanity check.
# ----------------------------------------------------------------------------
def reference_forward(x_np, Wc_np, bc_np, W_mat, z5, Wout_np, bout_np):
    theta = x_np.astype(np.float64) @ Wc_np.T.astype(np.float64) + bc_np
    B = theta.shape[0]
    evs = np.zeros((B,), np.float64)
    for n in range(B):
        psi = np.array([1.0 + 0.0j], dtype=np.complex128)
        for w in range(N_QUBITS):
            th = float(theta[n, w])
            v = np.array([np.cos(th / 2.0), -1j * np.sin(th / 2.0)], dtype=np.complex128)
            psi = np.kron(psi, v)
        full = W_mat @ psi
        evs[n] = float(np.sum((np.abs(full) ** 2) * z5))
    logits = evs[:, None] * Wout_np.T.astype(np.float64) + bout_np[None, :]
    m = logits.max(axis=1, keepdims=True)
    lse = np.log(np.exp(logits - m).sum(axis=1, keepdims=True)) + m
    return logits - lse


if __name__ == "__main__":
    key = jax.random.PRNGKey(0)
    kx, k1, k2, k3, k4, k5 = jax.random.split(key, 6)

    B = 2
    x = jax.random.normal(kx, (B, IN_FEATURES), dtype=jnp.float32)

    # deterministic parameter init (shapes match the PyTorch module)
    Wc = jax.random.normal(k1, (N_QUBITS, IN_FEATURES), jnp.float32) / np.sqrt(IN_FEATURES)
    bc = jax.random.normal(k2, (N_QUBITS,), jnp.float32) * 0.1
    qweights = jax.random.normal(k3, (N_LAYERS, 3, N_QUBITS), jnp.float32)
    Wout = jax.random.normal(k4, (N_CLASSES, 1), jnp.float32)
    bout = jax.random.normal(k5, (N_CLASSES,), jnp.float32) * 0.1

    # host-side setup: folded observable (phase table included) + low-wire bits table
    W_mat, z5, M_fold = build_observable(np.asarray(qweights, dtype=np.float64))
    bits_lo_np = build_bits_lo()

    out = quantum_classifier_forward(
        x,
        jnp.asarray(np.asarray(Wc).T),                      # (784, 10)
        jnp.asarray(np.asarray(bc).reshape(1, N_QUBITS)),   # (1, 10)
        jnp.asarray(bits_lo_np),                            # (8, 128) f32
        jnp.asarray(M_fold, dtype=jnp.bfloat16),            # (1024, 1024) bf16
        jnp.asarray(np.asarray(Wout).T),                    # (1, 10)
        jnp.asarray(np.asarray(bout).reshape(1, N_CLASSES)),
    )
    out = jax.block_until_ready(out)

    ref = reference_forward(np.asarray(x), np.asarray(Wc), np.asarray(bc, np.float64),
                            W_mat, z5, np.asarray(Wout), np.asarray(bout, np.float64))
    # bf16 error budget: M_fold + prod (matmul inputs) and the bf16 theta matmul bound the
    # log-prob abs error around a few 1e-2; 7.5e-2 keeps margin vs. the f64 reference.
    np.testing.assert_allclose(np.asarray(out), ref, rtol=5e-2, atol=7.5e-2)

    print("KERNEL_OK")
</pallas_src>

<mosaic_0001>
module attributes {stable_mosaic.version = 11 : i64} {
  func.func @qc_kernel(%arg0: i32, %arg1: memref<8x784xbf16, #tpu.memory_space<vmem>>, %arg2: memref<784x10xbf16, #tpu.memory_space<vmem>>, %arg3: memref<1x10xf32, #tpu.memory_space<vmem>>, %arg4: memref<8x128xf32, #tpu.memory_space<vmem>>, %arg5: memref<1024x1024xbf16, #tpu.memory_space<vmem>>, %arg6: memref<1x10xf32, #tpu.memory_space<vmem>>, %arg7: memref<1x10xf32, #tpu.memory_space<vmem>>, %arg8: memref<8x10xf32, #tpu.memory_space<vmem>>) attributes {dimension_semantics = [#tpu.dimension_semantics<parallel>], iteration_bounds = array<i64: 1>, scalar_prefetch = 0 : i64, scratch_operands = 0 : i64, tpu.core_type = #tpu.core_type<tc>, window_params = [{transform_indices = @transform_0, window_bounds = array<i64: 8, 784>}, {pipeline_mode = #tpu.pipeline_mode<synchronous>, transform_indices = @transform_1, window_bounds = array<i64: 784, 10>}, {pipeline_mode = #tpu.pipeline_mode<synchronous>, transform_indices = @transform_2, window_bounds = array<i64: 1, 10>}, {pipeline_mode = #tpu.pipeline_mode<synchronous>, transform_indices = @transform_3, window_bounds = array<i64: 8, 128>}, {pipeline_mode = #tpu.pipeline_mode<synchronous>, transform_indices = @transform_4, window_bounds = array<i64: 1024, 1024>}, {pipeline_mode = #tpu.pipeline_mode<synchronous>, transform_indices = @transform_5, window_bounds = array<i64: 1, 10>}, {pipeline_mode = #tpu.pipeline_mode<synchronous>, transform_indices = @transform_6, window_bounds = array<i64: 1, 10>}, {transform_indices = @transform_7, window_bounds = array<i64: 8, 10>}]} {
    %c0 = arith.constant 0 : index
    %c0_0 = arith.constant 0 : index
    %0 = vector.load %arg1[%c0, %c0_0] : memref<8x784xbf16, #tpu.memory_space<vmem>>, vector<8x784xbf16>
    %c0_1 = arith.constant 0 : index
    %c0_2 = arith.constant 0 : index
    %1 = vector.load %arg2[%c0_1, %c0_2] : memref<784x10xbf16, #tpu.memory_space<vmem>>, vector<784x10xbf16>
    %cst = arith.constant dense<0.000000e+00> : vector<8x10xf32>
    %2 = tpu.matmul %0, %1, %cst {dimension_numbers = #tpu.dot_dimension_numbers<[1], [0], [0], [1], [0, 0, 1, 1], [], []>} : vector<8x784xbf16>, vector<784x10xbf16>, vector<8x10xf32> -> vector<8x10xf32>
    %c0_3 = arith.constant 0 : index
    %c0_4 = arith.constant 0 : index
    %3 = vector.load %arg3[%c0_3, %c0_4] : memref<1x10xf32, #tpu.memory_space<vmem>>, vector<1x10xf32>
    %4 = vector.broadcast %3 : vector<1x10xf32> to vector<8x10xf32>
    %5 = arith.addf %2, %4 : vector<8x10xf32>
    %cst_5 = arith.constant 5.000000e-01 : f32
    %6 = vector.broadcast %cst_5 : f32 to vector<8x10xf32>
    %7 = arith.mulf %5, %6 : vector<8x10xf32>
    %8 = math.cos %7 : vector<8x10xf32>
    %cst_6 = arith.constant 5.000000e-01 : f32
    %9 = vector.broadcast %cst_6 : f32 to vector<8x10xf32>
    %10 = arith.mulf %5, %9 : vector<8x10xf32>
    %11 = math.sin %10 : vector<8x10xf32>
    %12 = vector.extract_strided_slice %8 {offsets = [0, 3], sizes = [8, 1], strides = [1, 1]} : vector<8x10xf32> to vector<8x1xf32>
    %13 = vector.extract_strided_slice %11 {offsets = [0, 3], sizes = [8, 1], strides = [1, 1]} : vector<8x10xf32> to vector<8x1xf32>
    %c0_7 = arith.constant 0 : index
    %c0_8 = arith.constant 0 : index
    %14 = vector.load %arg4[%c0_7, %c0_8] : memref<8x128xf32, #tpu.memory_space<vmem>>, vector<1x128xf32>
    %15 = arith.subf %13, %12 : vector<8x1xf32>
    %16 = vector.broadcast %15 : vector<8x1xf32> to vector<8x128xf32>
    %17 = vector.broadcast %14 : vector<1x128xf32> to vector<8x128xf32>
    %18 = arith.mulf %16, %17 : vector<8x128xf32>
    %19 = vector.broadcast %12 : vector<8x1xf32> to vector<8x128xf32>
    %20 = arith.addf %19, %18 : vector<8x128xf32>
    %21 = vector.extract_strided_slice %8 {offsets = [0, 4], sizes = [8, 1], strides = [1, 1]} : vector<8x10xf32> to vector<8x1xf32>
    %22 = vector.extract_strided_slice %11 {offsets = [0, 4], sizes = [8, 1], strides = [1, 1]} : vector<8x10xf32> to vector<8x1xf32>
    %c1 = arith.constant 1 : index
    %c0_9 = arith.constant 0 : index
    %23 = vector.load %arg4[%c1, %c0_9] : memref<8x128xf32, #tpu.memory_space<vmem>>, vector<1x128xf32>
    %24 = arith.subf %22, %21 : vector<8x1xf32>
    %25 = vector.broadcast %24 : vector<8x1xf32> to vector<8x128xf32>
    %26 = vector.broadcast %23 : vector<1x128xf32> to vector<8x128xf32>
    %27 = arith.mulf %25, %26 : vector<8x128xf32>
    %28 = vector.broadcast %21 : vector<8x1xf32> to vector<8x128xf32>
    %29 = arith.addf %28, %27 : vector<8x128xf32>
    %30 = arith.mulf %20, %29 : vector<8x128xf32>
    %31 = vector.extract_strided_slice %8 {offsets = [0, 5], sizes = [8, 1], strides = [1, 1]} : vector<8x10xf32> to vector<8x1xf32>
    %32 = vector.extract_strided_slice %11 {offsets = [0, 5], sizes = [8, 1], strides = [1, 1]} : vector<8x10xf32> to vector<8x1xf32>
    %c2 = arith.constant 2 : index
    %c0_10 = arith.constant 0 : index
    %33 = vector.load %arg4[%c2, %c0_10] : memref<8x128xf32, #tpu.memory_space<vmem>>, vector<1x128xf32>
    %34 = arith.subf %32, %31 : vector<8x1xf32>
    %35 = vector.broadcast %34 : vector<8x1xf32> to vector<8x128xf32>
    %36 = vector.broadcast %33 : vector<1x128xf32> to vector<8x128xf32>
    %37 = arith.mulf %35, %36 : vector<8x128xf32>
    %38 = vector.broadcast %31 : vector<8x1xf32> to vector<8x128xf32>
    %39 = arith.addf %38, %37 : vector<8x128xf32>
    %40 = arith.mulf %30, %39 : vector<8x128xf32>
    %41 = vector.extract_strided_slice %8 {offsets = [0, 6], sizes = [8, 1], strides = [1, 1]} : vector<8x10xf32> to vector<8x1xf32>
    %42 = vector.extract_strided_slice %11 {offsets = [0, 6], sizes = [8, 1], strides = [1, 1]} : vector<8x10xf32> to vector<8x1xf32>
    %c3 = arith.constant 3 : index
    %c0_11 = arith.constant 0 : index
    %43 = vector.load %arg4[%c3, %c0_11] : memref<8x128xf32, #tpu.memory_space<vmem>>, vector<1x128xf32>
    %44 = arith.subf %42, %41 : vector<8x1xf32>
    %45 = vector.broadcast %44 : vector<8x1xf32> to vector<8x128xf32>
    %46 = vector.broadcast %43 : vector<1x128xf32> to vector<8x128xf32>
    %47 = arith.mulf %45, %46 : vector<8x128xf32>
    %48 = vector.broadcast %41 : vector<8x1xf32> to vector<8x128xf32>
    %49 = arith.addf %48, %47 : vector<8x128xf32>
    %50 = arith.mulf %40, %49 : vector<8x128xf32>
    %51 = vector.extract_strided_slice %8 {offsets = [0, 7], sizes = [8, 1], strides = [1, 1]} : vector<8x10xf32> to vector<8x1xf32>
    %52 = vector.extract_strided_slice %11 {offsets = [0, 7], sizes = [8, 1], strides = [1, 1]} : vector<8x10xf32> to vector<8x1xf32>
    %c4 = arith.constant 4 : index
    %c0_12 = arith.constant 0 : index
    %53 = vector.load %arg4[%c4, %c0_12] : memref<8x128xf32, #tpu.memory_space<vmem>>, vector<1x128xf32>
    %54 = arith.subf %52, %51 : vector<8x1xf32>
    %55 = vector.broadcast %54 : vector<8x1xf32> to vector<8x128xf32>
    %56 = vector.broadcast %53 : vector<1x128xf32> to vector<8x128xf32>
    %57 = arith.mulf %55, %56 : vector<8x128xf32>
    %58 = vector.broadcast %51 : vector<8x1xf32> to vector<8x128xf32>
    %59 = arith.addf %58, %57 : vector<8x128xf32>
    %60 = arith.mulf %50, %59 : vector<8x128xf32>
    %61 = vector.extract_strided_slice %8 {offsets = [0, 8], sizes = [8, 1], strides = [1, 1]} : vector<8x10xf32> to vector<8x1xf32>
    %62 = vector.extract_strided_slice %11 {offsets = [0, 8], sizes = [8, 1], strides = [1, 1]} : vector<8x10xf32> to vector<8x1xf32>
    %c5 = arith.constant 5 : index
    %c0_13 = arith.constant 0 : index
    %63 = vector.load %arg4[%c5, %c0_13] : memref<8x128xf32, #tpu.memory_space<vmem>>, vector<1x128xf32>
    %64 = arith.subf %62, %61 : vector<8x1xf32>
    %65 = vector.broadcast %64 : vector<8x1xf32> to vector<8x128xf32>
    %66 = vector.broadcast %63 : vector<1x128xf32> to vector<8x128xf32>
    %67 = arith.mulf %65, %66 : vector<8x128xf32>
    %68 = vector.broadcast %61 : vector<8x1xf32> to vector<8x128xf32>
    %69 = arith.addf %68, %67 : vector<8x128xf32>
    %70 = arith.mulf %60, %69 : vector<8x128xf32>
    %71 = vector.extract_strided_slice %8 {offsets = [0, 9], sizes = [8, 1], strides = [1, 1]} : vector<8x10xf32> to vector<8x1xf32>
    %72 = vector.extract_strided_slice %11 {offsets = [0, 9], sizes = [8, 1], strides = [1, 1]} : vector<8x10xf32> to vector<8x1xf32>
    %c6 = arith.constant 6 : index
    %c0_14 = arith.constant 0 : index
    %73 = vector.load %arg4[%c6, %c0_14] : memref<8x128xf32, #tpu.memory_space<vmem>>, vector<1x128xf32>
    %74 = arith.subf %72, %71 : vector<8x1xf32>
    %75 = vector.broadcast %74 : vector<8x1xf32> to vector<8x128xf32>
    %76 = vector.broadcast %73 : vector<1x128xf32> to vector<8x128xf32>
    %77 = arith.mulf %75, %76 : vector<8x128xf32>
    %78 = vector.broadcast %71 : vector<8x1xf32> to vector<8x128xf32>
    %79 = arith.addf %78, %77 : vector<8x128xf32>
    %80 = arith.mulf %70, %79 : vector<8x128xf32>
    %81 = vector.extract_strided_slice %8 {offsets = [0, 0], sizes = [8, 1], strides = [1, 1]} : vector<8x10xf32> to vector<8x1xf32>
    %82 = vector.extract_strided_slice %8 {offsets = [0, 1], sizes = [8, 1], strides = [1, 1]} : vector<8x10xf32> to vector<8x1xf32>
    %83 = vector.extract_strided_slice %8 {offsets = [0, 2], sizes = [8, 1], strides = [1, 1]} : vector<8x10xf32> to vector<8x1xf32>
    %84 = arith.mulf %81, %82 : vector<8x1xf32>
    %85 = arith.mulf %84, %83 : vector<8x1xf32>
    %86 = vector.extract_strided_slice %8 {offsets = [0, 0], sizes = [8, 1], strides = [1, 1]} : vector<8x10xf32> to vector<8x1xf32>
    %87 = vector.extract_strided_slice %8 {offsets = [0, 1], sizes = [8, 1], strides = [1, 1]} : vector<8x10xf32> to vector<8x1xf32>
    %88 = vector.extract_strided_slice %11 {offsets = [0, 2], sizes = [8, 1], strides = [1, 1]} : vector<8x10xf32> to vector<8x1xf32>
    %89 = arith.mulf %86, %87 : vector<8x1xf32>
    %90 = arith.mulf %89, %88 : vector<8x1xf32>
    %91 = vector.extract_strided_slice %8 {offsets = [0, 0], sizes = [8, 1], strides = [1, 1]} : vector<8x10xf32> to vector<8x1xf32>
    %92 = vector.extract_strided_slice %11 {offsets = [0, 1], sizes = [8, 1], strides = [1, 1]} : vector<8x10xf32> to vector<8x1xf32>
    %93 = vector.extract_strided_slice %8 {offsets = [0, 2], sizes = [8, 1], strides = [1, 1]} : vector<8x10xf32> to vector<8x1xf32>
    %94 = arith.mulf %91, %92 : vector<8x1xf32>
    %95 = arith.mulf %94, %93 : vector<8x1xf32>
    %96 = vector.extract_strided_slice %8 {offsets = [0, 0], sizes = [8, 1], strides = [1, 1]} : vector<8x10xf32> to vector<8x1xf32>
    %97 = vector.extract_strided_slice %11 {offsets = [0, 1], sizes = [8, 1], strides = [1, 1]} : vector<8x10xf32> to vector<8x1xf32>
    %98 = vector.extract_strided_slice %11 {offsets = [0, 2], sizes = [8, 1], strides = [1, 1]} : vector<8x10xf32> to vector<8x1xf32>
    %99 = arith.mulf %96, %97 : vector<8x1xf32>
    %100 = arith.mulf %99, %98 : vector<8x1xf32>
    %101 = vector.extract_strided_slice %11 {offsets = [0, 0], sizes = [8, 1], strides = [1, 1]} : vector<8x10xf32> to vector<8x1xf32>
    %102 = vector.extract_strided_slice %8 {offsets = [0, 1], sizes = [8, 1], strides = [1, 1]} : vector<8x10xf32> to vector<8x1xf32>
    %103 = vector.extract_strided_slice %8 {offsets = [0, 2], sizes = [8, 1], strides = [1, 1]} : vector<8x10xf32> to vector<8x1xf32>
    %104 = arith.mulf %101, %102 : vector<8x1xf32>
    %105 = arith.mulf %104, %103 : vector<8x1xf32>
    %106 = vector.extract_strided_slice %11 {offsets = [0, 0], sizes = [8, 1], strides = [1, 1]} : vector<8x10xf32> to vector<8x1xf32>
    %107 = vector.extract_strided_slice %8 {offsets = [0, 1], sizes = [8, 1], strides = [1, 1]} : vector<8x10xf32> to vector<8x1xf32>
    %108 = vector.extract_strided_slice %11 {offsets = [0, 2], sizes = [8, 1], strides = [1, 1]} : vector<8x10xf32> to vector<8x1xf32>
    %109 = arith.mulf %106, %107 : vector<8x1xf32>
    %110 = arith.mulf %109, %108 : vector<8x1xf32>
    %111 = vector.extract_strided_slice %11 {offsets = [0, 0], sizes = [8, 1], strides = [1, 1]} : vector<8x10xf32> to vector<8x1xf32>
    %112 = vector.extract_strided_slice %11 {offsets = [0, 1], sizes = [8, 1], strides = [1, 1]} : vector<8x10xf32> to vector<8x1xf32>
    %113 = vector.extract_strided_slice %8 {offsets = [0, 2], sizes = [8, 1], strides = [1, 1]} : vector<8x10xf32> to vector<8x1xf32>
    %114 = arith.mulf %111, %112 : vector<8x1xf32>
    %115 = arith.mulf %114, %113 : vector<8x1xf32>
    %116 = vector.extract_strided_slice %11 {offsets = [0, 0], sizes = [8, 1], strides = [1, 1]} : vector<8x10xf32> to vector<8x1xf32>
    %117 = vector.extract_strided_slice %11 {offsets = [0, 1], sizes = [8, 1], strides = [1, 1]} : vector<8x10xf32> to vector<8x1xf32>
    %118 = vector.extract_strided_slice %11 {offsets = [0, 2], sizes = [8, 1], strides = [1, 1]} : vector<8x10xf32> to vector<8x1xf32>
    %119 = arith.mulf %116, %117 : vector<8x1xf32>
    %120 = arith.mulf %119, %118 : vector<8x1xf32>
    %121 = vector.broadcast %85 : vector<8x1xf32> to vector<8x128xf32>
    %122 = arith.mulf %121, %80 : vector<8x128xf32>
    %123 = vector.broadcast %90 : vector<8x1xf32> to vector<8x128xf32>
    %124 = arith.mulf %123, %80 : vector<8x128xf32>
    %125 = vector.broadcast %95 : vector<8x1xf32> to vector<8x128xf32>
    %126 = arith.mulf %125, %80 : vector<8x128xf32>
    %127 = vector.broadcast %100 : vector<8x1xf32> to vector<8x128xf32>
    %128 = arith.mulf %127, %80 : vector<8x128xf32>
    %129 = vector.broadcast %105 : vector<8x1xf32> to vector<8x128xf32>
    %130 = arith.mulf %129, %80 : vector<8x128xf32>
    %131 = vector.broadcast %110 : vector<8x1xf32> to vector<8x128xf32>
    %132 = arith.mulf %131, %80 : vector<8x128xf32>
    %133 = vector.broadcast %115 : vector<8x1xf32> to vector<8x128xf32>
    %134 = arith.mulf %133, %80 : vector<8x128xf32>
    %135 = vector.broadcast %120 : vector<8x1xf32> to vector<8x128xf32>
    %136 = arith.mulf %135, %80 : vector<8x128xf32>
    %137 = tpu.concatenate %122, %124, %126, %128, %130, %132, %134, %136 in 1 : vector<8x128xf32>, vector<8x128xf32>, vector<8x128xf32>, vector<8x128xf32>, vector<8x128xf32>, vector<8x128xf32>, vector<8x128xf32>, vector<8x128xf32> -> vector<8x1024xf32>
    %138 = arith.truncf %137 : vector<8x1024xf32> to vector<8x1024xbf16>
    %c0_15 = arith.constant 0 : index
    %c0_16 = arith.constant 0 : index
    %139 = vector.load %arg5[%c0_15, %c0_16] : memref<1024x1024xbf16, #tpu.memory_space<vmem>>, vector<1024x1024xbf16>
    %cst_17 = arith.constant dense<0.000000e+00> : vector<8x1024xf32>
    %140 = tpu.matmul %138, %139, %cst_17 {dimension_numbers = #tpu.dot_dimension_numbers<[1], [0], [0], [1], [0, 0, 1, 1], [], []>} : vector<8x1024xbf16>, vector<1024x1024xbf16>, vector<8x1024xf32> -> vector<8x1024xf32>
    %141 = arith.mulf %137, %140 : vector<8x1024xf32>
    %cst_18 = arith.constant dense<0.000000e+00> : vector<8xf32>
    %142 = vector.multi_reduction <add>, %141, %cst_18 [1] : vector<8x1024xf32> to vector<8xf32>
    %143 = vector.shape_cast %142 : vector<8xf32> to vector<8x1xf32>
    %c0_19 = arith.constant 0 : index
    %c0_20 = arith.constant 0 : index
    %144 = vector.load %arg6[%c0_19, %c0_20] : memref<1x10xf32, #tpu.memory_space<vmem>>, vector<1x10xf32>
    %145 = vector.broadcast %143 : vector<8x1xf32> to vector<8x10xf32>
    %146 = vector.broadcast %144 : vector<1x10xf32> to vector<8x10xf32>
    %147 = arith.mulf %145, %146 : vector<8x10xf32>
    %c0_21 = arith.constant 0 : index
    %c0_22 = arith.constant 0 : index
    %148 = vector.load %arg7[%c0_21, %c0_22] : memref<1x10xf32, #tpu.memory_space<vmem>>, vector<1x10xf32>
    %149 = vector.broadcast %148 : vector<1x10xf32> to vector<8x10xf32>
    %150 = arith.addf %147, %149 : vector<8x10xf32>
    %cst_23 = arith.constant dense<0xFF800000> : vector<8xf32>
    %151 = vector.multi_reduction <maximumf>, %150, %cst_23 [1] : vector<8x10xf32> to vector<8xf32>
    %152 = vector.shape_cast %151 : vector<8xf32> to vector<8x1xf32>
    %153 = vector.broadcast %152 : vector<8x1xf32> to vector<8x10xf32>
    %154 = arith.subf %150, %153 : vector<8x10xf32>
    %155 = math.exp %154 : vector<8x10xf32>
    %cst_24 = arith.constant dense<0.000000e+00> : vector<8xf32>
    %156 = vector.multi_reduction <add>, %155, %cst_24 [1] : vector<8x10xf32> to vector<8xf32>
    %157 = vector.shape_cast %156 : vector<8xf32> to vector<8x1xf32>
    %158 = math.log %157 : vector<8x1xf32>
    %159 = arith.addf %158, %152 : vector<8x1xf32>
    %160 = vector.broadcast %159 : vector<8x1xf32> to vector<8x10xf32>
    %161 = arith.subf %150, %160 : vector<8x10xf32>
    %c0_25 = arith.constant 0 : index
    %c0_26 = arith.constant 0 : index
    %162 = vector.load %arg8[%c0_25, %c0_26] : memref<8x10xf32, #tpu.memory_space<vmem>>, vector<8x10xf32>
    tpu.vector_store %arg8[%c0_25, %c0_26], %161 {strides = array<i32>} : memref<8x10xf32, #tpu.memory_space<vmem>>, vector<8x10xf32>,
    return
  }
  func.func @transform_0(%arg0: i32) -> (i32, i32) {
    %c0_i32 = arith.constant 0 : i32
    %c0_i32_0 = arith.constant 0 : i32
    return %arg0, %c0_i32 : i32, i32
  }
  func.func @transform_1(%arg0: i32) -> (i32, i32) {
    %c0_i32 = arith.constant 0 : i32
    %c0_i32_0 = arith.constant 0 : i32
    %c0_i32_1 = arith.constant 0 : i32
    return %c0_i32, %c0_i32_0 : i32, i32
  }
  func.func @transform_2(%arg0: i32) -> (i32, i32) {
    %c0_i32 = arith.constant 0 : i32
    %c0_i32_0 = arith.constant 0 : i32
    %c0_i32_1 = arith.constant 0 : i32
    return %c0_i32, %c0_i32_0 : i32, i32
  }
  func.func @transform_3(%arg0: i32) -> (i32, i32) {
    %c0_i32 = arith.constant 0 : i32
    %c0_i32_0 = arith.constant 0 : i32
    %c0_i32_1 = arith.constant 0 : i32
    return %c0_i32, %c0_i32_0 : i32, i32
  }
  func.func @transform_4(%arg0: i32) -> (i32, i32) {
    %c0_i32 = arith.constant 0 : i32
    %c0_i32_0 = arith.constant 0 : i32
    %c0_i32_1 = arith.constant 0 : i32
    return %c0_i32, %c0_i32_0 : i32, i32
  }
  func.func @transform_5(%arg0: i32) -> (i32, i32) {
    %c0_i32 = arith.constant 0 : i32
    %c0_i32_0 = arith.constant 0 : i32
    %c0_i32_1 = arith.constant 0 : i32
    return %c0_i32, %c0_i32_0 : i32, i32
  }
  func.func @transform_6(%arg0: i32) -> (i32, i32) {
    %c0_i32 = arith.constant 0 : i32
    %c0_i32_0 = arith.constant 0 : i32
    %c0_i32_1 = arith.constant 0 : i32
    return %c0_i32, %c0_i32_0 : i32, i32
  }
  func.func @transform_7(%arg0: i32) -> (i32, i32) {
    %c0_i32 = arith.constant 0 : i32
    %c0_i32_0 = arith.constant 0 : i32
    return %arg0, %c0_i32 : i32, i32
  }
}

</mosaic_0001>

<llo_original>
// kernel: tpu_custom_call.1
$region0: #{tpu_custom_call.1}
  #allocation0 [shape = 'u32[]', space=smem, size = 0x4, offset = 0x4, fixed_abs, tag = 'smem constant byte address 0x4 - core index']
  #allocation1 [shape = 'u32[144,128]{1,0:T(1,128)}', space=vmem, size = 0x12000, scoped, tag = 'internal scratch']
  %s0 = inlined_call_operand.hbm [shape: bf16[8,784], index: 0, kind: input, shape index: {}]
  %s1 = inlined_call_operand.vmem [shape: bf16[784,10], index: 1, kind: input, shape index: {}]
  %s2 = inlined_call_operand.hbm [shape: f32[1,10], index: 2, kind: input, shape index: {}]
  %s3 = inlined_call_operand.hbm [shape: f32[8,128], index: 3, kind: input, shape index: {}]
  %s4 = inlined_call_operand.hbm [shape: bf16[1024,1024], index: 4, kind: input, shape index: {}]
  %s5 = inlined_call_operand.hbm [shape: f32[1,10], index: 5, kind: input, shape index: {}]
  %s6 = inlined_call_operand.hbm [shape: f32[1,10], index: 6, kind: input, shape index: {}]
  %s7 = inlined_call_operand.hbm [shape: f32[8,10], index: 7, kind: output, shape index: {}]
  %s8 = sld [smem:[#allocation0]]
  $region62: #{tpu_custom_call.1} parent=0
    _
  %s10 = ssub.s32 1, %s8
  %s11 = scalar_select 0, %s10, %s8
  $region1: #{tpu_custom_call.1} parent=0
    #allocation2 [shape = 'u8[14336]{0}', space=vmem, size = 0x3800, scoped, tag = 'input window, operand 0, single buffered']
    #allocation3 [shape = 's32[1]{0}', space=sflag, size = 0x4, scoped, tag = 'scoped memory for tpu_custom_call.1']
    #allocation4 [shape = 's32[1]{0}', space=sflag, size = 0x4, scoped, tag = 'scoped memory for tpu_custom_call.1']
    #allocation5 [shape = 'u8[512]{0}', space=vmem, size = 0x400, scoped, tag = 'input window, operand 2, single buffered']
    #allocation6 [shape = 's32[1]{0}', space=sflag, size = 0x4, scoped, tag = 'scoped memory for tpu_custom_call.1']
    #allocation7 [shape = 'u8[4096]{0}', space=vmem, size = 0x1000, scoped, tag = 'input window, operand 3, single buffered']
    #allocation8 [shape = 'u8[2097152]{0}', space=vmem, size = 0x200000, scoped, tag = 'input window, operand 4, single buffered']
    #allocation9 [shape = 's32[1]{0}', space=sflag, size = 0x4, scoped, tag = 'scoped memory for tpu_custom_call.1']
    #allocation10 [shape = 'u8[512]{0}', space=vmem, size = 0x400, scoped, tag = 'input window, operand 5, single buffered']
    #allocation11 [shape = 'u8[512]{0}', space=vmem, size = 0x400, scoped, tag = 'input window, operand 6, single buffered']
    #allocation12 [shape = 's32[1]{0}', space=sflag, size = 0x4, scoped, tag = 'scoped memory for tpu_custom_call.1']
    #allocation13 [shape = 'u8[4096]{0}', space=vmem, size = 0x1000, scoped, tag = 'output window, operand 0, single buffered']
    %12 = vsyncpa [#allocation3], 0
    %13 = vsyncpa [#allocation6], 0
    %14 = vsyncpa [#allocation9], 0
    %15 = vsyncpa [#allocation12], 0
    %16 = vsyncpa [#allocation4], 0
    // Predicated region
    $region2: #{tpu_custom_call.1} parent=1 // pred_check
      _
    $region3: #{tpu_custom_call.1} parent=1 // pred_check_branch
      %18 = sbr.rel (0) target = $region5
    $region4: #{tpu_custom_call.1} parent=1 // pred_region
      %s20 = ssub.s32 448, 448
      %21 = vsyncadd [#allocation3], %s20
      %s23 = sshll.u32 [#allocation2], 4
      %s24 = int_to_ptr.vmem [resolvable:$true] %s23
      %26 = dma.hbm_to_vmem [thread:$0]  %s0, 448, %s24, [#allocation3]
    $region5: #{tpu_custom_call.1} parent=1 // pred_fallthru
      _
    // Predicated region
    $region6: #{tpu_custom_call.1} parent=1 // pred_check
      _
    $region7: #{tpu_custom_call.1} parent=1 // pred_check_branch
      %28 = sbr.rel (0) target = $region9
    $region8: #{tpu_custom_call.1} parent=1 // pred_region
      _
    $region9: #{tpu_custom_call.1} parent=1 // pred_fallthru
      _
    // Predicated region
    $region10: #{tpu_custom_call.1} parent=1 // pred_check
      _
    $region11: #{tpu_custom_call.1} parent=1 // pred_check_branch
      %30 = sbr.rel (0) target = $region13
    $region12: #{tpu_custom_call.1} parent=1 // pred_region
      %s32 = ssub.s32 16, 16
      %33 = vsyncadd [#allocation6], %s32
      %s35 = sshll.u32 [#allocation5], 4
      %s36 = int_to_ptr.vmem [resolvable:$true] %s35
      %38 = dma.hbm_to_vmem [thread:$0]  %s2, 16, %s36, [#allocation6]
    $region13: #{tpu_custom_call.1} parent=1 // pred_fallthru
      _
    // Predicated region
    $region14: #{tpu_custom_call.1} parent=1 // pred_check
      _
    $region15: #{tpu_custom_call.1} parent=1 // pred_check_branch
      %40 = sbr.rel (0) target = $region17
    $region16: #{tpu_custom_call.1} parent=1 // pred_region
      %s42 = ssub.s32 128, 128
      %43 = vsyncadd [#allocation6], %s42
      %s45 = sshll.u32 [#allocation7], 4
      %s46 = int_to_ptr.vmem [resolvable:$true] %s45
      %48 = dma.hbm_to_vmem [thread:$0]  %s3, 128, %s46, [#allocation6]
    $region17: #{tpu_custom_call.1} parent=1 // pred_fallthru
      _
    // Predicated region
    $region18: #{tpu_custom_call.1} parent=1 // pred_check
      _
    $region19: #{tpu_custom_call.1} parent=1 // pred_check_branch
      %50 = sbr.rel (0) target = $region21
    $region20: #{tpu_custom_call.1} parent=1 // pred_region
      %s52 = ssub.s32 65536, 65536
      %53 = vsyncadd [#allocation9], %s52
      %s54 = sshll.u32 [#allocation8], 4
      %s55 = int_to_ptr.vmem [resolvable:$true] %s54
      %60 = dma.hbm_to_vmem [thread:$0]  %s4, 65536, %s55, [#allocation9], 512, 512, 32
    $region21: #{tpu_custom_call.1} parent=1 // pred_fallthru
      _
    // Predicated region
    $region22: #{tpu_custom_call.1} parent=1 // pred_check
      _
    $region23: #{tpu_custom_call.1} parent=1 // pred_check_branch
      %62 = sbr.rel (0) target = $region25
    $region24: #{tpu_custom_call.1} parent=1 // pred_region
      %s64 = ssub.s32 16, 16
      %65 = vsyncadd [#allocation9], %s64
      %s67 = sshll.u32 [#allocation10], 4
      %s68 = int_to_ptr.vmem [resolvable:$true] %s67
      %70 = dma.hbm_to_vmem [thread:$0]  %s5, 16, %s68, [#allocation9]
    $region25: #{tpu_custom_call.1} parent=1 // pred_fallthru
      _
    // Predicated region
    $region26: #{tpu_custom_call.1} parent=1 // pred_check
      _
    $region27: #{tpu_custom_call.1} parent=1 // pred_check_branch
      %72 = sbr.rel (0) target = $region29
    $region28: #{tpu_custom_call.1} parent=1 // pred_region
      %s74 = ssub.s32 16, 16
      %75 = vsyncadd [#allocation12], %s74
      %s77 = sshll.u32 [#allocation11], 4
      %s78 = int_to_ptr.vmem [resolvable:$true] %s77
      %80 = dma.hbm_to_vmem [thread:$0]  %s6, 16, %s78, [#allocation12]
    $region29: #{tpu_custom_call.1} parent=1 // pred_fallthru
      _
    // Predicated region
    $region30: #{tpu_custom_call.1} parent=1 // pred_check
      _
    $region31: #{tpu_custom_call.1} parent=1 // pred_check_branch
      %82 = sbr.rel (0) target = $region33
    $region32: #{tpu_custom_call.1} parent=1 // pred_region
      %83 = dma.done [#allocation3], 448
    $region33: #{tpu_custom_call.1} parent=1 // pred_fallthru
      _
    // Predicated region
    $region34: #{tpu_custom_call.1} parent=1 // pred_check
      _
    $region35: #{tpu_custom_call.1} parent=1 // pred_check_branch
      %85 = sbr.rel (0) target = $region37
    $region36: #{tpu_custom_call.1} parent=1 // pred_region
      %86 = dma.done [#allocation6], 16
    $region37: #{tpu_custom_call.1} parent=1 // pred_fallthru
      _
    // Predicated region
    $region38: #{tpu_custom_call.1} parent=1 // pred_check
      _
    $region39: #{tpu_custom_call.1} parent=1 // pred_check_branch
      %88 = sbr.rel (0) target = $region41
    $region40: #{tpu_custom_call.1} parent=1 // pred_region
      %89 = dma.done [#allocation6], 128
    $region41: #{tpu_custom_call.1} parent=1 // pred_fallthru
      _
    // Predicated region
    $region42: #{tpu_custom_call.1} parent=1 // pred_check
      _
    $region43: #{tpu_custom_call.1} parent=1 // pred_check_branch
      %91 = sbr.rel (0) target = $region45
    $region44: #{tpu_custom_call.1} parent=1 // pred_region
      %92 = dma.done [#allocation9], 65536
    $region45: #{tpu_custom_call.1} parent=1 // pred_fallthru
      _
    // Predicated region
    $region46: #{tpu_custom_call.1} parent=1 // pred_check
      _
    $region47: #{tpu_custom_call.1} parent=1 // pred_check_branch
      %94 = sbr.rel (0) target = $region49
    $region48: #{tpu_custom_call.1} parent=1 // pred_region
      %95 = dma.done [#allocation9], 16
    $region49: #{tpu_custom_call.1} parent=1 // pred_fallthru
      _
    // Predicated region
    $region50: #{tpu_custom_call.1} parent=1 // pred_check
      _
    $region51: #{tpu_custom_call.1} parent=1 // pred_check_branch
      %97 = sbr.rel (0) target = $region53
    $region52: #{tpu_custom_call.1} parent=1 // pred_region
      %98 = dma.done [#allocation12], 16
    $region53: #{tpu_custom_call.1} parent=1 // pred_fallthru
      _
    %v100 = vld [vmem:[#allocation2] sm:$0xff]
    %v101 = vld [vmem:[#allocation2 + $0x8] sm:$0xff]
    %v102 = vld [vmem:[#allocation2 + $0x10] sm:$0xff]
    %v103 = vld [vmem:[#allocation2 + $0x18] sm:$0xf]
    %v104 = vld [vmem:[%s1] sm:$0xf]
    %v105 = vld [vmem:[%s1 + $0x4] sm:$0xf]
    %v106 = vld [vmem:[%s1 + $0x8] sm:$0xf]
    %v107 = vld [vmem:[%s1 + $0xc] sm:$0xf]
    %v108 = vld [vmem:[%s1 + $0x10] sm:$0xf]
    %v109 = vld [vmem:[%s1 + $0x14] sm:$0xf]
    %v110 = vld [vmem:[%s1 + $0x18] sm:$0xf]
    %v111 = vld [vmem:[%s1 + $0x1c] sm:$0xf]
    %v112 = vld [vmem:[%s1 + $0x20] sm:$0xf]
    %v113 = vld [vmem:[%s1 + $0x24] sm:$0xf]
    %v114 = vld [vmem:[%s1 + $0x28] sm:$0xf]
    %v115 = vld [vmem:[%s1 + $0x2c] sm:$0xf]
    %v116 = vld [vmem:[%s1 + $0x30] sm:$0xf]
    %v117 = vld [vmem:[%s1 + $0x34] sm:$0xf]
    %v118 = vld [vmem:[%s1 + $0x38] sm:$0xf]
    %v119 = vld [vmem:[%s1 + $0x3c] sm:$0xf]
    %v120 = vld [vmem:[%s1 + $0x40] sm:$0xf]
    %v121 = vld [vmem:[%s1 + $0x44] sm:$0xf]
    %v122 = vld [vmem:[%s1 + $0x48] sm:$0xf]
    %v123 = vld [vmem:[%s1 + $0x4c] sm:$0xf]
    %v124 = vld [vmem:[%s1 + $0x50] sm:$0xf]
    %v125 = vld [vmem:[%s1 + $0x54] sm:$0xf]
    %v126 = vld [vmem:[%s1 + $0x58] sm:$0xf]
    %v127 = vld [vmem:[%s1 + $0x5c] sm:$0xf]
    %v128 = vld [vmem:[%s1 + $0x60] sm:$0xf]
    %v129 = vld [vmem:[%s1 + $0x64] sm:$0xf]
    %v130 = vld [vmem:[%s1 + $0x68] sm:$0xf]
    %v131 = vld [vmem:[%s1 + $0x6c] sm:$0xf]
    %v132 = vld [vmem:[%s1 + $0x70] sm:$0xf]
    %v133 = vld [vmem:[%s1 + $0x74] sm:$0xf]
    %v134 = vld [vmem:[%s1 + $0x78] sm:$0xf]
    %v135 = vld [vmem:[%s1 + $0x7c] sm:$0xf]
    %v136 = vld [vmem:[%s1 + $0x80] sm:$0xf]
    %v137 = vld [vmem:[%s1 + $0x84] sm:$0xf]
    %v138 = vld [vmem:[%s1 + $0x88] sm:$0xf]
    %v139 = vld [vmem:[%s1 + $0x8c] sm:$0xf]
    %v140 = vld [vmem:[%s1 + $0x90] sm:$0xf]
    %v141 = vld [vmem:[%s1 + $0x94] sm:$0xf]
    %v142 = vld [vmem:[%s1 + $0x98] sm:$0xf]
    %v143 = vld [vmem:[%s1 + $0x9c] sm:$0xf]
    %v144 = vld [vmem:[%s1 + $0xa0] sm:$0xf]
    %v145 = vld [vmem:[%s1 + $0xa4] sm:$0xf]
    %v146 = vld [vmem:[%s1 + $0xa8] sm:$0xf]
    %v147 = vld [vmem:[%s1 + $0xac] sm:$0xf]
    %v148 = vld [vmem:[%s1 + $0xb0] sm:$0xf]
    %v149 = vld [vmem:[%s1 + $0xb4] sm:$0xf]
    %v150 = vld [vmem:[%s1 + $0xb8] sm:$0xf]
    %v151 = vld [vmem:[%s1 + $0xbc] sm:$0xf]
    %v152 = vld [vmem:[%s1 + $0xc0] sm:$0xf]
    %v153 = vld [vmem:[%s1 + $0xc4] sm:$0xf]
    %v154 = vld [vmem:[%s1 + $0xc8] sm:$0xf]
    %v155 = vld [vmem:[%s1 + $0xcc] sm:$0xf]
    %v156 = vld [vmem:[%s1 + $0xd0] sm:$0xf]
    %v157 = vld [vmem:[%s1 + $0xd4] sm:$0xf]
    %v158 = vld [vmem:[%s1 + $0xd8] sm:$0xf]
    %v159 = vld [vmem:[%s1 + $0xdc] sm:$0xf]
    %v160 = vld [vmem:[%s1 + $0xe0] sm:$0xf]
    %v161 = vld [vmem:[%s1 + $0xe4] sm:$0xf]
    %v162 = vld [vmem:[%s1 + $0xe8] sm:$0xf]
    %v163 = vld [vmem:[%s1 + $0xec] sm:$0xf]
    %v164 = vld [vmem:[%s1 + $0xf0] sm:$0xf]
    %v165 = vld [vmem:[%s1 + $0xf4] sm:$0xf]
    %v166 = vld [vmem:[%s1 + $0xf8] sm:$0xf]
    %v167 = vld [vmem:[%s1 + $0xfc] sm:$0xf]
    %v168 = vld [vmem:[%s1 + $0x100] sm:$0xf]
    %v169 = vld [vmem:[%s1 + $0x104] sm:$0xf]
    %v170 = vld [vmem:[%s1 + $0x108] sm:$0xf]
    %v171 = vld [vmem:[%s1 + $0x10c] sm:$0xf]
    %v172 = vld [vmem:[%s1 + $0x110] sm:$0xf]
    %v173 = vld [vmem:[%s1 + $0x114] sm:$0xf]
    %v174 = vld [vmem:[%s1 + $0x118] sm:$0xf]
    %v175 = vld [vmem:[%s1 + $0x11c] sm:$0xf]
    %v176 = vld [vmem:[%s1 + $0x120] sm:$0xf]
    %v177 = vld [vmem:[%s1 + $0x124] sm:$0xf]
    %v178 = vld [vmem:[%s1 + $0x128] sm:$0xf]
    %v179 = vld [vmem:[%s1 + $0x12c] sm:$0xf]
    %v180 = vld [vmem:[%s1 + $0x130] sm:$0xf]
    %v181 = vld [vmem:[%s1 + $0x134] sm:$0xf]
    %v182 = vld [vmem:[%s1 + $0x138] sm:$0xf]
    %v183 = vld [vmem:[%s1 + $0x13c] sm:$0xf]
    %v184 = vld [vmem:[%s1 + $0x140] sm:$0xf]
    %v185 = vld [vmem:[%s1 + $0x144] sm:$0xf]
    %v186 = vld [vmem:[%s1 + $0x148] sm:$0xf]
    %v187 = vld [vmem:[%s1 + $0x14c] sm:$0xf]
    %v188 = vld [vmem:[%s1 + $0x150] sm:$0xf]
    %v189 = vld [vmem:[%s1 + $0x154] sm:$0xf]
    %v190 = vld [vmem:[%s1 + $0x158] sm:$0xf]
    %v191 = vld [vmem:[%s1 + $0x15c] sm:$0xf]
    %v192 = vld [vmem:[%s1 + $0x160] sm:$0xf]
    %v193 = vld [vmem:[%s1 + $0x164] sm:$0xf]
    %v194 = vld [vmem:[%s1 + $0x168] sm:$0xf]
    %v195 = vld [vmem:[%s1 + $0x16c] sm:$0xf]
    %v196 = vld [vmem:[%s1 + $0x170] sm:$0xf]
    %v197 = vld [vmem:[%s1 + $0x174] sm:$0xf]
    %v198 = vld [vmem:[%s1 + $0x178] sm:$0xf]
    %v199 = vld [vmem:[%s1 + $0x17c] sm:$0xf]
    %v200 = vld [vmem:[%s1 + $0x180] sm:$0xf]
    %v201 = vld [vmem:[%s1 + $0x184] sm:$0xf]
    %v202 = vld [vmem:[#allocation5] sm:$0x1]
    %v204 = vlaneseq
    %v205 = vshrl.u32 %v204, 7
    %v206 = vsub.s32 0, %v205
    %v207 = vrot.slane %v202, %v206
    %v213 = vunpack.c.l.b16 %v100
    %v214 = vunpack.c.h.b16 %v100
    %v215 = vunpack.c.l.b16 %v101
    %v216 = vunpack.c.h.b16 %v101
    %v217 = vunpack.c.l.b16 %v102
    %v218 = vunpack.c.h.b16 %v102
    %v219 = vunpack.c.l.b16 %v103
    %v220 = vpack.c.b16 %v213, %v213
    %v221 = vpack.c.b16 %v214, %v214
    %v222 = vpack.c.b16 %v215, %v215
    %v223 = vpack.c.b16 %v216, %v216
    %v224 = vpack.c.b16 %v217, %v217
    %v225 = vpack.c.b16 %v218, %v218
    %v226 = vpack.c.b16 %v219, %v219
    %v331 = vunpack.c.l.b16 %v104
    %v332 = vunpack.c.l.b16 %v105
    %v333 = vunpack.c.l.b16 %v106
    %v334 = vunpack.c.l.b16 %v107
    %v335 = vunpack.c.l.b16 %v108
    %v336 = vunpack.c.l.b16 %v109
    %v337 = vunpack.c.l.b16 %v110
    %v338 = vunpack.c.l.b16 %v111
    %v339 = vunpack.c.l.b16 %v112
    %v340 = vunpack.c.l.b16 %v113
    %v341 = vunpack.c.l.b16 %v114
    %v342 = vunpack.c.l.b16 %v115
    %v343 = vunpack.c.l.b16 %v116
    %v344 = vunpack.c.l.b16 %v117
    %v345 = vunpack.c.l.b16 %v118
    %v346 = vunpack.c.l.b16 %v119
    %v347 = vunpack.c.l.b16 %v120
    %v348 = vunpack.c.l.b16 %v121
    %v349 = vunpack.c.l.b16 %v122
    %v350 = vunpack.c.l.b16 %v123
    %v351 = vunpack.c.l.b16 %v124
    %v352 = vunpack.c.l.b16 %v125
    %v353 = vunpack.c.l.b16 %v126
    %v354 = vunpack.c.l.b16 %v127
    %v355 = vunpack.c.l.b16 %v128
    %v356 = vunpack.c.l.b16 %v129
    %v357 = vunpack.c.l.b16 %v130
    %v358 = vunpack.c.l.b16 %v131
    %v359 = vunpack.c.l.b16 %v132
    %v360 = vunpack.c.l.b16 %v133
    %v361 = vunpack.c.l.b16 %v134
    %v362 = vunpack.c.l.b16 %v135
    %v363 = vunpack.c.l.b16 %v136
    %v364 = vunpack.c.l.b16 %v137
    %v365 = vunpack.c.l.b16 %v138
    %v366 = vunpack.c.l.b16 %v139
    %v367 = vunpack.c.l.b16 %v140
    %v368 = vunpack.c.l.b16 %v141
    %v369 = vunpack.c.l.b16 %v142
    %v370 = vunpack.c.l.b16 %v143
    %v371 = vunpack.c.l.b16 %v144
    %v372 = vunpack.c.l.b16 %v145
    %v373 = vunpack.c.l.b16 %v146
    %v374 = vunpack.c.l.b16 %v147
    %v375 = vunpack.c.l.b16 %v148
    %v376 = vunpack.c.l.b16 %v149
    %v377 = vunpack.c.l.b16 %v150
    %v378 = vunpack.c.l.b16 %v151
    %v379 = vunpack.c.l.b16 %v152
    %v380 = vunpack.c.l.b16 %v153
    %v381 = vunpack.c.l.b16 %v154
    %v382 = vunpack.c.l.b16 %v155
    %v383 = vunpack.c.l.b16 %v156
    %v384 = vunpack.c.l.b16 %v157
    %v385 = vunpack.c.l.b16 %v158
    %v386 = vunpack.c.l.b16 %v159
    %v387 = vunpack.c.l.b16 %v160
    %v388 = vunpack.c.l.b16 %v161
    %v389 = vunpack.c.l.b16 %v162
    %v390 = vunpack.c.l.b16 %v163
    %v391 = vunpack.c.l.b16 %v164
    %v392 = vunpack.c.l.b16 %v165
    %v393 = vunpack.c.l.b16 %v166
    %v394 = vunpack.c.l.b16 %v167
    %v395 = vunpack.c.l.b16 %v168
    %v396 = vunpack.c.l.b16 %v169
    %v397 = vunpack.c.l.b16 %v170
    %v398 = vunpack.c.l.b16 %v171
    %v399 = vunpack.c.l.b16 %v172
    %v400 = vunpack.c.l.b16 %v173
    %v401 = vunpack.c.l.b16 %v174
    %v402 = vunpack.c.l.b16 %v175
    %v403 = vunpack.c.l.b16 %v176
    %v404 = vunpack.c.l.b16 %v177
    %v405 = vunpack.c.l.b16 %v178
    %v406 = vunpack.c.l.b16 %v179
    %v407 = vunpack.c.l.b16 %v180
    %v408 = vunpack.c.l.b16 %v181
    %v409 = vunpack.c.l.b16 %v182
    %v410 = vunpack.c.l.b16 %v183
    %v411 = vunpack.c.l.b16 %v184
    %v412 = vunpack.c.l.b16 %v185
    %v413 = vunpack.c.l.b16 %v186
    %v414 = vunpack.c.l.b16 %v187
    %v415 = vunpack.c.l.b16 %v188
    %v416 = vunpack.c.l.b16 %v189
    %v417 = vunpack.c.l.b16 %v190
    %v418 = vunpack.c.l.b16 %v191
    %v419 = vunpack.c.l.b16 %v192
    %v420 = vunpack.c.l.b16 %v193
    %v421 = vunpack.c.l.b16 %v194
    %v422 = vunpack.c.l.b16 %v195
    %v423 = vunpack.c.l.b16 %v196
    %v424 = vunpack.c.l.b16 %v197
    %v425 = vunpack.c.l.b16 %v198
    %v426 = vunpack.c.l.b16 %v199
    %v427 = vunpack.c.l.b16 %v200
    %v428 = vunpack.c.l.b16 %v201
    %v429 = vpack.c.b16 %v332, %v331
    %v430 = vpack.c.b16 %v334, %v333
    %v431 = vpack.c.b16 %v336, %v335
    %v432 = vpack.c.b16 %v338, %v337
    %v433 = vpack.c.b16 %v340, %v339
    %v434 = vpack.c.b16 %v342, %v341
    %v435 = vpack.c.b16 %v344, %v343
    %v436 = vpack.c.b16 %v346, %v345
    %v437 = vpack.c.b16 %v348, %v347
    %v438 = vpack.c.b16 %v350, %v349
    %v439 = vpack.c.b16 %v352, %v351
    %v440 = vpack.c.b16 %v354, %v353
    %v441 = vpack.c.b16 %v356, %v355
    %v442 = vpack.c.b16 %v358, %v357
    %v443 = vpack.c.b16 %v360, %v359
    %v444 = vpack.c.b16 %v362, %v361
    %v445 = vpack.c.b16 %v364, %v363
    %v446 = vpack.c.b16 %v366, %v365
    %v447 = vpack.c.b16 %v368, %v367
    %v448 = vpack.c.b16 %v370, %v369
    %v449 = vpack.c.b16 %v372, %v371
    %v450 = vpack.c.b16 %v374, %v373
    %v451 = vpack.c.b16 %v376, %v375
    %v452 = vpack.c.b16 %v378, %v377
    %v453 = vpack.c.b16 %v380, %v379
    %v454 = vpack.c.b16 %v382, %v381
    %v455 = vpack.c.b16 %v384, %v383
    %v456 = vpack.c.b16 %v386, %v385
    %v457 = vpack.c.b16 %v388, %v387
    %v458 = vpack.c.b16 %v390, %v389
    %v459 = vpack.c.b16 %v392, %v391
    %v460 = vpack.c.b16 %v394, %v393
    %v461 = vpack.c.b16 %v396, %v395
    %v462 = vpack.c.b16 %v398, %v397
    %v463 = vpack.c.b16 %v400, %v399
    %v464 = vpack.c.b16 %v402, %v401
    %v465 = vpack.c.b16 %v404, %v403
    %v466 = vpack.c.b16 %v406, %v405
    %v467 = vpack.c.b16 %v408, %v407
    %v468 = vpack.c.b16 %v410, %v409
    %v469 = vpack.c.b16 %v412, %v411
    %v470 = vpack.c.b16 %v414, %v413
    %v471 = vpack.c.b16 %v416, %v415
    %v472 = vpack.c.b16 %v418, %v417
    %v473 = vpack.c.b16 %v420, %v419
    %v474 = vpack.c.b16 %v422, %v421
    %v475 = vpack.c.b16 %v424, %v423
    %v476 = vpack.c.b16 %v426, %v425
    %v477 = vpack.c.b16 %v428, %v427
    %vm527 = vcmask 130048
    %v529 = vsel %vm527, %v226, 0
    %531 = vmatprep.subr.bf16.mxu0 0
    %532 = vmatpush1.bf16.msra.mxu0 %v429
    %533 = vmatprep.subr.bf16.mxu0 0
    %534 = vmatpush1.bf16.msra.mxu0 %v430
    %535 = vmatprep.subr.bf16.mxu0 0
    %536 = vmatpush1.bf16.msra.mxu0 %v431
    %537 = vmatprep.subr.bf16.mxu0 0
    %538 = vmatpush1.bf16.msra.mxu0 %v432
    %539 = vmatprep.subr.bf16.mxu0 0
    %540 = vmatpush1.bf16.msra.mxu0 %v433
    %541 = vmatprep.subr.bf16.mxu0 0
    %542 = vmatpush1.bf16.msra.mxu0 %v434
    %543 = vmatprep.subr.bf16.mxu0 0
    %544 = vmatpush1.bf16.msra.mxu0 %v435
    %545 = vmatprep.subr.bf16.mxu0 0
    %546 = vmatpush1.bf16.msra.mxu0 %v436
    %547 = vmatprep.subr.bf16.mxu0 0
    %548 = vmatpush1.bf16.msra.mxu0 %v437
    %549 = vmatprep.subr.bf16.mxu0 0
    %550 = vmatpush1.bf16.msra.mxu0 %v438
    %551 = vmatprep.subr.bf16.mxu0 0
    %552 = vmatpush1.bf16.msra.mxu0 %v439
    %553 = vmatprep.subr.bf16.mxu0 0
    %554 = vmatpush1.bf16.msra.mxu0 %v440
    %555 = vmatprep.subr.bf16.mxu0 0
    %556 = vmatpush1.bf16.msra.mxu0 %v441
    %557 = vmatprep.subr.bf16.mxu0 0
    %558 = vmatpush1.bf16.msra.mxu0 %v442
    %559 = vmatprep.subr.bf16.mxu0 0
    %560 = vmatpush1.bf16.msra.mxu0 %v443
    %561 = vmatprep.subr.bf16.mxu0 0
    %562 = vmatpush1.bf16.msra.mxu0 %v444
    %563 = vmatprep.mubr.bf16.mxu0 %v221
    %564 = vmatmul.mubr.bf16.gmra.mrb[0].mxu0 %v220
    %v565 = vpop.f32.mrb[0].mxu0
    %v566 = vadd.f32 %v207, %v565
    %v567 = vpop.f32.mrb[0].mxu0
    %v568 = vpop.f32.mrb[0].mxu0
    %v569 = vpop.f32.mrb[0].mxu0
    %570 = vdwg.mxu0
    %571 = vmatprep.subr.bf16.mxu0 0
    %572 = vmatpush1.bf16.msra.mxu0 %v445
    %573 = vmatprep.subr.bf16.mxu0 0
    %574 = vmatpush1.bf16.msra.mxu0 %v446
    %575 = vmatprep.subr.bf16.mxu0 0
    %576 = vmatpush1.bf16.msra.mxu0 %v447
    %577 = vmatprep.subr.bf16.mxu0 0
    %578 = vmatpush1.bf16.msra.mxu0 %v448
    %579 = vmatprep.subr.bf16.mxu0 0
    %580 = vmatpush1.bf16.msra.mxu0 %v449
    %581 = vmatprep.subr.bf16.mxu0 0
    %582 = vmatpush1.bf16.msra.mxu0 %v450
    %583 = vmatprep.subr.bf16.mxu0 0
    %584 = vmatpush1.bf16.msra.mxu0 %v451
    %585 = vmatprep.subr.bf16.mxu0 0
    %586 = vmatpush1.bf16.msra.mxu0 %v452
    %587 = vmatprep.subr.bf16.mxu0 0
    %588 = vmatpush1.bf16.msra.mxu0 %v453
    %589 = vmatprep.subr.bf16.mxu0 0
    %590 = vmatpush1.bf16.msra.mxu0 %v454
    %591 = vmatprep.subr.bf16.mxu0 0
    %592 = vmatpush1.bf16.msra.mxu0 %v455
    %593 = vmatprep.subr.bf16.mxu0 0
    %594 = vmatpush1.bf16.msra.mxu0 %v456
    %595 = vmatprep.subr.bf16.mxu0 0
    %596 = vmatpush1.bf16.msra.mxu0 %v457
    %597 = vmatprep.subr.bf16.mxu0 0
    %598 = vmatpush1.bf16.msra.mxu0 %v458
    %599 = vmatprep.subr.bf16.mxu0 0
    %600 = vmatpush1.bf16.msra.mxu0 %v459
    %601 = vmatprep.subr.bf16.mxu0 0
    %602 = vmatpush1.bf16.msra.mxu0 %v460
    %603 = vmatprep.mubr.bf16.mxu0 %v223
    %604 = vmatmul.mubr.bf16.gmra.mrb[0].mxu0 %v222
    %v605 = vpop.f32.mrb[0].mxu0
    %v606 = vadd.f32 %v566, %v605
    %v607 = vpop.f32.mrb[0].mxu0
    %v608 = vpop.f32.mrb[0].mxu0
    %v609 = vpop.f32.mrb[0].mxu0
    %610 = vdwg.mxu0
    %611 = vmatprep.subr.bf16.mxu0 0
    %612 = vmatpush1.bf16.msra.mxu0 %v461
    %613 = vmatprep.subr.bf16.mxu0 0
    %614 = vmatpush1.bf16.msra.mxu0 %v462
    %615 = vmatprep.subr.bf16.mxu0 0
    %616 = vmatpush1.bf16.msra.mxu0 %v463
    %617 = vmatprep.subr.bf16.mxu0 0
    %618 = vmatpush1.bf16.msra.mxu0 %v464
    %619 = vmatprep.subr.bf16.mxu0 0
    %620 = vmatpush1.bf16.msra.mxu0 %v465
    %621 = vmatprep.subr.bf16.mxu0 0
    %622 = vmatpush1.bf16.msra.mxu0 %v466
    %623 = vmatprep.subr.bf16.mxu0 0
    %624 = vmatpush1.bf16.msra.mxu0 %v467
    %625 = vmatprep.subr.bf16.mxu0 0
    %626 = vmatpush1.bf16.msra.mxu0 %v468
    %627 = vmatprep.subr.bf16.mxu0 0
    %628 = vmatpush1.bf16.msra.mxu0 %v469
    %629 = vmatprep.subr.bf16.mxu0 0
    %630 = vmatpush1.bf16.msra.mxu0 %v470
    %631 = vmatprep.subr.bf16.mxu0 0
    %632 = vmatpush1.bf16.msra.mxu0 %v471
    %633 = vmatprep.subr.bf16.mxu0 0
    %634 = vmatpush1.bf16.msra.mxu0 %v472
    %635 = vmatprep.subr.bf16.mxu0 0
    %636 = vmatpush1.bf16.msra.mxu0 %v473
    %637 = vmatprep.subr.bf16.mxu0 0
    %638 = vmatpush1.bf16.msra.mxu0 %v474
    %639 = vmatprep.subr.bf16.mxu0 0
    %640 = vmatpush1.bf16.msra.mxu0 %v475
    %641 = vmatprep.subr.bf16.mxu0 0
    %642 = vmatpush1.bf16.msra.mxu0 %v476
    %643 = vmatprep.mubr.bf16.mxu0 %v225
    %644 = vmatmul.mubr.bf16.gmra.mrb[0].mxu0 %v224
    %v645 = vpop.f32.mrb[0].mxu0
    %v646 = vadd.f32 %v606, %v645
    %v647 = vpop.f32.mrb[0].mxu0
    %v648 = vpop.f32.mrb[0].mxu0
    %v649 = vpop.f32.mrb[0].mxu0
    %650 = vdwg.mxu0
    %651 = vmatprep.subr.bf16.mxu0 0
    %652 = vmatpush1.bf16.msra.mxu0 %v477
    %653 = vmatprep.subr.bf16.mxu0 0
    %654 = vmatpush1.bf16.msra.mxu0 0
    %655 = vmatprep.subr.bf16.mxu0 0
    %656 = vmatpush1.bf16.msra.mxu0 0
    %657 = vmatprep.subr.bf16.mxu0 0
    %658 = vmatpush1.bf16.msra.mxu0 0
    %659 = vmatprep.subr.bf16.mxu0 0
    %660 = vmatpush1.bf16.msra.mxu0 0
    %661 = vmatprep.subr.bf16.mxu0 0
    %662 = vmatpush1.bf16.msra.mxu0 0
    %663 = vmatprep.subr.bf16.mxu0 0
    %664 = vmatpush1.bf16.msra.mxu0 0
    %665 = vmatprep.subr.bf16.mxu0 0
    %666 = vmatpush1.bf16.msra.mxu0 0
    %667 = vmatprep.subr.bf16.mxu0 0
    %668 = vmatpush1.bf16.msra.mxu0 0
    %669 = vmatprep.subr.bf16.mxu0 0
    %670 = vmatpush1.bf16.msra.mxu0 0
    %671 = vmatprep.subr.bf16.mxu0 0
    %672 = vmatpush1.bf16.msra.mxu0 0
    %673 = vmatprep.subr.bf16.mxu0 0
    %674 = vmatpush1.bf16.msra.mxu0 0
    %675 = vmatprep.subr.bf16.mxu0 0
    %676 = vmatpush1.bf16.msra.mxu0 0
    %677 = vmatprep.subr.bf16.mxu0 0
    %678 = vmatpush1.bf16.msra.mxu0 0
    %679 = vmatprep.subr.bf16.mxu0 0
    %680 = vmatpush1.bf16.msra.mxu0 0
    %681 = vmatprep.subr.bf16.mxu0 0
    %682 = vmatpush1.bf16.msra.mxu0 0
    %683 = vmatprep.mubr.bf16.mxu0 0
    %684 = vmatmul.mubr.bf16.gmra.mrb[0].mxu0 %v529
    %v685 = vpop.f32.mrb[0].mxu0
    %v686 = vadd.f32 %v646, %v685
    %v687 = vpop.f32.mrb[0].mxu0
    %v688 = vpop.f32.mrb[0].mxu0
    %v689 = vpop.f32.mrb[0].mxu0
    %690 = vdwg.mxu0
    %v691 = vmul.f32 %v686, 0.5
    %v692 = vand.u32 2147483647, %v691
    %vm693 = vcmp.le.f32.partialorder %v692, 0.7853982
    %vm694 = vcmp.lt.s32.totalorder %v691, 0
    %v695 = vand.u32 %v691, 2139095040
    %v696 = vshrl.u32 %v695, 23
    %v697 = vsub.s32 %v696, 127
    %v698 = vand.u32 2147483647, %v691
    %v699 = vand.u32 %v698, 8388607
    %v700 = vor.u32 %v699, 8388608
    %v701 = vsub.s32 0, %v700
    %v702 = vadd.s32 %v697, 1
    %vm703 = vcmp.gt.s32.totalorder %v702, 0
    %v704 = vsel %vm703, %v702, 0
    %v705 = vshrl.u32 %v704, 5
    %v706 = vand.u32 %v704, 31
    %v707 = vsub.s32 32, %v706
    %v708 = vshrl.u32 683565275, %v707
    %v709 = vshll.u32 683565275, %v706
    %v710 = vshrl.u32 2475754826, %v707
    %v711 = vor.u32 %v709, %v710
    %v712 = vshll.u32 2475754826, %v706
    %v713 = vshrl.u32 2131351028, %v707
    %v714 = vor.u32 %v712, %v713
    %v715 = vshll.u32 2131351028, %v706
    %v716 = vshrl.u32 2102212464, %v707
    %v717 = vor.u32 %v715, %v716
    %v718 = vshll.u32 2102212464, %v706
    %v719 = vshrl.u32 920167782, %v707
    %v720 = vor.u32 %v718, %v719
    %v721 = vshll.u32 920167782, %v706
    %v722 = vshrl.u32 1326507024, %v707
    %v723 = vor.u32 %v721, %v722
    %vm724 = vcmp.lt.s32.totalorder %v705, 1
    %vm725 = vcmp.lt.s32.totalorder %v705, 2
    %vm726 = vcmp.lt.s32.totalorder %v705, 3
    %vm727 = vcmp.lt.s32.totalorder %v705, 4
    %v728 = vsel %vm724, %v708, %v711
    %v729 = vsel %vm727, %v717, 2102212464
    %v730 = vsel %vm726, %v714, %v729
    %v731 = vsel %vm725, %v728, %v730
    %v732 = vsel %vm724, %v711, %v714
    %v733 = vsel %vm727, %v720, 920167782
    %v734 = vsel %vm726, %v717, %v733
    %v735 = vsel %vm725, %v732, %v734
    %v736 = vsel %vm724, %v714, %v717
    %v737 = vsel %vm727, %v723, 1326507024
    %v738 = vsel %vm726, %v720, %v737
    %v739 = vsel %vm725, %v736, %v738
    %v740 = vshll.u32 %v700, 8
    %v741 = vmul.u32.u64.compose %v740, %v739
    %v742 = vextract.low.u32 %v741
    %v743 = vextract.high.u32 %v741
    %v744 = vmul.u32.u64.compose %v740, %v735
    %v745 = vextract.low.u32 %v744
    %v746 = vextract.high.u32 %v744
    %v747 = vmul.u32 %v740, %v731
    %v748 = vadd.s32 %v743, %v745
    %vm749 = vc.u32 %v743, %v745
    %v750 = vadd.s32 %v746, 1
    %v751 = vsel %vm749, %v750, %v746
    %v752 = vadd.s32 %v747, %v751
    %v753 = vadd.s32 %v752, 536870912
    %v754 = vshrl.u32 %v753, 30
    %v755 = vshll.u32 %v754, 30
    %v756 = vsub.s32 %v752, %v755
    %vm757 = vcmp.lt.s32.totalorder %v756, 0
    %v758 = vsub.s32 0, %v756
    %v759 = vsel %vm757, %v758, %v756
    %v760 = vclz %v759
    %v761 = vsub.s32 %v760, 2
    %vm762 = vcmp.gt.s32.totalorder 0, %v761
    %v763 = vsel %vm762, 0, %v761
    %v764 = vsub.s32 32, %v763
    %v765 = vshll.u32 %v756, %v763
    %v766 = vshrl.u32 %v748, %v764
    %v767 = vor.u32 %v765, %v766
    %v768 = vsub.s32 4294967266, %v763
    %v769 = vadd.s32 %v768, 127
    %v770 = vshll.u32 %v769, 23
    %v771 = vor.u32 4788187, %v770
    %v772 = vand.u32 2147483647, %v771
    %v774 = vcvt.s32.f32 %v767
    %v775 = vmul.f32 %v774, %v772
    %v776 = vxor.u32 %v775, 2147483648
    %v777 = vsel %vm694, %v776, %v775
    %v778 = vsub.s32 4, %v754
    %v779 = vsel %vm694, %v778, %v754
    %v780 = vsel %vm693, %v691, %v777
    %v781 = vsel %vm693, 0, %v779
    %v782 = vcosq.f32.pop %v780
    %v783 = vsinq.f32.pop %v780
    %vm784 = vweird.f32 %v691
    %v785 = vand.u32 %v781, 3
    %vm786 = vcmp.lt.s32.totalorder %v785, 2
    %vm787 = vcmp.eq.s32.totalorder %v785, 0
    %v788 = vxor.u32 %v783, 2147483648
    %v789 = vsel %vm787, %v782, %v788
    %vm790 = vcmp.eq.s32.totalorder %v785, 2
    %v791 = vxor.u32 %v782, 2147483648
    %v792 = vsel %vm790, %v791, %v783
    %v793 = vsel %vm786, %v789, %v792
    %v794 = vsel %vm784, nan, %v793
    %v795 = vand.u32 2147483647, %v691
    %vm796 = vcmp.le.f32.partialorder %v795, 0.7853982
    %vm797 = vcmp.lt.s32.totalorder %v691, 0
    %v798 = vand.u32 %v691, 2139095040
    %v799 = vshrl.u32 %v798, 23
    %v800 = vsub.s32 %v799, 127
    %v801 = vand.u32 2147483647, %v691
    %v802 = vand.u32 %v801, 8388607
    %v803 = vor.u32 %v802, 8388608
    %v804 = vsub.s32 0, %v803
    %v805 = vadd.s32 %v800, 1
    %vm806 = vcmp.gt.s32.totalorder %v805, 0
    %v807 = vsel %vm806, %v805, 0
    %v808 = vshrl.u32 %v807, 5
    %v809 = vand.u32 %v807, 31
    %v810 = vsub.s32 32, %v809
    %v811 = vshrl.u32 683565275, %v810
    %v812 = vshll.u32 683565275, %v809
    %v813 = vshrl.u32 2475754826, %v810
    %v814 = vor.u32 %v812, %v813
    %v815 = vshll.u32 2475754826, %v809
    %v816 = vshrl.u32 2131351028, %v810
    %v817 = vor.u32 %v815, %v816
    %v818 = vshll.u32 2131351028, %v809
    %v819 = vshrl.u32 2102212464, %v810
    %v820 = vor.u32 %v818, %v819
    %v821 = vshll.u32 2102212464, %v809
    %v822 = vshrl.u32 920167782, %v810
    %v823 = vor.u32 %v821, %v822
    %v824 = vshll.u32 920167782, %v809
    %v825 = vshrl.u32 1326507024, %v810
    %v826 = vor.u32 %v824, %v825
    %vm827 = vcmp.lt.s32.totalorder %v808, 1
    %vm828 = vcmp.lt.s32.totalorder %v808, 2
    %vm829 = vcmp.lt.s32.totalorder %v808, 3
    %vm830 = vcmp.lt.s32.totalorder %v808, 4
    %v831 = vsel %vm827, %v811, %v814
    %v832 = vsel %vm830, %v820, 2102212464
    %v833 = vsel %vm829, %v817, %v832
    %v834 = vsel %vm828, %v831, %v833
    %v835 = vsel %vm827, %v814, %v817
    %v836 = vsel %vm830, %v823, 920167782
    %v837 = vsel %vm829, %v820, %v836
    %v838 = vsel %vm828, %v835, %v837
    %v839 = vsel %vm827, %v817, %v820
    %v840 = vsel %vm830, %v826, 1326507024
    %v841 = vsel %vm829, %v823, %v840
    %v842 = vsel %vm828, %v839, %v841
    %v843 = vshll.u32 %v803, 8
    %v844 = vmul.u32.u64.compose %v843, %v842
    %v845 = vextract.low.u32 %v844
    %v846 = vextract.high.u32 %v844
    %v847 = vmul.u32.u64.compose %v843, %v838
    %v848 = vextract.low.u32 %v847
    %v849 = vextract.high.u32 %v847
    %v850 = vmul.u32 %v843, %v834
    %v851 = vadd.s32 %v846, %v848
    %vm852 = vc.u32 %v846, %v848
    %v853 = vadd.s32 %v849, 1
    %v854 = vsel %vm852, %v853, %v849
    %v855 = vadd.s32 %v850, %v854
    %v856 = vadd.s32 %v855, 536870912
    %v857 = vshrl.u32 %v856, 30
    %v858 = vshll.u32 %v857, 30
    %v859 = vsub.s32 %v855, %v858
    %vm860 = vcmp.lt.s32.totalorder %v859, 0
    %v861 = vsub.s32 0, %v859
    %v862 = vsel %vm860, %v861, %v859
    %v863 = vclz %v862
    %v864 = vsub.s32 %v863, 2
    %vm865 = vcmp.gt.s32.totalorder 0, %v864
    %v866 = vsel %vm865, 0, %v864
    %v867 = vsub.s32 32, %v866
    %v868 = vshll.u32 %v859, %v866
    %v869 = vshrl.u32 %v851, %v867
    %v870 = vor.u32 %v868, %v869
    %v871 = vsub.s32 4294967266, %v866
    %v872 = vadd.s32 %v871, 127
    %v873 = vshll.u32 %v872, 23
    %v874 = vor.u32 4788187, %v873
    %v875 = vand.u32 2147483647, %v874
    %v877 = vcvt.s32.f32 %v870
    %v878 = vmul.f32 %v877, %v875
    %v879 = vxor.u32 %v878, 2147483648
    %v880 = vsel %vm797, %v879, %v878
    %v881 = vsub.s32 4, %v857
    %v882 = vsel %vm797, %v881, %v857
    %v883 = vsel %vm796, %v691, %v880
    %v884 = vsel %vm796, 0, %v882
    %v885 = vcosq.f32.pop %v883
    %v886 = vsinq.f32.pop %v883
    %vm887 = vweird.f32 %v691
    %v888 = vadd.s32 %v884, 3
    %v889 = vand.u32 %v888, 3
    %vm890 = vcmp.lt.s32.totalorder %v889, 2
    %vm891 = vcmp.eq.s32.totalorder %v889, 0
    %v892 = vxor.u32 %v886, 2147483648
    %v893 = vsel %vm891, %v885, %v892
    %vm894 = vcmp.eq.s32.totalorder %v889, 2
    %v895 = vxor.u32 %v885, 2147483648
    %v896 = vsel %vm894, %v895, %v886
    %v897 = vsel %vm890, %v893, %v896
    %v898 = vsel %vm887, nan, %v897
    %v899 = vld [vmem:[#allocation7] sm:$0x1]
    %v900 = vsub.f32 %v898, %v794
    %902 = vset.pattern.permute.xlu0 3
    %903 = vperm.xlu0 %902, %v900
    %v904 = vpop.permute.xlu0 %903
    %v906 = vlaneseq
    %v907 = vshrl.u32 %v906, 7
    %v908 = vsub.s32 0, %v907
    %v909 = vrot.slane %v899, %v908
    %v910 = vmul.f32 %v904, %v909
    %912 = vset.pattern.permute.xlu0 3
    %913 = vperm.xlu0 %912, %v794
    %v914 = vpop.permute.xlu0 %913
    %v916 = vadd.f32 %v914, %v910
    %v917 = vld [vmem:[#allocation7 + $0x1] sm:$0x1]
    %918 = vset.pattern.permute.xlu0 4
    %919 = vperm.xlu0 %918, %v900
    %v920 = vpop.permute.xlu0 %919
    %v922 = vlaneseq
    %v923 = vshrl.u32 %v922, 7
    %v924 = vsub.s32 0, %v923
    %v925 = vrot.slane %v917, %v924
    %v926 = vmul.f32 %v920, %v925
    %927 = vset.pattern.permute.xlu0 4
    %928 = vperm.xlu0 %927, %v794
    %v929 = vpop.permute.xlu0 %928
    %v931 = vadd.f32 %v929, %v926
    %v932 = vmul.f32 %v916, %v931
    %v933 = vld [vmem:[#allocation7 + $0x2] sm:$0x1]
    %934 = vset.pattern.permute.xlu0 5
    %935 = vperm.xlu0 %934, %v900
    %v936 = vpop.permute.xlu0 %935
    %v938 = vlaneseq
    %v939 = vshrl.u32 %v938, 7
    %v940 = vsub.s32 0, %v939
    %v941 = vrot.slane %v933, %v940
    %v942 = vmul.f32 %v936, %v941
    %943 = vset.pattern.permute.xlu0 5
    %944 = vperm.xlu0 %943, %v794
    %v945 = vpop.permute.xlu0 %944
    %v947 = vadd.f32 %v945, %v942
    %v948 = vmul.f32 %v932, %v947
    %v949 = vld [vmem:[#allocation7 + $0x3] sm:$0x1]
    %950 = vset.pattern.permute.xlu0 6
    %951 = vperm.xlu0 %950, %v900
    %v952 = vpop.permute.xlu0 %951
    %v954 = vlaneseq
    %v955 = vshrl.u32 %v954, 7
    %v956 = vsub.s32 0, %v955
    %v957 = vrot.slane %v949, %v956
    %v958 = vmul.f32 %v952, %v957
    %959 = vset.pattern.permute.xlu0 6
    %960 = vperm.xlu0 %959, %v794
    %v961 = vpop.permute.xlu0 %960
    %v963 = vadd.f32 %v961, %v958
    %v964 = vmul.f32 %v948, %v963
    %v965 = vld [vmem:[#allocation7 + $0x4] sm:$0x1]
    %966 = vset.pattern.permute.xlu0 7
    %967 = vperm.xlu0 %966, %v900
    %v968 = vpop.permute.xlu0 %967
    %v970 = vlaneseq
    %v971 = vshrl.u32 %v970, 7
    %v972 = vsub.s32 0, %v971
    %v973 = vrot.slane %v965, %v972
    %v974 = vmul.f32 %v968, %v973
    %975 = vset.pattern.permute.xlu0 7
    %976 = vperm.xlu0 %975, %v794
    %v977 = vpop.permute.xlu0 %976
    %v979 = vadd.f32 %v977, %v974
    %v980 = vmul.f32 %v964, %v979
    %v981 = vld [vmem:[#allocation7 + $0x5] sm:$0x1]
    %982 = vset.pattern.permute.xlu0 8
    %983 = vperm.xlu0 %982, %v900
    %v984 = vpop.permute.xlu0 %983
    %v986 = vlaneseq
    %v987 = vshrl.u32 %v986, 7
    %v988 = vsub.s32 0, %v987
    %v989 = vrot.slane %v981, %v988
    %v990 = vmul.f32 %v984, %v989
    %991 = vset.pattern.permute.xlu0 8
    %992 = vperm.xlu0 %991, %v794
    %v993 = vpop.permute.xlu0 %992
    %v995 = vadd.f32 %v993, %v990
    %v996 = vmul.f32 %v980, %v995
    %v997 = vld [vmem:[#allocation7 + $0x6] sm:$0x1]
    %998 = vset.pattern.permute.xlu0 9
    %999 = vperm.xlu0 %998, %v900
    %v1000 = vpop.permute.xlu0 %999
    %v1002 = vlaneseq
    %v1003 = vshrl.u32 %v1002, 7
    %v1004 = vsub.s32 0, %v1003
    %v1005 = vrot.slane %v997, %v1004
    %v1006 = vmul.f32 %v1000, %v1005
    %1007 = vset.pattern.permute.xlu0 9
    %1008 = vperm.xlu0 %1007, %v794
    %v1009 = vpop.permute.xlu0 %1008
    %v1011 = vadd.f32 %v1009, %v1006
    %v1012 = vmul.f32 %v996, %v1011
    %1013 = vrot.lane.b32.xlu0 %v794, 127
    %v1014 = vpop.permute.xlu0 %1013
    %v1016 = vmul.f32 %v794, %v1014
    %1017 = vrot.lane.b32.xlu0 %v794, 126
    %v1018 = vpop.permute.xlu0 %1017
    %v1020 = vmul.f32 %v1016, %v1018
    %1022 = vrot.lane.b32.xlu0 %v898, 126
    %v1023 = vpop.permute.xlu0 %1022
    %v1025 = vmul.f32 %v1016, %v1023
    %1026 = vrot.lane.b32.xlu0 %v898, 127
    %v1027 = vpop.permute.xlu0 %1026
    %v1029 = vmul.f32 %v794, %v1027
    %v1030 = vmul.f32 %v1029, %v1018
    %v1031 = vmul.f32 %v1029, %v1023
    %v1032 = vmul.f32 %v898, %v1014
    %v1033 = vmul.f32 %v1032, %v1018
    %v1034 = vmul.f32 %v1032, %v1023
    %v1035 = vmul.f32 %v898, %v1027
    %v1036 = vmul.f32 %v1035, %v1018
    %v1037 = vmul.f32 %v1035, %v1023
    %1039 = vset.pattern.permute.xlu0 0
    %1040 = vperm.xlu0 %1039, %v1020
    %v1041 = vpop.permute.xlu0 %1040
    %v1043 = vmul.f32 %v1041, %v1012
    %1045 = vset.pattern.permute.xlu0 0
    %1046 = vperm.xlu0 %1045, %v1025
    %v1047 = vpop.permute.xlu0 %1046
    %v1049 = vmul.f32 %v1047, %v1012
    %1051 = vset.pattern.permute.xlu0 0
    %1052 = vperm.xlu0 %1051, %v1030
    %v1053 = vpop.permute.xlu0 %1052
    %v1055 = vmul.f32 %v1053, %v1012
    %1057 = vset.pattern.permute.xlu0 0
    %1058 = vperm.xlu0 %1057, %v1031
    %v1059 = vpop.permute.xlu0 %1058
    %v1061 = vmul.f32 %v1059, %v1012
    %1063 = vset.pattern.permute.xlu0 0
    %1064 = vperm.xlu0 %1063, %v1033
    %v1065 = vpop.permute.xlu0 %1064
    %v1067 = vmul.f32 %v1065, %v1012
    %1069 = vset.pattern.permute.xlu0 0
    %1070 = vperm.xlu0 %1069, %v1034
    %v1071 = vpop.permute.xlu0 %1070
    %v1073 = vmul.f32 %v1071, %v1012
    %1075 = vset.pattern.permute.xlu0 0
    %1076 = vperm.xlu0 %1075, %v1036
    %v1077 = vpop.permute.xlu0 %1076
    %v1079 = vmul.f32 %v1077, %v1012
    %1081 = vset.pattern.permute.xlu0 0
    %1082 = vperm.xlu0 %1081, %v1037
    %v1083 = vpop.permute.xlu0 %1082
    %v1085 = vmul.f32 %v1083, %v1012
    %v1086 = vpack.c.bf16 %v1043, %v1043
    %v1087 = vpack.c.bf16 %v1049, %v1049
    %v1088 = vpack.c.bf16 %v1055, %v1055
    %v1089 = vpack.c.bf16 %v1061, %v1061
    %v1090 = vpack.c.bf16 %v1067, %v1067
    %v1091 = vpack.c.bf16 %v1073, %v1073
    %v1092 = vpack.c.bf16 %v1079, %v1079
    %v1093 = vpack.c.bf16 %v1085, %v1085
    %v1094 = vld [vmem:[#allocation8] sm:$0xff]
    %v1095 = vld [vmem:[#allocation8 + $0x8] sm:$0xff]
    %v1096 = vld [vmem:[#allocation8 + $0x10] sm:$0xff]
    %v1097 = vld [vmem:[#allocation8 + $0x18] sm:$0xff]
    %v1098 = vld [vmem:[#allocation8 + $0x20] sm:$0xff]
    %v1099 = vld [vmem:[#allocation8 + $0x28] sm:$0xff]
    %v1100 = vld [vmem:[#allocation8 + $0x30] sm:$0xff]
    %v1101 = vld [vmem:[#allocation8 + $0x38] sm:$0xff]
    %v1102 = vld [vmem:[#allocation8 + $0x40] sm:$0xff]
    %v1103 = vld [vmem:[#allocation8 + $0x48] sm:$0xff]
    %v1104 = vld [vmem:[#allocation8 + $0x50] sm:$0xff]
    %v1105 = vld [vmem:[#allocation8 + $0x58] sm:$0xff]
    %v1106 = vld [vmem:[#allocation8 + $0x60] sm:$0xff]
    %v1107 = vld [vmem:[#allocation8 + $0x68] sm:$0xff]
    %v1108 = vld [vmem:[#allocation8 + $0x70] sm:$0xff]
    %v1109 = vld [vmem:[#allocation8 + $0x78] sm:$0xff]
    %v1110 = vld [vmem:[#allocation8 + $0x80] sm:$0xff]
    %v1111 = vld [vmem:[#allocation8 + $0x88] sm:$0xff]
    %v1112 = vld [vmem:[#allocation8 + $0x90] sm:$0xff]
    %v1113 = vld [vmem:[#allocation8 + $0x98] sm:$0xff]
    %v1114 = vld [vmem:[#allocation8 + $0xa0] sm:$0xff]
    %v1115 = vld [vmem:[#allocation8 + $0xa8] sm:$0xff]
    %v1116 = vld [vmem:[#allocation8 + $0xb0] sm:$0xff]
    %v1117 = vld [vmem:[#allocation8 + $0xb8] sm:$0xff]
    %v1118 = vld [vmem:[#allocation8 + $0xc0] sm:$0xff]
    %v1119 = vld [vmem:[#allocation8 + $0xc8] sm:$0xff]
    %v1120 = vld [vmem:[#allocation8 + $0xd0] sm:$0xff]
    %v1121 = vld [vmem:[#allocation8 + $0xd8] sm:$0xff]
    %v1122 = vld [vmem:[#allocation8 + $0xe0] sm:$0xff]
    %v1123 = vld [vmem:[#allocation8 + $0xe8] sm:$0xff]
    %v1124 = vld [vmem:[#allocation8 + $0xf0] sm:$0xff]
    %v1125 = vld [vmem:[#allocation8 + $0xf8] sm:$0xff]
    %v1126 = vld [vmem:[#allocation8 + $0x100] sm:$0xff]
    %v1127 = vld [vmem:[#allocation8 + $0x108] sm:$0xff]
    %v1128 = vld [vmem:[#allocation8 + $0x110] sm:$0xff]
    %v1129 = vld [vmem:[#allocation8 + $0x118] sm:$0xff]
    %v1130 = vld [vmem:[#allocation8 + $0x120] sm:$0xff]
    %v1131 = vld [vmem:[#allocation8 + $0x128] sm:$0xff]
    %v1132 = vld [vmem:[#allocation8 + $0x130] sm:$0xff]
    %v1133 = vld [vmem:[#allocation8 + $0x138] sm:$0xff]
    %v1134 = vld [vmem:[#allocation8 + $0x140] sm:$0xff]
    %v1135 = vld [vmem:[#allocation8 + $0x148] sm:$0xff]
    %v1136 = vld [vmem:[#allocation8 + $0x150] sm:$0xff]
    %v1137 = vld [vmem:[#allocation8 + $0x158] sm:$0xff]
    %v1138 = vld [vmem:[#allocation8 + $0x160] sm:$0xff]
    %v1139 = vld [vmem:[#allocation8 + $0x168] sm:$0xff]
    %v1140 = vld [vmem:[#allocation8 + $0x170] sm:$0xff]
    %v1141 = vld [vmem:[#allocation8 + $0x178] sm:$0xff]
    %v1142 = vld [vmem:[#allocation8 + $0x180] sm:$0xff]
    %v1143 = vld [vmem:[#allocation8 + $0x188] sm:$0xff]
    %v1144 = vld [vmem:[#allocation8 + $0x190] sm:$0xff]
    %v1145 = vld [vmem:[#allocation8 + $0x198] sm:$0xff]
    %v1146 = vld [vmem:[#allocation8 + $0x1a0] sm:$0xff]
    %v1147 = vld [vmem:[#allocation8 + $0x1a8] sm:$0xff]
    %v1148 = vld [vmem:[#allocation8 + $0x1b0] sm:$0xff]
    %v1149 = vld [vmem:[#allocation8 + $0x1b8] sm:$0xff]
    %v1150 = vld [vmem:[#allocation8 + $0x1c0] sm:$0xff]
    %v1151 = vld [vmem:[#allocation8 + $0x1c8] sm:$0xff]
    %v1152 = vld [vmem:[#allocation8 + $0x1d0] sm:$0xff]
    %v1153 = vld [vmem:[#allocation8 + $0x1d8] sm:$0xff]
    %v1154 = vld [vmem:[#allocation8 + $0x1e0] sm:$0xff]
    %v1155 = vld [vmem:[#allocation8 + $0x1e8] sm:$0xff]
    %v1156 = vld [vmem:[#allocation8 + $0x1f0] sm:$0xff]
    %v1157 = vld [vmem:[#allocation8 + $0x1f8] sm:$0xff]
    %v1158 = vld [vmem:[#allocation8 + $0x200] sm:$0xff]
    %v1159 = vld [vmem:[#allocation8 + $0x208] sm:$0xff]
    %v1160 = vld [vmem:[#allocation8 + $0x210] sm:$0xff]
    %v1161 = vld [vmem:[#allocation8 + $0x218] sm:$0xff]
    %v1162 = vld [vmem:[#allocation8 + $0x220] sm:$0xff]
    %v1163 = vld [vmem:[#allocation8 + $0x228] sm:$0xff]
    %v1164 = vld [vmem:[#allocation8 + $0x230] sm:$0xff]
    %v1165 = vld [vmem:[#allocation8 + $0x238] sm:$0xff]
    %v1166 = vld [vmem:[#allocation8 + $0x240] sm:$0xff]
    %v1167 = vld [vmem:[#allocation8 + $0x248] sm:$0xff]
    %v1168 = vld [vmem:[#allocation8 + $0x250] sm:$0xff]
    %v1169 = vld [vmem:[#allocation8 + $0x258] sm:$0xff]
    %v1170 = vld [vmem:[#allocation8 + $0x260] sm:$0xff]
    %v1171 = vld [vmem:[#allocation8 + $0x268] sm:$0xff]
    %v1172 = vld [vmem:[#allocation8 + $0x270] sm:$0xff]
    %v1173 = vld [vmem:[#allocation8 + $0x278] sm:$0xff]
    %v1174 = vld [vmem:[#allocation8 + $0x280] sm:$0xff]
    %v1175 = vld [vmem:[#allocation8 + $0x288] sm:$0xff]
    %v1176 = vld [vmem:[#allocation8 + $0x290] sm:$0xff]
    %v1177 = vld [vmem:[#allocation8 + $0x298] sm:$0xff]
    %v1178 = vld [vmem:[#allocation8 + $0x2a0] sm:$0xff]
    %v1179 = vld [vmem:[#allocation8 + $0x2a8] sm:$0xff]
    %v1180 = vld [vmem:[#allocation8 + $0x2b0] sm:$0xff]
    %v1181 = vld [vmem:[#allocation8 + $0x2b8] sm:$0xff]
    %v1182 = vld [vmem:[#allocation8 + $0x2c0] sm:$0xff]
    %v1183 = vld [vmem:[#allocation8 + $0x2c8] sm:$0xff]
    %v1184 = vld [vmem:[#allocation8 + $0x2d0] sm:$0xff]
    %v1185 = vld [vmem:[#allocation8 + $0x2d8] sm:$0xff]
    %v1186 = vld [vmem:[#allocation8 + $0x2e0] sm:$0xff]
    %v1187 = vld [vmem:[#allocation8 + $0x2e8] sm:$0xff]
    %v1188 = vld [vmem:[#allocation8 + $0x2f0] sm:$0xff]
    %v1189 = vld [vmem:[#allocation8 + $0x2f8] sm:$0xff]
    %v1190 = vld [vmem:[#allocation8 + $0x300] sm:$0xff]
    %v1191 = vld [vmem:[#allocation8 + $0x308] sm:$0xff]
    %v1192 = vld [vmem:[#allocation8 + $0x310] sm:$0xff]
    %v1193 = vld [vmem:[#allocation8 + $0x318] sm:$0xff]
    %v1194 = vld [vmem:[#allocation8 + $0x320] sm:$0xff]
    %v1195 = vld [vmem:[#allocation8 + $0x328] sm:$0xff]
    %v1196 = vld [vmem:[#allocation8 + $0x330] sm:$0xff]
    %v1197 = vld [vmem:[#allocation8 + $0x338] sm:$0xff]
    %v1198 = vld [vmem:[#allocation8 + $0x340] sm:$0xff]
    %v1199 = vld [vmem:[#allocation8 + $0x348] sm:$0xff]
    %v1200 = vld [vmem:[#allocation8 + $0x350] sm:$0xff]
    %v1201 = vld [vmem:[#allocation8 + $0x358] sm:$0xff]
    %v1202 = vld [vmem:[#allocation8 + $0x360] sm:$0xff]
    %v1203 = vld [vmem:[#allocation8 + $0x368] sm:$0xff]
    %v1204 = vld [vmem:[#allocation8 + $0x370] sm:$0xff]
    %v1205 = vld [vmem:[#allocation8 + $0x378] sm:$0xff]
    %v1206 = vld [vmem:[#allocation8 + $0x380] sm:$0xff]
    %v1207 = vld [vmem:[#allocation8 + $0x388] sm:$0xff]
    %v1208 = vld [vmem:[#allocation8 + $0x390] sm:$0xff]
    %v1209 = vld [vmem:[#allocation8 + $0x398] sm:$0xff]
    %v1210 = vld [vmem:[#allocation8 + $0x3a0] sm:$0xff]
    %v1211 = vld [vmem:[#allocation8 + $0x3a8] sm:$0xff]
    %v1212 = vld [vmem:[#allocation8 + $0x3b0] sm:$0xff]
    %v1213 = vld [vmem:[#allocation8 + $0x3b8] sm:$0xff]
    %v1214 = vld [vmem:[#allocation8 + $0x3c0] sm:$0xff]
    %v1215 = vld [vmem:[#allocation8 + $0x3c8] sm:$0xff]
    %v1216 = vld [vmem:[#allocation8 + $0x3d0] sm:$0xff]
    %v1217 = vld [vmem:[#allocation8 + $0x3d8] sm:$0xff]
    %v1218 = vld [vmem:[#allocation8 + $0x3e0] sm:$0xff]
    %v1219 = vld [vmem:[#allocation8 + $0x3e8] sm:$0xff]
    %v1220 = vld [vmem:[#allocation8 + $0x3f0] sm:$0xff]
    %v1221 = vld [vmem:[#allocation8 + $0x3f8] sm:$0xff]
    %v1222 = vld [vmem:[#allocation8 + $0x400] sm:$0xff]
    %v1223 = vld [vmem:[#allocation8 + $0x408] sm:$0xff]
    %v1224 = vld [vmem:[#allocation8 + $0x410] sm:$0xff]
    %v1225 = vld [vmem:[#allocation8 + $0x418] sm:$0xff]
    %v1226 = vld [vmem:[#allocation8 + $0x420] sm:$0xff]
    %v1227 = vld [vmem:[#allocation8 + $0x428] sm:$0xff]
    %v1228 = vld [vmem:[#allocation8 + $0x430] sm:$0xff]
    %v1229 = vld [vmem:[#allocation8 + $0x438] sm:$0xff]
    %v1230 = vld [vmem:[#allocation8 + $0x440] sm:$0xff]
    %v1231 = vld [vmem:[#allocation8 + $0x448] sm:$0xff]
    %v1232 = vld [vmem:[#allocation8 + $0x450] sm:$0xff]
    %v1233 = vld [vmem:[#allocation8 + $0x458] sm:$0xff]
    %v1234 = vld [vmem:[#allocation8 + $0x460] sm:$0xff]
    %v1235 = vld [vmem:[#allocation8 + $0x468] sm:$0xff]
    %v1236 = vld [vmem:[#allocation8 + $0x470] sm:$0xff]
    %v1237 = vld [vmem:[#allocation8 + $0x478] sm:$0xff]
    %v1238 = vld [vmem:[#allocation8 + $0x480] sm:$0xff]
    %v1239 = vld [vmem:[#allocation8 + $0x488] sm:$0xff]
    %v1240 = vld [vmem:[#allocation8 + $0x490] sm:$0xff]
    %v1241 = vld [vmem:[#allocation8 + $0x498] sm:$0xff]
    %v1242 = vld [vmem:[#allocation8 + $0x4a0] sm:$0xff]
    %v1243 = vld [vmem:[#allocation8 + $0x4a8] sm:$0xff]
    %v1244 = vld [vmem:[#allocation8 + $0x4b0] sm:$0xff]
    %v1245 = vld [vmem:[#allocation8 + $0x4b8] sm:$0xff]
    %v1246 = vld [vmem:[#allocation8 + $0x4c0] sm:$0xff]
    %v1247 = vld [vmem:[#allocation8 + $0x4c8] sm:$0xff]
    %v1248 = vld [vmem:[#allocation8 + $0x4d0] sm:$0xff]
    %v1249 = vld [vmem:[#allocation8 + $0x4d8] sm:$0xff]
    %v1250 = vld [vmem:[#allocation8 + $0x4e0] sm:$0xff]
    %v1251 = vld [vmem:[#allocation8 + $0x4e8] sm:$0xff]
    %v1252 = vld [vmem:[#allocation8 + $0x4f0] sm:$0xff]
    %v1253 = vld [vmem:[#allocation8 + $0x4f8] sm:$0xff]
    %v1254 = vld [vmem:[#allocation8 + $0x500] sm:$0xff]
    %v1255 = vld [vmem:[#allocation8 + $0x508] sm:$0xff]
    %v1256 = vld [vmem:[#allocation8 + $0x510] sm:$0xff]
    %v1257 = vld [vmem:[#allocation8 + $0x518] sm:$0xff]
    %v1258 = vld [vmem:[#allocation8 + $0x520] sm:$0xff]
    %v1259 = vld [vmem:[#allocation8 + $0x528] sm:$0xff]
    %v1260 = vld [vmem:[#allocation8 + $0x530] sm:$0xff]
    %v1261 = vld [vmem:[#allocation8 + $0x538] sm:$0xff]
    %v1262 = vld [vmem:[#allocation8 + $0x540] sm:$0xff]
    %v1263 = vld [vmem:[#allocation8 + $0x548] sm:$0xff]
    %v1264 = vld [vmem:[#allocation8 + $0x550] sm:$0xff]
    %v1265 = vld [vmem:[#allocation8 + $0x558] sm:$0xff]
    %v1266 = vld [vmem:[#allocation8 + $0x560] sm:$0xff]
    %v1267 = vld [vmem:[#allocation8 + $0x568] sm:$0xff]
    %v1268 = vld [vmem:[#allocation8 + $0x570] sm:$0xff]
    %v1269 = vld [vmem:[#allocation8 + $0x578] sm:$0xff]
    %v1270 = vld [vmem:[#allocation8 + $0x580] sm:$0xff]
    %v1271 = vld [vmem:[#allocation8 + $0x588] sm:$0xff]
    %v1272 = vld [vmem:[#allocation8 + $0x590] sm:$0xff]
    %v1273 = vld [vmem:[#allocation8 + $0x598] sm:$0xff]
    %v1274 = vld [vmem:[#allocation8 + $0x5a0] sm:$0xff]
    %v1275 = vld [vmem:[#allocation8 + $0x5a8] sm:$0xff]
    %v1276 = vld [vmem:[#allocation8 + $0x5b0] sm:$0xff]
    %v1277 = vld [vmem:[#allocation8 + $0x5b8] sm:$0xff]
    %v1278 = vld [vmem:[#allocation8 + $0x5c0] sm:$0xff]
    %v1279 = vld [vmem:[#allocation8 + $0x5c8] sm:$0xff]
    %v1280 = vld [vmem:[#allocation8 + $0x5d0] sm:$0xff]
    %v1281 = vld [vmem:[#allocation8 + $0x5d8] sm:$0xff]
    %v1282 = vld [vmem:[#allocation8 + $0x5e0] sm:$0xff]
    %v1283 = vld [vmem:[#allocation8 + $0x5e8] sm:$0xff]
    %v1284 = vld [vmem:[#allocation8 + $0x5f0] sm:$0xff]
    %v1285 = vld [vmem:[#allocation8 + $0x5f8] sm:$0xff]
    %v1286 = vld [vmem:[#allocation8 + $0x600] sm:$0xff]
    %v1287 = vld [vmem:[#allocation8 + $0x608] sm:$0xff]
    %v1288 = vld [vmem:[#allocation8 + $0x610] sm:$0xff]
    %v1289 = vld [vmem:[#allocation8 + $0x618] sm:$0xff]
    %v1290 = vld [vmem:[#allocation8 + $0x620] sm:$0xff]
    %v1291 = vld [vmem:[#allocation8 + $0x628] sm:$0xff]
    %v1292 = vld [vmem:[#allocation8 + $0x630] sm:$0xff]
    %v1293 = vld [vmem:[#allocation8 + $0x638] sm:$0xff]
    %v1294 = vld [vmem:[#allocation8 + $0x640] sm:$0xff]
    %v1295 = vld [vmem:[#allocation8 + $0x648] sm:$0xff]
    %v1296 = vld [vmem:[#allocation8 + $0x650] sm:$0xff]
    %v1297 = vld [vmem:[#allocation8 + $0x658] sm:$0xff]
    %v1298 = vld [vmem:[#allocation8 + $0x660] sm:$0xff]
    %v1299 = vld [vmem:[#allocation8 + $0x668] sm:$0xff]
    %v1300 = vld [vmem:[#allocation8 + $0x670] sm:$0xff]
    %v1301 = vld [vmem:[#allocation8 + $0x678] sm:$0xff]
    %v1302 = vld [vmem:[#allocation8 + $0x680] sm:$0xff]
    %v1303 = vld [vmem:[#allocation8 + $0x688] sm:$0xff]
    %v1304 = vld [vmem:[#allocation8 + $0x690] sm:$0xff]
    %v1305 = vld [vmem:[#allocation8 + $0x698] sm:$0xff]
    %v1306 = vld [vmem:[#allocation8 + $0x6a0] sm:$0xff]
    %v1307 = vld [vmem:[#allocation8 + $0x6a8] sm:$0xff]
    %v1308 = vld [vmem:[#allocation8 + $0x6b0] sm:$0xff]
    %v1309 = vld [vmem:[#allocation8 + $0x6b8] sm:$0xff]
    %v1310 = vld [vmem:[#allocation8 + $0x6c0] sm:$0xff]
    %v1311 = vld [vmem:[#allocation8 + $0x6c8] sm:$0xff]
    %v1312 = vld [vmem:[#allocation8 + $0x6d0] sm:$0xff]
    %v1313 = vld [vmem:[#allocation8 + $0x6d8] sm:$0xff]
    %v1314 = vld [vmem:[#allocation8 + $0x6e0] sm:$0xff]
    %v1315 = vld [vmem:[#allocation8 + $0x6e8] sm:$0xff]
    %v1316 = vld [vmem:[#allocation8 + $0x6f0] sm:$0xff]
    %v1317 = vld [vmem:[#allocation8 + $0x6f8] sm:$0xff]
    %v1318 = vld [vmem:[#allocation8 + $0x700] sm:$0xff]
    %v1319 = vld [vmem:[#allocation8 + $0x708] sm:$0xff]
    %v1320 = vld [vmem:[#allocation8 + $0x710] sm:$0xff]
    %v1321 = vld [vmem:[#allocation8 + $0x718] sm:$0xff]
    %v1322 = vld [vmem:[#allocation8 + $0x720] sm:$0xff]
    %v1323 = vld [vmem:[#allocation8 + $0x728] sm:$0xff]
    %v1324 = vld [vmem:[#allocation8 + $0x730] sm:$0xff]
    %v1325 = vld [vmem:[#allocation8 + $0x738] sm:$0xff]
    %v1326 = vld [vmem:[#allocation8 + $0x740] sm:$0xff]
    %v1327 = vld [vmem:[#allocation8 + $0x748] sm:$0xff]
    %v1328 = vld [vmem:[#allocation8 + $0x750] sm:$0xff]
    %v1329 = vld [vmem:[#allocation8 + $0x758] sm:$0xff]
    %v1330 = vld [vmem:[#allocation8 + $0x760] sm:$0xff]
    %v1331 = vld [vmem:[#allocation8 + $0x768] sm:$0xff]
    %v1332 = vld [vmem:[#allocation8 + $0x770] sm:$0xff]
    %v1333 = vld [vmem:[#allocation8 + $0x778] sm:$0xff]
    %v1334 = vld [vmem:[#allocation8 + $0x780] sm:$0xff]
    %v1335 = vld [vmem:[#allocation8 + $0x788] sm:$0xff]
    %v1336 = vld [vmem:[#allocation8 + $0x790] sm:$0xff]
    %v1337 = vld [vmem:[#allocation8 + $0x798] sm:$0xff]
    %v1338 = vld [vmem:[#allocation8 + $0x7a0] sm:$0xff]
    %v1339 = vld [vmem:[#allocation8 + $0x7a8] sm:$0xff]
    %v1340 = vld [vmem:[#allocation8 + $0x7b0] sm:$0xff]
    %v1341 = vld [vmem:[#allocation8 + $0x7b8] sm:$0xff]
    %v1342 = vld [vmem:[#allocation8 + $0x7c0] sm:$0xff]
    %v1343 = vld [vmem:[#allocation8 + $0x7c8] sm:$0xff]
    %v1344 = vld [vmem:[#allocation8 + $0x7d0] sm:$0xff]
    %v1345 = vld [vmem:[#allocation8 + $0x7d8] sm:$0xff]
    %v1346 = vld [vmem:[#allocation8 + $0x7e0] sm:$0xff]
    %v1347 = vld [vmem:[#allocation8 + $0x7e8] sm:$0xff]
    %v1348 = vld [vmem:[#allocation8 + $0x7f0] sm:$0xff]
    %v1349 = vld [vmem:[#allocation8 + $0x7f8] sm:$0xff]
    %v1350 = vld [vmem:[#allocation8 + $0x800] sm:$0xff]
    %v1351 = vld [vmem:[#allocation8 + $0x808] sm:$0xff]
    %v1352 = vld [vmem:[#allocation8 + $0x810] sm:$0xff]
    %v1353 = vld [vmem:[#allocation8 + $0x818] sm:$0xff]
    %v1354 = vld [vmem:[#allocation8 + $0x820] sm:$0xff]
    %v1355 = vld [vmem:[#allocation8 + $0x828] sm:$0xff]
    %v1356 = vld [vmem:[#allocation8 + $0x830] sm:$0xff]
    %v1357 = vld [vmem:[#allocation8 + $0x838] sm:$0xff]
    %v1358 = vld [vmem:[#allocation8 + $0x840] sm:$0xff]
    %v1359 = vld [vmem:[#allocation8 + $0x848] sm:$0xff]
    %v1360 = vld [vmem:[#allocation8 + $0x850] sm:$0xff]
    %v1361 = vld [vmem:[#allocation8 + $0x858] sm:$0xff]
    %v1362 = vld [vmem:[#allocation8 + $0x860] sm:$0xff]
    %v1363 = vld [vmem:[#allocation8 + $0x868] sm:$0xff]
    %v1364 = vld [vmem:[#allocation8 + $0x870] sm:$0xff]
    %v1365 = vld [vmem:[#allocation8 + $0x878] sm:$0xff]
    %v1366 = vld [vmem:[#allocation8 + $0x880] sm:$0xff]
    %v1367 = vld [vmem:[#allocation8 + $0x888] sm:$0xff]
    %v1368 = vld [vmem:[#allocation8 + $0x890] sm:$0xff]
    %v1369 = vld [vmem:[#allocation8 + $0x898] sm:$0xff]
    %v1370 = vld [vmem:[#allocation8 + $0x8a0] sm:$0xff]
    %v1371 = vld [vmem:[#allocation8 + $0x8a8] sm:$0xff]
    %v1372 = vld [vmem:[#allocation8 + $0x8b0] sm:$0xff]
    %v1373 = vld [vmem:[#allocation8 + $0x8b8] sm:$0xff]
    %v1374 = vld [vmem:[#allocation8 + $0x8c0] sm:$0xff]
    %v1375 = vld [vmem:[#allocation8 + $0x8c8] sm:$0xff]
    %v1376 = vld [vmem:[#allocation8 + $0x8d0] sm:$0xff]
    %v1377 = vld [vmem:[#allocation8 + $0x8d8] sm:$0xff]
    %v1378 = vld [vmem:[#allocation8 + $0x8e0] sm:$0xff]
    %v1379 = vld [vmem:[#allocation8 + $0x8e8] sm:$0xff]
    %v1380 = vld [vmem:[#allocation8 + $0x8f0] sm:$0xff]
    %v1381 = vld [vmem:[#allocation8 + $0x8f8] sm:$0xff]
    %v1382 = vld [vmem:[#allocation8 + $0x900] sm:$0xff]
    %v1383 = vld [vmem:[#allocation8 + $0x908] sm:$0xff]
    %v1384 = vld [vmem:[#allocation8 + $0x910] sm:$0xff]
    %v1385 = vld [vmem:[#allocation8 + $0x918] sm:$0xff]
    %v1386 = vld [vmem:[#allocation8 + $0x920] sm:$0xff]
    %v1387 = vld [vmem:[#allocation8 + $0x928] sm:$0xff]
    %v1388 = vld [vmem:[#allocation8 + $0x930] sm:$0xff]
    %v1389 = vld [vmem:[#allocation8 + $0x938] sm:$0xff]
    %v1390 = vld [vmem:[#allocation8 + $0x940] sm:$0xff]
    %v1391 = vld [vmem:[#allocation8 + $0x948] sm:$0xff]
    %v1392 = vld [vmem:[#allocation8 + $0x950] sm:$0xff]
    %v1393 = vld [vmem:[#allocation8 + $0x958] sm:$0xff]
    %v1394 = vld [vmem:[#allocation8 + $0x960] sm:$0xff]
    %v1395 = vld [vmem:[#allocation8 + $0x968] sm:$0xff]
    %v1396 = vld [vmem:[#allocation8 + $0x970] sm:$0xff]
    %v1397 = vld [vmem:[#allocation8 + $0x978] sm:$0xff]
    %v1398 = vld [vmem:[#allocation8 + $0x980] sm:$0xff]
    %v1399 = vld [vmem:[#allocation8 + $0x988] sm:$0xff]
    %v1400 = vld [vmem:[#allocation8 + $0x990] sm:$0xff]
    %v1401 = vld [vmem:[#allocation8 + $0x998] sm:$0xff]
    %v1402 = vld [vmem:[#allocation8 + $0x9a0] sm:$0xff]
    %v1403 = vld [vmem:[#allocation8 + $0x9a8] sm:$0xff]
    %v1404 = vld [vmem:[#allocation8 + $0x9b0] sm:$0xff]
    %v1405 = vld [vmem:[#allocation8 + $0x9b8] sm:$0xff]
    %v1406 = vld [vmem:[#allocation8 + $0x9c0] sm:$0xff]
    %v1407 = vld [vmem:[#allocation8 + $0x9c8] sm:$0xff]
    %v1408 = vld [vmem:[#allocation8 + $0x9d0] sm:$0xff]
    %v1409 = vld [vmem:[#allocation8 + $0x9d8] sm:$0xff]
    %v1410 = vld [vmem:[#allocation8 + $0x9e0] sm:$0xff]
    %v1411 = vld [vmem:[#allocation8 + $0x9e8] sm:$0xff]
    %v1412 = vld [vmem:[#allocation8 + $0x9f0] sm:$0xff]
    %v1413 = vld [vmem:[#allocation8 + $0x9f8] sm:$0xff]
    %v1414 = vld [vmem:[#allocation8 + $0xa00] sm:$0xff]
    %v1415 = vld [vmem:[#allocation8 + $0xa08] sm:$0xff]
    %v1416 = vld [vmem:[#allocation8 + $0xa10] sm:$0xff]
    %v1417 = vld [vmem:[#allocation8 + $0xa18] sm:$0xff]
    %v1418 = vld [vmem:[#allocation8 + $0xa20] sm:$0xff]
    %v1419 = vld [vmem:[#allocation8 + $0xa28] sm:$0xff]
    %v1420 = vld [vmem:[#allocation8 + $0xa30] sm:$0xff]
    %v1421 = vld [vmem:[#allocation8 + $0xa38] sm:$0xff]
    %v1422 = vld [vmem:[#allocation8 + $0xa40] sm:$0xff]
    %v1423 = vld [vmem:[#allocation8 + $0xa48] sm:$0xff]
    %v1424 = vld [vmem:[#allocation8 + $0xa50] sm:$0xff]
    %v1425 = vld [vmem:[#allocation8 + $0xa58] sm:$0xff]
    %v1426 = vld [vmem:[#allocation8 + $0xa60] sm:$0xff]
    %v1427 = vld [vmem:[#allocation8 + $0xa68] sm:$0xff]
    %v1428 = vld [vmem:[#allocation8 + $0xa70] sm:$0xff]
    %v1429 = vld [vmem:[#allocation8 + $0xa78] sm:$0xff]
    %v1430 = vld [vmem:[#allocation8 + $0xa80] sm:$0xff]
    %v1431 = vld [vmem:[#allocation8 + $0xa88] sm:$0xff]
    %v1432 = vld [vmem:[#allocation8 + $0xa90] sm:$0xff]
    %v1433 = vld [vmem:[#allocation8 + $0xa98] sm:$0xff]
    %v1434 = vld [vmem:[#allocation8 + $0xaa0] sm:$0xff]
    %v1435 = vld [vmem:[#allocation8 + $0xaa8] sm:$0xff]
    %v1436 = vld [vmem:[#allocation8 + $0xab0] sm:$0xff]
    %v1437 = vld [vmem:[#allocation8 + $0xab8] sm:$0xff]
    %v1438 = vld [vmem:[#allocation8 + $0xac0] sm:$0xff]
    %v1439 = vld [vmem:[#allocation8 + $0xac8] sm:$0xff]
    %v1440 = vld [vmem:[#allocation8 + $0xad0] sm:$0xff]
    %v1441 = vld [vmem:[#allocation8 + $0xad8] sm:$0xff]
    %v1442 = vld [vmem:[#allocation8 + $0xae0] sm:$0xff]
    %v1443 = vld [vmem:[#allocation8 + $0xae8] sm:$0xff]
    %v1444 = vld [vmem:[#allocation8 + $0xaf0] sm:$0xff]
    %v1445 = vld [vmem:[#allocation8 + $0xaf8] sm:$0xff]
    %v1446 = vld [vmem:[#allocation8 + $0xb00] sm:$0xff]
    %v1447 = vld [vmem:[#allocation8 + $0xb08] sm:$0xff]
    %v1448 = vld [vmem:[#allocation8 + $0xb10] sm:$0xff]
    %v1449 = vld [vmem:[#allocation8 + $0xb18] sm:$0xff]
    %v1450 = vld [vmem:[#allocation8 + $0xb20] sm:$0xff]
    %v1451 = vld [vmem:[#allocation8 + $0xb28] sm:$0xff]
    %v1452 = vld [vmem:[#allocation8 + $0xb30] sm:$0xff]
    %v1453 = vld [vmem:[#allocation8 + $0xb38] sm:$0xff]
    %v1454 = vld [vmem:[#allocation8 + $0xb40] sm:$0xff]
    %v1455 = vld [vmem:[#allocation8 + $0xb48] sm:$0xff]
    %v1456 = vld [vmem:[#allocation8 + $0xb50] sm:$0xff]
    %v1457 = vld [vmem:[#allocation8 + $0xb58] sm:$0xff]
    %v1458 = vld [vmem:[#allocation8 + $0xb60] sm:$0xff]
    %v1459 = vld [vmem:[#allocation8 + $0xb68] sm:$0xff]
    %v1460 = vld [vmem:[#allocation8 + $0xb70] sm:$0xff]
    %v1461 = vld [vmem:[#allocation8 + $0xb78] sm:$0xff]
    %v1462 = vld [vmem:[#allocation8 + $0xb80] sm:$0xff]
    %v1463 = vld [vmem:[#allocation8 + $0xb88] sm:$0xff]
    %v1464 = vld [vmem:[#allocation8 + $0xb90] sm:$0xff]
    %v1465 = vld [vmem:[#allocation8 + $0xb98] sm:$0xff]
    %v1466 = vld [vmem:[#allocation8 + $0xba0] sm:$0xff]
    %v1467 = vld [vmem:[#allocation8 + $0xba8] sm:$0xff]
    %v1468 = vld [vmem:[#allocation8 + $0xbb0] sm:$0xff]
    %v1469 = vld [vmem:[#allocation8 + $0xbb8] sm:$0xff]
    %v1470 = vld [vmem:[#allocation8 + $0xbc0] sm:$0xff]
    %v1471 = vld [vmem:[#allocation8 + $0xbc8] sm:$0xff]
    %v1472 = vld [vmem:[#allocation8 + $0xbd0] sm:$0xff]
    %v1473 = vld [vmem:[#allocation8 + $0xbd8] sm:$0xff]
    %v1474 = vld [vmem:[#allocation8 + $0xbe0] sm:$0xff]
    %v1475 = vld [vmem:[#allocation8 + $0xbe8] sm:$0xff]
    %v1476 = vld [vmem:[#allocation8 + $0xbf0] sm:$0xff]
    %v1477 = vld [vmem:[#allocation8 + $0xbf8] sm:$0xff]
    %v1478 = vld [vmem:[#allocation8 + $0xc00] sm:$0xff]
    %v1479 = vld [vmem:[#allocation8 + $0xc08] sm:$0xff]
    %v1480 = vld [vmem:[#allocation8 + $0xc10] sm:$0xff]
    %v1481 = vld [vmem:[#allocation8 + $0xc18] sm:$0xff]
    %v1482 = vld [vmem:[#allocation8 + $0xc20] sm:$0xff]
    %v1483 = vld [vmem:[#allocation8 + $0xc28] sm:$0xff]
    %v1484 = vld [vmem:[#allocation8 + $0xc30] sm:$0xff]
    %v1485 = vld [vmem:[#allocation8 + $0xc38] sm:$0xff]
    %v1486 = vld [vmem:[#allocation8 + $0xc40] sm:$0xff]
    %v1487 = vld [vmem:[#allocation8 + $0xc48] sm:$0xff]
    %v1488 = vld [vmem:[#allocation8 + $0xc50] sm:$0xff]
    %v1489 = vld [vmem:[#allocation8 + $0xc58] sm:$0xff]
    %v1490 = vld [vmem:[#allocation8 + $0xc60] sm:$0xff]
    %v1491 = vld [vmem:[#allocation8 + $0xc68] sm:$0xff]
    %v1492 = vld [vmem:[#allocation8 + $0xc70] sm:$0xff]
    %v1493 = vld [vmem:[#allocation8 + $0xc78] sm:$0xff]
    %v1494 = vld [vmem:[#allocation8 + $0xc80] sm:$0xff]
    %v1495 = vld [vmem:[#allocation8 + $0xc88] sm:$0xff]
    %v1496 = vld [vmem:[#allocation8 + $0xc90] sm:$0xff]
    %v1497 = vld [vmem:[#allocation8 + $0xc98] sm:$0xff]
    %v1498 = vld [vmem:[#allocation8 + $0xca0] sm:$0xff]
    %v1499 = vld [vmem:[#allocation8 + $0xca8] sm:$0xff]
    %v1500 = vld [vmem:[#allocation8 + $0xcb0] sm:$0xff]
    %v1501 = vld [vmem:[#allocation8 + $0xcb8] sm:$0xff]
    %v1502 = vld [vmem:[#allocation8 + $0xcc0] sm:$0xff]
    %v1503 = vld [vmem:[#allocation8 + $0xcc8] sm:$0xff]
    %v1504 = vld [vmem:[#allocation8 + $0xcd0] sm:$0xff]
    %v1505 = vld [vmem:[#allocation8 + $0xcd8] sm:$0xff]
    %v1506 = vld [vmem:[#allocation8 + $0xce0] sm:$0xff]
    %v1507 = vld [vmem:[#allocation8 + $0xce8] sm:$0xff]
    %v1508 = vld [vmem:[#allocation8 + $0xcf0] sm:$0xff]
    %v1509 = vld [vmem:[#allocation8 + $0xcf8] sm:$0xff]
    %v1510 = vld [vmem:[#allocation8 + $0xd00] sm:$0xff]
    %v1511 = vld [vmem:[#allocation8 + $0xd08] sm:$0xff]
    %v1512 = vld [vmem:[#allocation8 + $0xd10] sm:$0xff]
    %v1513 = vld [vmem:[#allocation8 + $0xd18] sm:$0xff]
    %v1514 = vld [vmem:[#allocation8 + $0xd20] sm:$0xff]
    %v1515 = vld [vmem:[#allocation8 + $0xd28] sm:$0xff]
    %v1516 = vld [vmem:[#allocation8 + $0xd30] sm:$0xff]
    %v1517 = vld [vmem:[#allocation8 + $0xd38] sm:$0xff]
    %v1518 = vld [vmem:[#allocation8 + $0xd40] sm:$0xff]
    %v1519 = vld [vmem:[#allocation8 + $0xd48] sm:$0xff]
    %v1520 = vld [vmem:[#allocation8 + $0xd50] sm:$0xff]
    %v1521 = vld [vmem:[#allocation8 + $0xd58] sm:$0xff]
    %v1522 = vld [vmem:[#allocation8 + $0xd60] sm:$0xff]
    %v1523 = vld [vmem:[#allocation8 + $0xd68] sm:$0xff]
    %v1524 = vld [vmem:[#allocation8 + $0xd70] sm:$0xff]
    %v1525 = vld [vmem:[#allocation8 + $0xd78] sm:$0xff]
    %v1526 = vld [vmem:[#allocation8 + $0xd80] sm:$0xff]
    %v1527 = vld [vmem:[#allocation8 + $0xd88] sm:$0xff]
    %v1528 = vld [vmem:[#allocation8 + $0xd90] sm:$0xff]
    %v1529 = vld [vmem:[#allocation8 + $0xd98] sm:$0xff]
    %v1530 = vld [vmem:[#allocation8 + $0xda0] sm:$0xff]
    %v1531 = vld [vmem:[#allocation8 + $0xda8] sm:$0xff]
    %v1532 = vld [vmem:[#allocation8 + $0xdb0] sm:$0xff]
    %v1533 = vld [vmem:[#allocation8 + $0xdb8] sm:$0xff]
    %v1534 = vld [vmem:[#allocation8 + $0xdc0] sm:$0xff]
    %v1535 = vld [vmem:[#allocation8 + $0xdc8] sm:$0xff]
    %v1536 = vld [vmem:[#allocation8 + $0xdd0] sm:$0xff]
    %v1537 = vld [vmem:[#allocation8 + $0xdd8] sm:$0xff]
    %v1538 = vld [vmem:[#allocation8 + $0xde0] sm:$0xff]
    %v1539 = vld [vmem:[#allocation8 + $0xde8] sm:$0xff]
    %v1540 = vld [vmem:[#allocation8 + $0xdf0] sm:$0xff]
    %v1541 = vld [vmem:[#allocation8 + $0xdf8] sm:$0xff]
    %v1542 = vld [vmem:[#allocation8 + $0xe00] sm:$0xff]
    %v1543 = vld [vmem:[#allocation8 + $0xe08] sm:$0xff]
    %v1544 = vld [vmem:[#allocation8 + $0xe10] sm:$0xff]
    %v1545 = vld [vmem:[#allocation8 + $0xe18] sm:$0xff]
    %v1546 = vld [vmem:[#allocation8 + $0xe20] sm:$0xff]
    %v1547 = vld [vmem:[#allocation8 + $0xe28] sm:$0xff]
    %v1548 = vld [vmem:[#allocation8 + $0xe30] sm:$0xff]
    %v1549 = vld [vmem:[#allocation8 + $0xe38] sm:$0xff]
    %v1550 = vld [vmem:[#allocation8 + $0xe40] sm:$0xff]
    %v1551 = vld [vmem:[#allocation8 + $0xe48] sm:$0xff]
    %v1552 = vld [vmem:[#allocation8 + $0xe50] sm:$0xff]
    %v1553 = vld [vmem:[#allocation8 + $0xe58] sm:$0xff]
    %v1554 = vld [vmem:[#allocation8 + $0xe60] sm:$0xff]
    %v1555 = vld [vmem:[#allocation8 + $0xe68] sm:$0xff]
    %v1556 = vld [vmem:[#allocation8 + $0xe70] sm:$0xff]
    %v1557 = vld [vmem:[#allocation8 + $0xe78] sm:$0xff]
    %v1558 = vld [vmem:[#allocation8 + $0xe80] sm:$0xff]
    %v1559 = vld [vmem:[#allocation8 + $0xe88] sm:$0xff]
    %v1560 = vld [vmem:[#allocation8 + $0xe90] sm:$0xff]
    %v1561 = vld [vmem:[#allocation8 + $0xe98] sm:$0xff]
    %v1562 = vld [vmem:[#allocation8 + $0xea0] sm:$0xff]
    %v1563 = vld [vmem:[#allocation8 + $0xea8] sm:$0xff]
    %v1564 = vld [vmem:[#allocation8 + $0xeb0] sm:$0xff]
    %v1565 = vld [vmem:[#allocation8 + $0xeb8] sm:$0xff]
    %v1566 = vld [vmem:[#allocation8 + $0xec0] sm:$0xff]
    %v1567 = vld [vmem:[#allocation8 + $0xec8] sm:$0xff]
    %v1568 = vld [vmem:[#allocation8 + $0xed0] sm:$0xff]
    %v1569 = vld [vmem:[#allocation8 + $0xed8] sm:$0xff]
    %v1570 = vld [vmem:[#allocation8 + $0xee0] sm:$0xff]
    %v1571 = vld [vmem:[#allocation8 + $0xee8] sm:$0xff]
    %v1572 = vld [vmem:[#allocation8 + $0xef0] sm:$0xff]
    %v1573 = vld [vmem:[#allocation8 + $0xef8] sm:$0xff]
    %v1574 = vld [vmem:[#allocation8 + $0xf00] sm:$0xff]
    %v1575 = vld [vmem:[#allocation8 + $0xf08] sm:$0xff]
    %v1576 = vld [vmem:[#allocation8 + $0xf10] sm:$0xff]
    %v1577 = vld [vmem:[#allocation8 + $0xf18] sm:$0xff]
    %v1578 = vld [vmem:[#allocation8 + $0xf20] sm:$0xff]
    %v1579 = vld [vmem:[#allocation8 + $0xf28] sm:$0xff]
    %v1580 = vld [vmem:[#allocation8 + $0xf30] sm:$0xff]
    %v1581 = vld [vmem:[#allocation8 + $0xf38] sm:$0xff]
    %v1582 = vld [vmem:[#allocation8 + $0xf40] sm:$0xff]
    %v1583 = vld [vmem:[#allocation8 + $0xf48] sm:$0xff]
    %v1584 = vld [vmem:[#allocation8 + $0xf50] sm:$0xff]
    %v1585 = vld [vmem:[#allocation8 + $0xf58] sm:$0xff]
    %v1586 = vld [vmem:[#allocation8 + $0xf60] sm:$0xff]
    %v1587 = vld [vmem:[#allocation8 + $0xf68] sm:$0xff]
    %v1588 = vld [vmem:[#allocation8 + $0xf70] sm:$0xff]
    %v1589 = vld [vmem:[#allocation8 + $0xf78] sm:$0xff]
    %v1590 = vld [vmem:[#allocation8 + $0xf80] sm:$0xff]
    %v1591 = vld [vmem:[#allocation8 + $0xf88] sm:$0xff]
    %v1592 = vld [vmem:[#allocation8 + $0xf90] sm:$0xff]
    %v1593 = vld [vmem:[#allocation8 + $0xf98] sm:$0xff]
    %v1594 = vld [vmem:[#allocation8 + $0xfa0] sm:$0xff]
    %v1595 = vld [vmem:[#allocation8 + $0xfa8] sm:$0xff]
    %v1596 = vld [vmem:[#allocation8 + $0xfb0] sm:$0xff]
    %v1597 = vld [vmem:[#allocation8 + $0xfb8] sm:$0xff]
    %v1598 = vld [vmem:[#allocation8 + $0xfc0] sm:$0xff]
    %v1599 = vld [vmem:[#allocation8 + $0xfc8] sm:$0xff]
    %v1600 = vld [vmem:[#allocation8 + $0xfd0] sm:$0xff]
    %v1601 = vld [vmem:[#allocation8 + $0xfd8] sm:$0xff]
    %v1602 = vld [vmem:[#allocation8 + $0xfe0] sm:$0xff]
    %v1603 = vld [vmem:[#allocation8 + $0xfe8] sm:$0xff]
    %v1604 = vld [vmem:[#allocation8 + $0xff0] sm:$0xff]
    %v1605 = vld [vmem:[#allocation8 + $0xff8] sm:$0xff]
    %v2118 = vunpack.c.l.b16 %v1094
    %v2119 = vunpack.c.h.b16 %v1094
    %v2120 = vunpack.c.l.b16 %v1095
    %v2121 = vunpack.c.h.b16 %v1095
    %v2122 = vunpack.c.l.b16 %v1096
    %v2123 = vunpack.c.h.b16 %v1096
    %v2124 = vunpack.c.l.b16 %v1097
    %v2125 = vunpack.c.h.b16 %v1097
    %v2126 = vunpack.c.l.b16 %v1098
    %v2127 = vunpack.c.h.b16 %v1098
    %v2128 = vunpack.c.l.b16 %v1099
    %v2129 = vunpack.c.h.b16 %v1099
    %v2130 = vunpack.c.l.b16 %v1100
    %v2131 = vunpack.c.h.b16 %v1100
    %v2132 = vunpack.c.l.b16 %v1101
    %v2133 = vunpack.c.h.b16 %v1101
    %v2134 = vunpack.c.l.b16 %v1102
    %v2135 = vunpack.c.h.b16 %v1102
    %v2136 = vunpack.c.l.b16 %v1103
    %v2137 = vunpack.c.h.b16 %v1103
    %v2138 = vunpack.c.l.b16 %v1104
    %v2139 = vunpack.c.h.b16 %v1104
    %v2140 = vunpack.c.l.b16 %v1105
    %v2141 = vunpack.c.h.b16 %v1105
    %v2142 = vunpack.c.l.b16 %v1106
    %v2143 = vunpack.c.h.b16 %v1106
    %v2144 = vunpack.c.l.b16 %v1107
    %v2145 = vunpack.c.h.b16 %v1107
    %v2146 = vunpack.c.l.b16 %v1108
    %v2147 = vunpack.c.h.b16 %v1108
    %v2148 = vunpack.c.l.b16 %v1109
    %v2149 = vunpack.c.h.b16 %v1109
    %v2150 = vunpack.c.l.b16 %v1110
    %v2151 = vunpack.c.h.b16 %v1110
    %v2152 = vunpack.c.l.b16 %v1111
    %v2153 = vunpack.c.h.b16 %v1111
    %v2154 = vunpack.c.l.b16 %v1112
    %v2155 = vunpack.c.h.b16 %v1112
    %v2156 = vunpack.c.l.b16 %v1113
    %v2157 = vunpack.c.h.b16 %v1113
    %v2158 = vunpack.c.l.b16 %v1114
    %v2159 = vunpack.c.h.b16 %v1114
    %v2160 = vunpack.c.l.b16 %v1115
    %v2161 = vunpack.c.h.b16 %v1115
    %v2162 = vunpack.c.l.b16 %v1116
    %v2163 = vunpack.c.h.b16 %v1116
    %v2164 = vunpack.c.l.b16 %v1117
    %v2165 = vunpack.c.h.b16 %v1117
    %v2166 = vunpack.c.l.b16 %v1118
    %v2167 = vunpack.c.h.b16 %v1118
    %v2168 = vunpack.c.l.b16 %v1119
    %v2169 = vunpack.c.h.b16 %v1119
    %v2170 = vunpack.c.l.b16 %v1120
    %v2171 = vunpack.c.h.b16 %v1120
    %v2172 = vunpack.c.l.b16 %v1121
    %v2173 = vunpack.c.h.b16 %v1121
    %v2174 = vunpack.c.l.b16 %v1122
    %v2175 = vunpack.c.h.b16 %v1122
    %v2176 = vunpack.c.l.b16 %v1123
    %v2177 = vunpack.c.h.b16 %v1123
    %v2178 = vunpack.c.l.b16 %v1124
    %v2179 = vunpack.c.h.b16 %v1124
    %v2180 = vunpack.c.l.b16 %v1125
    %v2181 = vunpack.c.h.b16 %v1125
    %v2182 = vunpack.c.l.b16 %v1126
    %v2183 = vunpack.c.h.b16 %v1126
    %v2184 = vunpack.c.l.b16 %v1127
    %v2185 = vunpack.c.h.b16 %v1127
    %v2186 = vunpack.c.l.b16 %v1128
    %v2187 = vunpack.c.h.b16 %v1128
    %v2188 = vunpack.c.l.b16 %v1129
    %v2189 = vunpack.c.h.b16 %v1129
    %v2190 = vunpack.c.l.b16 %v1130
    %v2191 = vunpack.c.h.b16 %v1130
    %v2192 = vunpack.c.l.b16 %v1131
    %v2193 = vunpack.c.h.b16 %v1131
    %v2194 = vunpack.c.l.b16 %v1132
    %v2195 = vunpack.c.h.b16 %v1132
    %v2196 = vunpack.c.l.b16 %v1133
    %v2197 = vunpack.c.h.b16 %v1133
    %v2198 = vunpack.c.l.b16 %v1134
    %v2199 = vunpack.c.h.b16 %v1134
    %v2200 = vunpack.c.l.b16 %v1135
    %v2201 = vunpack.c.h.b16 %v1135
    %v2202 = vunpack.c.l.b16 %v1136
    %v2203 = vunpack.c.h.b16 %v1136
    %v2204 = vunpack.c.l.b16 %v1137
    %v2205 = vunpack.c.h.b16 %v1137
    %v2206 = vunpack.c.l.b16 %v1138
    %v2207 = vunpack.c.h.b16 %v1138
    %v2208 = vunpack.c.l.b16 %v1139
    %v2209 = vunpack.c.h.b16 %v1139
    %v2210 = vunpack.c.l.b16 %v1140
    %v2211 = vunpack.c.h.b16 %v1140
    %v2212 = vunpack.c.l.b16 %v1141
    %v2213 = vunpack.c.h.b16 %v1141
    %v2214 = vunpack.c.l.b16 %v1142
    %v2215 = vunpack.c.h.b16 %v1142
    %v2216 = vunpack.c.l.b16 %v1143
    %v2217 = vunpack.c.h.b16 %v1143
    %v2218 = vunpack.c.l.b16 %v1144
    %v2219 = vunpack.c.h.b16 %v1144
    %v2220 = vunpack.c.l.b16 %v1145
    %v2221 = vunpack.c.h.b16 %v1145
    %v2222 = vunpack.c.l.b16 %v1146
    %v2223 = vunpack.c.h.b16 %v1146
    %v2224 = vunpack.c.l.b16 %v1147
    %v2225 = vunpack.c.h.b16 %v1147
    %v2226 = vunpack.c.l.b16 %v1148
    %v2227 = vunpack.c.h.b16 %v1148
    %v2228 = vunpack.c.l.b16 %v1149
    %v2229 = vunpack.c.h.b16 %v1149
    %v2230 = vunpack.c.l.b16 %v1150
    %v2231 = vunpack.c.h.b16 %v1150
    %v2232 = vunpack.c.l.b16 %v1151
    %v2233 = vunpack.c.h.b16 %v1151
    %v2234 = vunpack.c.l.b16 %v1152
    %v2235 = vunpack.c.h.b16 %v1152
    %v2236 = vunpack.c.l.b16 %v1153
    %v2237 = vunpack.c.h.b16 %v1153
    %v2238 = vunpack.c.l.b16 %v1154
    %v2239 = vunpack.c.h.b16 %v1154
    %v2240 = vunpack.c.l.b16 %v1155
    %v2241 = vunpack.c.h.b16 %v1155
    %v2242 = vunpack.c.l.b16 %v1156
    %v2243 = vunpack.c.h.b16 %v1156
    %v2244 = vunpack.c.l.b16 %v1157
    %v2245 = vunpack.c.h.b16 %v1157
    %v2246 = vunpack.c.l.b16 %v1158
    %v2247 = vunpack.c.h.b16 %v1158
    %v2248 = vunpack.c.l.b16 %v1159
    %v2249 = vunpack.c.h.b16 %v1159
    %v2250 = vunpack.c.l.b16 %v1160
    %v2251 = vunpack.c.h.b16 %v1160
    %v2252 = vunpack.c.l.b16 %v1161
    %v2253 = vunpack.c.h.b16 %v1161
    %v2254 = vunpack.c.l.b16 %v1162
    %v2255 = vunpack.c.h.b16 %v1162
    %v2256 = vunpack.c.l.b16 %v1163
    %v2257 = vunpack.c.h.b16 %v1163
    %v2258 = vunpack.c.l.b16 %v1164
    %v2259 = vunpack.c.h.b16 %v1164
    %v2260 = vunpack.c.l.b16 %v1165
    %v2261 = vunpack.c.h.b16 %v1165
    %v2262 = vunpack.c.l.b16 %v1166
    %v2263 = vunpack.c.h.b16 %v1166
    %v2264 = vunpack.c.l.b16 %v1167
    %v2265 = vunpack.c.h.b16 %v1167
    %v2266 = vunpack.c.l.b16 %v1168
    %v2267 = vunpack.c.h.b16 %v1168
    %v2268 = vunpack.c.l.b16 %v1169
    %v2269 = vunpack.c.h.b16 %v1169
    %v2270 = vunpack.c.l.b16 %v1170
    %v2271 = vunpack.c.h.b16 %v1170
    %v2272 = vunpack.c.l.b16 %v1171
    %v2273 = vunpack.c.h.b16 %v1171
    %v2274 = vunpack.c.l.b16 %v1172
    %v2275 = vunpack.c.h.b16 %v1172
    %v2276 = vunpack.c.l.b16 %v1173
    %v2277 = vunpack.c.h.b16 %v1173
    %v2278 = vunpack.c.l.b16 %v1174
    %v2279 = vunpack.c.h.b16 %v1174
    %v2280 = vunpack.c.l.b16 %v1175
    %v2281 = vunpack.c.h.b16 %v1175
    %v2282 = vunpack.c.l.b16 %v1176
    %v2283 = vunpack.c.h.b16 %v1176
    %v2284 = vunpack.c.l.b16 %v1177
    %v2285 = vunpack.c.h.b16 %v1177
    %v2286 = vunpack.c.l.b16 %v1178
    %v2287 = vunpack.c.h.b16 %v1178
    %v2288 = vunpack.c.l.b16 %v1179
    %v2289 = vunpack.c.h.b16 %v1179
    %v2290 = vunpack.c.l.b16 %v1180
    %v2291 = vunpack.c.h.b16 %v1180
    %v2292 = vunpack.c.l.b16 %v1181
    %v2293 = vunpack.c.h.b16 %v1181
    %v2294 = vunpack.c.l.b16 %v1182
    %v2295 = vunpack.c.h.b16 %v1182
    %v2296 = vunpack.c.l.b16 %v1183
    %v2297 = vunpack.c.h.b16 %v1183
    %v2298 = vunpack.c.l.b16 %v1184
    %v2299 = vunpack.c.h.b16 %v1184
    %v2300 = vunpack.c.l.b16 %v1185
    %v2301 = vunpack.c.h.b16 %v1185
    %v2302 = vunpack.c.l.b16 %v1186
    %v2303 = vunpack.c.h.b16 %v1186
    %v2304 = vunpack.c.l.b16 %v1187
    %v2305 = vunpack.c.h.b16 %v1187
    %v2306 = vunpack.c.l.b16 %v1188
    %v2307 = vunpack.c.h.b16 %v1188
    %v2308 = vunpack.c.l.b16 %v1189
    %v2309 = vunpack.c.h.b16 %v1189
    %v2310 = vunpack.c.l.b16 %v1190
    %v2311 = vunpack.c.h.b16 %v1190
    %v2312 = vunpack.c.l.b16 %v1191
    %v2313 = vunpack.c.h.b16 %v1191
    %v2314 = vunpack.c.l.b16 %v1192
    %v2315 = vunpack.c.h.b16 %v1192
    %v2316 = vunpack.c.l.b16 %v1193
    %v2317 = vunpack.c.h.b16 %v1193
    %v2318 = vunpack.c.l.b16 %v1194
    %v2319 = vunpack.c.h.b16 %v1194
    %v2320 = vunpack.c.l.b16 %v1195
    %v2321 = vunpack.c.h.b16 %v1195
    %v2322 = vunpack.c.l.b16 %v1196
    %v2323 = vunpack.c.h.b16 %v1196
    %v2324 = vunpack.c.l.b16 %v1197
    %v2325 = vunpack.c.h.b16 %v1197
    %v2326 = vunpack.c.l.b16 %v1198
    %v2327 = vunpack.c.h.b16 %v1198
    %v2328 = vunpack.c.l.b16 %v1199
    %v2329 = vunpack.c.h.b16 %v1199
    %v2330 = vunpack.c.l.b16 %v1200
    %v2331 = vunpack.c.h.b16 %v1200
    %v2332 = vunpack.c.l.b16 %v1201
    %v2333 = vunpack.c.h.b16 %v1201
    %v2334 = vunpack.c.l.b16 %v1202
    %v2335 = vunpack.c.h.b16 %v1202
    %v2336 = vunpack.c.l.b16 %v1203
    %v2337 = vunpack.c.h.b16 %v1203
    %v2338 = vunpack.c.l.b16 %v1204
    %v2339 = vunpack.c.h.b16 %v1204
    %v2340 = vunpack.c.l.b16 %v1205
    %v2341 = vunpack.c.h.b16 %v1205
    %v2342 = vunpack.c.l.b16 %v1206
    %v2343 = vunpack.c.h.b16 %v1206
    %v2344 = vunpack.c.l.b16 %v1207
    %v2345 = vunpack.c.h.b16 %v1207
    %v2346 = vunpack.c.l.b16 %v1208
    %v2347 = vunpack.c.h.b16 %v1208
    %v2348 = vunpack.c.l.b16 %v1209
    %v2349 = vunpack.c.h.b16 %v1209
    %v2350 = vunpack.c.l.b16 %v1210
    %v2351 = vunpack.c.h.b16 %v1210
    %v2352 = vunpack.c.l.b16 %v1211
    %v2353 = vunpack.c.h.b16 %v1211
    %v2354 = vunpack.c.l.b16 %v1212
    %v2355 = vunpack.c.h.b16 %v1212
    %v2356 = vunpack.c.l.b16 %v1213
    %v2357 = vunpack.c.h.b16 %v1213
    %v2358 = vunpack.c.l.b16 %v1214
    %v2359 = vunpack.c.h.b16 %v1214
    %v2360 = vunpack.c.l.b16 %v1215
    %v2361 = vunpack.c.h.b16 %v1215
    %v2362 = vunpack.c.l.b16 %v1216
    %v2363 = vunpack.c.h.b16 %v1216
    %v2364 = vunpack.c.l.b16 %v1217
    %v2365 = vunpack.c.h.b16 %v1217
    %v2366 = vunpack.c.l.b16 %v1218
    %v2367 = vunpack.c.h.b16 %v1218
    %v2368 = vunpack.c.l.b16 %v1219
    %v2369 = vunpack.c.h.b16 %v1219
    %v2370 = vunpack.c.l.b16 %v1220
    %v2371 = vunpack.c.h.b16 %v1220
    %v2372 = vunpack.c.l.b16 %v1221
    %v2373 = vunpack.c.h.b16 %v1221
    %v2374 = vunpack.c.l.b16 %v1222
    %v2375 = vunpack.c.h.b16 %v1222
    %v2376 = vunpack.c.l.b16 %v1223
    %v2377 = vunpack.c.h.b16 %v1223
    %v2378 = vunpack.c.l.b16 %v1224
    %v2379 = vunpack.c.h.b16 %v1224
    %v2380 = vunpack.c.l.b16 %v1225
    %v2381 = vunpack.c.h.b16 %v1225
    %v2382 = vunpack.c.l.b16 %v1226
    %v2383 = vunpack.c.h.b16 %v1226
    %v2384 = vunpack.c.l.b16 %v1227
    %v2385 = vunpack.c.h.b16 %v1227
    %v2386 = vunpack.c.l.b16 %v1228
    %v2387 = vunpack.c.h.b16 %v1228
    %v2388 = vunpack.c.l.b16 %v1229
    %v2389 = vunpack.c.h.b16 %v1229
    %v2390 = vunpack.c.l.b16 %v1230
    %v2391 = vunpack.c.h.b16 %v1230
    %v2392 = vunpack.c.l.b16 %v1231
    %v2393 = vunpack.c.h.b16 %v1231
    %v2394 = vunpack.c.l.b16 %v1232
    %v2395 = vunpack.c.h.b16 %v1232
    %v2396 = vunpack.c.l.b16 %v1233
    %v2397 = vunpack.c.h.b16 %v1233
    %v2398 = vunpack.c.l.b16 %v1234
    %v2399 = vunpack.c.h.b16 %v1234
    %v2400 = vunpack.c.l.b16 %v1235
    %v2401 = vunpack.c.h.b16 %v1235
    %v2402 = vunpack.c.l.b16 %v1236
    %v2403 = vunpack.c.h.b16 %v1236
    %v2404 = vunpack.c.l.b16 %v1237
    %v2405 = vunpack.c.h.b16 %v1237
    %v2406 = vunpack.c.l.b16 %v1238
    %v2407 = vunpack.c.h.b16 %v1238
    %v2408 = vunpack.c.l.b16 %v1239
    %v2409 = vunpack.c.h.b16 %v1239
    %v2410 = vunpack.c.l.b16 %v1240
    %v2411 = vunpack.c.h.b16 %v1240
    %v2412 = vunpack.c.l.b16 %v1241
    %v2413 = vunpack.c.h.b16 %v1241
    %v2414 = vunpack.c.l.b16 %v1242
    %v2415 = vunpack.c.h.b16 %v1242
    %v2416 = vunpack.c.l.b16 %v1243
    %v2417 = vunpack.c.h.b16 %v1243
    %v2418 = vunpack.c.l.b16 %v1244
    %v2419 = vunpack.c.h.b16 %v1244
    %v2420 = vunpack.c.l.b16 %v1245
    %v2421 = vunpack.c.h.b16 %v1245
    %v2422 = vunpack.c.l.b16 %v1246
    %v2423 = vunpack.c.h.b16 %v1246
    %v2424 = vunpack.c.l.b16 %v1247
    %v2425 = vunpack.c.h.b16 %v1247
    %v2426 = vunpack.c.l.b16 %v1248
    %v2427 = vunpack.c.h.b16 %v1248
    %v2428 = vunpack.c.l.b16 %v1249
    %v2429 = vunpack.c.h.b16 %v1249
    %v2430 = vunpack.c.l.b16 %v1250
    %v2431 = vunpack.c.h.b16 %v1250
    %v2432 = vunpack.c.l.b16 %v1251
    %v2433 = vunpack.c.h.b16 %v1251
    %v2434 = vunpack.c.l.b16 %v1252
    %v2435 = vunpack.c.h.b16 %v1252
    %v2436 = vunpack.c.l.b16 %v1253
    %v2437 = vunpack.c.h.b16 %v1253
    %v2438 = vunpack.c.l.b16 %v1254
    %v2439 = vunpack.c.h.b16 %v1254
    %v2440 = vunpack.c.l.b16 %v1255
    %v2441 = vunpack.c.h.b16 %v1255
    %v2442 = vunpack.c.l.b16 %v1256
    %v2443 = vunpack.c.h.b16 %v1256
    %v2444 = vunpack.c.l.b16 %v1257
    %v2445 = vunpack.c.h.b16 %v1257
    %v2446 = vunpack.c.l.b16 %v1258
    %v2447 = vunpack.c.h.b16 %v1258
    %v2448 = vunpack.c.l.b16 %v1259
    %v2449 = vunpack.c.h.b16 %v1259
    %v2450 = vunpack.c.l.b16 %v1260
    %v2451 = vunpack.c.h.b16 %v1260
    %v2452 = vunpack.c.l.b16 %v1261
    %v2453 = vunpack.c.h.b16 %v1261
    %v2454 = vunpack.c.l.b16 %v1262
    %v2455 = vunpack.c.h.b16 %v1262
    %v2456 = vunpack.c.l.b16 %v1263
    %v2457 = vunpack.c.h.b16 %v1263
    %v2458 = vunpack.c.l.b16 %v1264
    %v2459 = vunpack.c.h.b16 %v1264
    %v2460 = vunpack.c.l.b16 %v1265
    %v2461 = vunpack.c.h.b16 %v1265
    %v2462 = vunpack.c.l.b16 %v1266
    %v2463 = vunpack.c.h.b16 %v1266
    %v2464 = vunpack.c.l.b16 %v1267
    %v2465 = vunpack.c.h.b16 %v1267
    %v2466 = vunpack.c.l.b16 %v1268
    %v2467 = vunpack.c.h.b16 %v1268
    %v2468 = vunpack.c.l.b16 %v1269
    %v2469 = vunpack.c.h.b16 %v1269
    %v2470 = vunpack.c.l.b16 %v1270
    %v2471 = vunpack.c.h.b16 %v1270
    %v2472 = vunpack.c.l.b16 %v1271
    %v2473 = vunpack.c.h.b16 %v1271
    %v2474 = vunpack.c.l.b16 %v1272
    %v2475 = vunpack.c.h.b16 %v1272
    %v2476 = vunpack.c.l.b16 %v1273
    %v2477 = vunpack.c.h.b16 %v1273
    %v2478 = vunpack.c.l.b16 %v1274
    %v2479 = vunpack.c.h.b16 %v1274
    %v2480 = vunpack.c.l.b16 %v1275
    %v2481 = vunpack.c.h.b16 %v1275
    %v2482 = vunpack.c.l.b16 %v1276
    %v2483 = vunpack.c.h.b16 %v1276
    %v2484 = vunpack.c.l.b16 %v1277
    %v2485 = vunpack.c.h.b16 %v1277
    %v2486 = vunpack.c.l.b16 %v1278
    %v2487 = vunpack.c.h.b16 %v1278
    %v2488 = vunpack.c.l.b16 %v1279
    %v2489 = vunpack.c.h.b16 %v1279
    %v2490 = vunpack.c.l.b16 %v1280
    %v2491 = vunpack.c.h.b16 %v1280
    %v2492 = vunpack.c.l.b16 %v1281
    %v2493 = vunpack.c.h.b16 %v1281
    %v2494 = vunpack.c.l.b16 %v1282
    %v2495 = vunpack.c.h.b16 %v1282
    %v2496 = vunpack.c.l.b16 %v1283
    %v2497 = vunpack.c.h.b16 %v1283
    %v2498 = vunpack.c.l.b16 %v1284
    %v2499 = vunpack.c.h.b16 %v1284
    %v2500 = vunpack.c.l.b16 %v1285
    %v2501 = vunpack.c.h.b16 %v1285
    %v2502 = vunpack.c.l.b16 %v1286
    %v2503 = vunpack.c.h.b16 %v1286
    %v2504 = vunpack.c.l.b16 %v1287
    %v2505 = vunpack.c.h.b16 %v1287
    %v2506 = vunpack.c.l.b16 %v1288
    %v2507 = vunpack.c.h.b16 %v1288
    %v2508 = vunpack.c.l.b16 %v1289
    %v2509 = vunpack.c.h.b16 %v1289
    %v2510 = vunpack.c.l.b16 %v1290
    %v2511 = vunpack.c.h.b16 %v1290
    %v2512 = vunpack.c.l.b16 %v1291
    %v2513 = vunpack.c.h.b16 %v1291
    %v2514 = vunpack.c.l.b16 %v1292
    %v2515 = vunpack.c.h.b16 %v1292
    %v2516 = vunpack.c.l.b16 %v1293
    %v2517 = vunpack.c.h.b16 %v1293
    %v2518 = vunpack.c.l.b16 %v1294
    %v2519 = vunpack.c.h.b16 %v1294
    %v2520 = vunpack.c.l.b16 %v1295
    %v2521 = vunpack.c.h.b16 %v1295
    %v2522 = vunpack.c.l.b16 %v1296
    %v2523 = vunpack.c.h.b16 %v1296
    %v2524 = vunpack.c.l.b16 %v1297
    %v2525 = vunpack.c.h.b16 %v1297
    %v2526 = vunpack.c.l.b16 %v1298
    %v2527 = vunpack.c.h.b16 %v1298
    %v2528 = vunpack.c.l.b16 %v1299
    %v2529 = vunpack.c.h.b16 %v1299
    %v2530 = vunpack.c.l.b16 %v1300
    %v2531 = vunpack.c.h.b16 %v1300
    %v2532 = vunpack.c.l.b16 %v1301
    %v2533 = vunpack.c.h.b16 %v1301
    %v2534 = vunpack.c.l.b16 %v1302
    %v2535 = vunpack.c.h.b16 %v1302
    %v2536 = vunpack.c.l.b16 %v1303
    %v2537 = vunpack.c.h.b16 %v1303
    %v2538 = vunpack.c.l.b16 %v1304
    %v2539 = vunpack.c.h.b16 %v1304
    %v2540 = vunpack.c.l.b16 %v1305
    %v2541 = vunpack.c.h.b16 %v1305
    %v2542 = vunpack.c.l.b16 %v1306
    %v2543 = vunpack.c.h.b16 %v1306
    %v2544 = vunpack.c.l.b16 %v1307
    %v2545 = vunpack.c.h.b16 %v1307
    %v2546 = vunpack.c.l.b16 %v1308
    %v2547 = vunpack.c.h.b16 %v1308
    %v2548 = vunpack.c.l.b16 %v1309
    %v2549 = vunpack.c.h.b16 %v1309
    %v2550 = vunpack.c.l.b16 %v1310
    %v2551 = vunpack.c.h.b16 %v1310
    %v2552 = vunpack.c.l.b16 %v1311
    %v2553 = vunpack.c.h.b16 %v1311
    %v2554 = vunpack.c.l.b16 %v1312
    %v2555 = vunpack.c.h.b16 %v1312
    %v2556 = vunpack.c.l.b16 %v1313
    %v2557 = vunpack.c.h.b16 %v1313
    %v2558 = vunpack.c.l.b16 %v1314
    %v2559 = vunpack.c.h.b16 %v1314
    %v2560 = vunpack.c.l.b16 %v1315
    %v2561 = vunpack.c.h.b16 %v1315
    %v2562 = vunpack.c.l.b16 %v1316
    %v2563 = vunpack.c.h.b16 %v1316
    %v2564 = vunpack.c.l.b16 %v1317
    %v2565 = vunpack.c.h.b16 %v1317
    %v2566 = vunpack.c.l.b16 %v1318
    %v2567 = vunpack.c.h.b16 %v1318
    %v2568 = vunpack.c.l.b16 %v1319
    %v2569 = vunpack.c.h.b16 %v1319
    %v2570 = vunpack.c.l.b16 %v1320
    %v2571 = vunpack.c.h.b16 %v1320
    %v2572 = vunpack.c.l.b16 %v1321
    %v2573 = vunpack.c.h.b16 %v1321
    %v2574 = vunpack.c.l.b16 %v1322
    %v2575 = vunpack.c.h.b16 %v1322
    %v2576 = vunpack.c.l.b16 %v1323
    %v2577 = vunpack.c.h.b16 %v1323
    %v2578 = vunpack.c.l.b16 %v1324
    %v2579 = vunpack.c.h.b16 %v1324
    %v2580 = vunpack.c.l.b16 %v1325
    %v2581 = vunpack.c.h.b16 %v1325
    %v2582 = vunpack.c.l.b16 %v1326
    %v2583 = vunpack.c.h.b16 %v1326
    %v2584 = vunpack.c.l.b16 %v1327
    %v2585 = vunpack.c.h.b16 %v1327
    %v2586 = vunpack.c.l.b16 %v1328
    %v2587 = vunpack.c.h.b16 %v1328
    %v2588 = vunpack.c.l.b16 %v1329
    %v2589 = vunpack.c.h.b16 %v1329
    %v2590 = vunpack.c.l.b16 %v1330
    %v2591 = vunpack.c.h.b16 %v1330
    %v2592 = vunpack.c.l.b16 %v1331
    %v2593 = vunpack.c.h.b16 %v1331
    %v2594 = vunpack.c.l.b16 %v1332
    %v2595 = vunpack.c.h.b16 %v1332
    %v2596 = vunpack.c.l.b16 %v1333
    %v2597 = vunpack.c.h.b16 %v1333
    %v2598 = vunpack.c.l.b16 %v1334
    %v2599 = vunpack.c.h.b16 %v1334
    %v2600 = vunpack.c.l.b16 %v1335
    %v2601 = vunpack.c.h.b16 %v1335
    %v2602 = vunpack.c.l.b16 %v1336
    %v2603 = vunpack.c.h.b16 %v1336
    %v2604 = vunpack.c.l.b16 %v1337
    %v2605 = vunpack.c.h.b16 %v1337
    %v2606 = vunpack.c.l.b16 %v1338
    %v2607 = vunpack.c.h.b16 %v1338
    %v2608 = vunpack.c.l.b16 %v1339
    %v2609 = vunpack.c.h.b16 %v1339
    %v2610 = vunpack.c.l.b16 %v1340
    %v2611 = vunpack.c.h.b16 %v1340
    %v2612 = vunpack.c.l.b16 %v1341
    %v2613 = vunpack.c.h.b16 %v1341
    %v2614 = vunpack.c.l.b16 %v1342
    %v2615 = vunpack.c.h.b16 %v1342
    %v2616 = vunpack.c.l.b16 %v1343
    %v2617 = vunpack.c.h.b16 %v1343
    %v2618 = vunpack.c.l.b16 %v1344
    %v2619 = vunpack.c.h.b16 %v1344
    %v2620 = vunpack.c.l.b16 %v1345
    %v2621 = vunpack.c.h.b16 %v1345
    %v2622 = vunpack.c.l.b16 %v1346
    %v2623 = vunpack.c.h.b16 %v1346
    %v2624 = vunpack.c.l.b16 %v1347
    %v2625 = vunpack.c.h.b16 %v1347
    %v2626 = vunpack.c.l.b16 %v1348
    %v2627 = vunpack.c.h.b16 %v1348
    %v2628 = vunpack.c.l.b16 %v1349
    %v2629 = vunpack.c.h.b16 %v1349
    %v2630 = vunpack.c.l.b16 %v1350
    %v2631 = vunpack.c.h.b16 %v1350
    %v2632 = vunpack.c.l.b16 %v1351
    %v2633 = vunpack.c.h.b16 %v1351
    %v2634 = vunpack.c.l.b16 %v1352
    %v2635 = vunpack.c.h.b16 %v1352
    %v2636 = vunpack.c.l.b16 %v1353
    %v2637 = vunpack.c.h.b16 %v1353
    %v2638 = vunpack.c.l.b16 %v1354
    %v2639 = vunpack.c.h.b16 %v1354
    %v2640 = vunpack.c.l.b16 %v1355
    %v2641 = vunpack.c.h.b16 %v1355
    %v2642 = vunpack.c.l.b16 %v1356
    %v2643 = vunpack.c.h.b16 %v1356
    %v2644 = vunpack.c.l.b16 %v1357
    %v2645 = vunpack.c.h.b16 %v1357
    %v2646 = vunpack.c.l.b16 %v1358
    %v2647 = vunpack.c.h.b16 %v1358
    %v2648 = vunpack.c.l.b16 %v1359
    %v2649 = vunpack.c.h.b16 %v1359
    %v2650 = vunpack.c.l.b16 %v1360
    %v2651 = vunpack.c.h.b16 %v1360
    %v2652 = vunpack.c.l.b16 %v1361
    %v2653 = vunpack.c.h.b16 %v1361
    %v2654 = vunpack.c.l.b16 %v1362
    %v2655 = vunpack.c.h.b16 %v1362
    %v2656 = vunpack.c.l.b16 %v1363
    %v2657 = vunpack.c.h.b16 %v1363
    %v2658 = vunpack.c.l.b16 %v1364
    %v2659 = vunpack.c.h.b16 %v1364
    %v2660 = vunpack.c.l.b16 %v1365
    %v2661 = vunpack.c.h.b16 %v1365
    %v2662 = vunpack.c.l.b16 %v1366
    %v2663 = vunpack.c.h.b16 %v1366
    %v2664 = vunpack.c.l.b16 %v1367
    %v2665 = vunpack.c.h.b16 %v1367
    %v2666 = vunpack.c.l.b16 %v1368
    %v2667 = vunpack.c.h.b16 %v1368
    %v2668 = vunpack.c.l.b16 %v1369
    %v2669 = vunpack.c.h.b16 %v1369
    %v2670 = vunpack.c.l.b16 %v1370
    %v2671 = vunpack.c.h.b16 %v1370
    %v2672 = vunpack.c.l.b16 %v1371
    %v2673 = vunpack.c.h.b16 %v1371
    %v2674 = vunpack.c.l.b16 %v1372
    %v2675 = vunpack.c.h.b16 %v1372
    %v2676 = vunpack.c.l.b16 %v1373
    %v2677 = vunpack.c.h.b16 %v1373
    %v2678 = vunpack.c.l.b16 %v1374
    %v2679 = vunpack.c.h.b16 %v1374
    %v2680 = vunpack.c.l.b16 %v1375
    %v2681 = vunpack.c.h.b16 %v1375
    %v2682 = vunpack.c.l.b16 %v1376
    %v2683 = vunpack.c.h.b16 %v1376
    %v2684 = vunpack.c.l.b16 %v1377
    %v2685 = vunpack.c.h.b16 %v1377
    %v2686 = vunpack.c.l.b16 %v1378
    %v2687 = vunpack.c.h.b16 %v1378
    %v2688 = vunpack.c.l.b16 %v1379
    %v2689 = vunpack.c.h.b16 %v1379
    %v2690 = vunpack.c.l.b16 %v1380
    %v2691 = vunpack.c.h.b16 %v1380
    %v2692 = vunpack.c.l.b16 %v1381
    %v2693 = vunpack.c.h.b16 %v1381
    %v2694 = vunpack.c.l.b16 %v1382
    %v2695 = vunpack.c.h.b16 %v1382
    %v2696 = vunpack.c.l.b16 %v1383
    %v2697 = vunpack.c.h.b16 %v1383
    %v2698 = vunpack.c.l.b16 %v1384
    %v2699 = vunpack.c.h.b16 %v1384
    %v2700 = vunpack.c.l.b16 %v1385
    %v2701 = vunpack.c.h.b16 %v1385
    %v2702 = vunpack.c.l.b16 %v1386
    %v2703 = vunpack.c.h.b16 %v1386
    %v2704 = vunpack.c.l.b16 %v1387
    %v2705 = vunpack.c.h.b16 %v1387
    %v2706 = vunpack.c.l.b16 %v1388
    %v2707 = vunpack.c.h.b16 %v1388
    %v2708 = vunpack.c.l.b16 %v1389
    %v2709 = vunpack.c.h.b16 %v1389
    %v2710 = vunpack.c.l.b16 %v1390
    %v2711 = vunpack.c.h.b16 %v1390
    %v2712 = vunpack.c.l.b16 %v1391
    %v2713 = vunpack.c.h.b16 %v1391
    %v2714 = vunpack.c.l.b16 %v1392
    %v2715 = vunpack.c.h.b16 %v1392
    %v2716 = vunpack.c.l.b16 %v1393
    %v2717 = vunpack.c.h.b16 %v1393
    %v2718 = vunpack.c.l.b16 %v1394
    %v2719 = vunpack.c.h.b16 %v1394
    %v2720 = vunpack.c.l.b16 %v1395
    %v2721 = vunpack.c.h.b16 %v1395
    %v2722 = vunpack.c.l.b16 %v1396
    %v2723 = vunpack.c.h.b16 %v1396
    %v2724 = vunpack.c.l.b16 %v1397
    %v2725 = vunpack.c.h.b16 %v1397
    %v2726 = vunpack.c.l.b16 %v1398
    %v2727 = vunpack.c.h.b16 %v1398
    %v2728 = vunpack.c.l.b16 %v1399
    %v2729 = vunpack.c.h.b16 %v1399
    %v2730 = vunpack.c.l.b16 %v1400
    %v2731 = vunpack.c.h.b16 %v1400
    %v2732 = vunpack.c.l.b16 %v1401
    %v2733 = vunpack.c.h.b16 %v1401
    %v2734 = vunpack.c.l.b16 %v1402
    %v2735 = vunpack.c.h.b16 %v1402
    %v2736 = vunpack.c.l.b16 %v1403
    %v2737 = vunpack.c.h.b16 %v1403
    %v2738 = vunpack.c.l.b16 %v1404
    %v2739 = vunpack.c.h.b16 %v1404
    %v2740 = vunpack.c.l.b16 %v1405
    %v2741 = vunpack.c.h.b16 %v1405
    %v2742 = vunpack.c.l.b16 %v1406
    %v2743 = vunpack.c.h.b16 %v1406
    %v2744 = vunpack.c.l.b16 %v1407
    %v2745 = vunpack.c.h.b16 %v1407
    %v2746 = vunpack.c.l.b16 %v1408
    %v2747 = vunpack.c.h.b16 %v1408
    %v2748 = vunpack.c.l.b16 %v1409
    %v2749 = vunpack.c.h.b16 %v1409
    %v2750 = vunpack.c.l.b16 %v1410
    %v2751 = vunpack.c.h.b16 %v1410
    %v2752 = vunpack.c.l.b16 %v1411
    %v2753 = vunpack.c.h.b16 %v1411
    %v2754 = vunpack.c.l.b16 %v1412
    %v2755 = vunpack.c.h.b16 %v1412
    %v2756 = vunpack.c.l.b16 %v1413
    %v2757 = vunpack.c.h.b16 %v1413
    %v2758 = vunpack.c.l.b16 %v1414
    %v2759 = vunpack.c.h.b16 %v1414
    %v2760 = vunpack.c.l.b16 %v1415
    %v2761 = vunpack.c.h.b16 %v1415
    %v2762 = vunpack.c.l.b16 %v1416
    %v2763 = vunpack.c.h.b16 %v1416
    %v2764 = vunpack.c.l.b16 %v1417
    %v2765 = vunpack.c.h.b16 %v1417
    %v2766 = vunpack.c.l.b16 %v1418
    %v2767 = vunpack.c.h.b16 %v1418
    %v2768 = vunpack.c.l.b16 %v1419
    %v2769 = vunpack.c.h.b16 %v1419
    %v2770 = vunpack.c.l.b16 %v1420
    %v2771 = vunpack.c.h.b16 %v1420
    %v2772 = vunpack.c.l.b16 %v1421
    %v2773 = vunpack.c.h.b16 %v1421
    %v2774 = vunpack.c.l.b16 %v1422
    %v2775 = vunpack.c.h.b16 %v1422
    %v2776 = vunpack.c.l.b16 %v1423
    %v2777 = vunpack.c.h.b16 %v1423
    %v2778 = vunpack.c.l.b16 %v1424
    %v2779 = vunpack.c.h.b16 %v1424
    %v2780 = vunpack.c.l.b16 %v1425
    %v2781 = vunpack.c.h.b16 %v1425
    %v2782 = vunpack.c.l.b16 %v1426
    %v2783 = vunpack.c.h.b16 %v1426
    %v2784 = vunpack.c.l.b16 %v1427
    %v2785 = vunpack.c.h.b16 %v1427
    %v2786 = vunpack.c.l.b16 %v1428
    %v2787 = vunpack.c.h.b16 %v1428
    %v2788 = vunpack.c.l.b16 %v1429
    %v2789 = vunpack.c.h.b16 %v1429
    %v2790 = vunpack.c.l.b16 %v1430
    %v2791 = vunpack.c.h.b16 %v1430
    %v2792 = vunpack.c.l.b16 %v1431
    %v2793 = vunpack.c.h.b16 %v1431
    %v2794 = vunpack.c.l.b16 %v1432
    %v2795 = vunpack.c.h.b16 %v1432
    %v2796 = vunpack.c.l.b16 %v1433
    %v2797 = vunpack.c.h.b16 %v1433
    %v2798 = vunpack.c.l.b16 %v1434
    %v2799 = vunpack.c.h.b16 %v1434
    %v2800 = vunpack.c.l.b16 %v1435
    %v2801 = vunpack.c.h.b16 %v1435
    %v2802 = vunpack.c.l.b16 %v1436
    %v2803 = vunpack.c.h.b16 %v1436
    %v2804 = vunpack.c.l.b16 %v1437
    %v2805 = vunpack.c.h.b16 %v1437
    %v2806 = vunpack.c.l.b16 %v1438
    %v2807 = vunpack.c.h.b16 %v1438
    %v2808 = vunpack.c.l.b16 %v1439
    %v2809 = vunpack.c.h.b16 %v1439
    %v2810 = vunpack.c.l.b16 %v1440
    %v2811 = vunpack.c.h.b16 %v1440
    %v2812 = vunpack.c.l.b16 %v1441
    %v2813 = vunpack.c.h.b16 %v1441
    %v2814 = vunpack.c.l.b16 %v1442
    %v2815 = vunpack.c.h.b16 %v1442
    %v2816 = vunpack.c.l.b16 %v1443
    %v2817 = vunpack.c.h.b16 %v1443
    %v2818 = vunpack.c.l.b16 %v1444
    %v2819 = vunpack.c.h.b16 %v1444
    %v2820 = vunpack.c.l.b16 %v1445
    %v2821 = vunpack.c.h.b16 %v1445
    %v2822 = vunpack.c.l.b16 %v1446
    %v2823 = vunpack.c.h.b16 %v1446
    %v2824 = vunpack.c.l.b16 %v1447
    %v2825 = vunpack.c.h.b16 %v1447
    %v2826 = vunpack.c.l.b16 %v1448
    %v2827 = vunpack.c.h.b16 %v1448
    %v2828 = vunpack.c.l.b16 %v1449
    %v2829 = vunpack.c.h.b16 %v1449
    %v2830 = vunpack.c.l.b16 %v1450
    %v2831 = vunpack.c.h.b16 %v1450
    %v2832 = vunpack.c.l.b16 %v1451
    %v2833 = vunpack.c.h.b16 %v1451
    %v2834 = vunpack.c.l.b16 %v1452
    %v2835 = vunpack.c.h.b16 %v1452
    %v2836 = vunpack.c.l.b16 %v1453
    %v2837 = vunpack.c.h.b16 %v1453
    %v2838 = vunpack.c.l.b16 %v1454
    %v2839 = vunpack.c.h.b16 %v1454
    %v2840 = vunpack.c.l.b16 %v1455
    %v2841 = vunpack.c.h.b16 %v1455
    %v2842 = vunpack.c.l.b16 %v1456
    %v2843 = vunpack.c.h.b16 %v1456
    %v2844 = vunpack.c.l.b16 %v1457
    %v2845 = vunpack.c.h.b16 %v1457
    %v2846 = vunpack.c.l.b16 %v1458
    %v2847 = vunpack.c.h.b16 %v1458
    %v2848 = vunpack.c.l.b16 %v1459
    %v2849 = vunpack.c.h.b16 %v1459
    %v2850 = vunpack.c.l.b16 %v1460
    %v2851 = vunpack.c.h.b16 %v1460
    %v2852 = vunpack.c.l.b16 %v1461
    %v2853 = vunpack.c.h.b16 %v1461
    %v2854 = vunpack.c.l.b16 %v1462
    %v2855 = vunpack.c.h.b16 %v1462
    %v2856 = vunpack.c.l.b16 %v1463
    %v2857 = vunpack.c.h.b16 %v1463
    %v2858 = vunpack.c.l.b16 %v1464
    %v2859 = vunpack.c.h.b16 %v1464
    %v2860 = vunpack.c.l.b16 %v1465
    %v2861 = vunpack.c.h.b16 %v1465
    %v2862 = vunpack.c.l.b16 %v1466
    %v2863 = vunpack.c.h.b16 %v1466
    %v2864 = vunpack.c.l.b16 %v1467
    %v2865 = vunpack.c.h.b16 %v1467
    %v2866 = vunpack.c.l.b16 %v1468
    %v2867 = vunpack.c.h.b16 %v1468
    %v2868 = vunpack.c.l.b16 %v1469
    %v2869 = vunpack.c.h.b16 %v1469
    %v2870 = vunpack.c.l.b16 %v1470
    %v2871 = vunpack.c.h.b16 %v1470
    %v2872 = vunpack.c.l.b16 %v1471
    %v2873 = vunpack.c.h.b16 %v1471
    %v2874 = vunpack.c.l.b16 %v1472
    %v2875 = vunpack.c.h.b16 %v1472
    %v2876 = vunpack.c.l.b16 %v1473
    %v2877 = vunpack.c.h.b16 %v1473
    %v2878 = vunpack.c.l.b16 %v1474
    %v2879 = vunpack.c.h.b16 %v1474
    %v2880 = vunpack.c.l.b16 %v1475
    %v2881 = vunpack.c.h.b16 %v1475
    %v2882 = vunpack.c.l.b16 %v1476
    %v2883 = vunpack.c.h.b16 %v1476
    %v2884 = vunpack.c.l.b16 %v1477
    %v2885 = vunpack.c.h.b16 %v1477
    %v2886 = vunpack.c.l.b16 %v1478
    %v2887 = vunpack.c.h.b16 %v1478
    %v2888 = vunpack.c.l.b16 %v1479
    %v2889 = vunpack.c.h.b16 %v1479
    %v2890 = vunpack.c.l.b16 %v1480
    %v2891 = vunpack.c.h.b16 %v1480
    %v2892 = vunpack.c.l.b16 %v1481
    %v2893 = vunpack.c.h.b16 %v1481
    %v2894 = vunpack.c.l.b16 %v1482
    %v2895 = vunpack.c.h.b16 %v1482
    %v2896 = vunpack.c.l.b16 %v1483
    %v2897 = vunpack.c.h.b16 %v1483
    %v2898 = vunpack.c.l.b16 %v1484
    %v2899 = vunpack.c.h.b16 %v1484
    %v2900 = vunpack.c.l.b16 %v1485
    %v2901 = vunpack.c.h.b16 %v1485
    %v2902 = vunpack.c.l.b16 %v1486
    %v2903 = vunpack.c.h.b16 %v1486
    %v2904 = vunpack.c.l.b16 %v1487
    %v2905 = vunpack.c.h.b16 %v1487
    %v2906 = vunpack.c.l.b16 %v1488
    %v2907 = vunpack.c.h.b16 %v1488
    %v2908 = vunpack.c.l.b16 %v1489
    %v2909 = vunpack.c.h.b16 %v1489
    %v2910 = vunpack.c.l.b16 %v1490
    %v2911 = vunpack.c.h.b16 %v1490
    %v2912 = vunpack.c.l.b16 %v1491
    %v2913 = vunpack.c.h.b16 %v1491
    %v2914 = vunpack.c.l.b16 %v1492
    %v2915 = vunpack.c.h.b16 %v1492
    %v2916 = vunpack.c.l.b16 %v1493
    %v2917 = vunpack.c.h.b16 %v1493
    %v2918 = vunpack.c.l.b16 %v1494
    %v2919 = vunpack.c.h.b16 %v1494
    %v2920 = vunpack.c.l.b16 %v1495
    %v2921 = vunpack.c.h.b16 %v1495
    %v2922 = vunpack.c.l.b16 %v1496
    %v2923 = vunpack.c.h.b16 %v1496
    %v2924 = vunpack.c.l.b16 %v1497
    %v2925 = vunpack.c.h.b16 %v1497
    %v2926 = vunpack.c.l.b16 %v1498
    %v2927 = vunpack.c.h.b16 %v1498
    %v2928 = vunpack.c.l.b16 %v1499
    %v2929 = vunpack.c.h.b16 %v1499
    %v2930 = vunpack.c.l.b16 %v1500
    %v2931 = vunpack.c.h.b16 %v1500
    %v2932 = vunpack.c.l.b16 %v1501
    %v2933 = vunpack.c.h.b16 %v1501
    %v2934 = vunpack.c.l.b16 %v1502
    %v2935 = vunpack.c.h.b16 %v1502
    %v2936 = vunpack.c.l.b16 %v1503
    %v2937 = vunpack.c.h.b16 %v1503
    %v2938 = vunpack.c.l.b16 %v1504
    %v2939 = vunpack.c.h.b16 %v1504
    %v2940 = vunpack.c.l.b16 %v1505
    %v2941 = vunpack.c.h.b16 %v1505
    %v2942 = vunpack.c.l.b16 %v1506
    %v2943 = vunpack.c.h.b16 %v1506
    %v2944 = vunpack.c.l.b16 %v1507
    %v2945 = vunpack.c.h.b16 %v1507
    %v2946 = vunpack.c.l.b16 %v1508
    %v2947 = vunpack.c.h.b16 %v1508
    %v2948 = vunpack.c.l.b16 %v1509
    %v2949 = vunpack.c.h.b16 %v1509
    %v2950 = vunpack.c.l.b16 %v1510
    %v2951 = vunpack.c.h.b16 %v1510
    %v2952 = vunpack.c.l.b16 %v1511
    %v2953 = vunpack.c.h.b16 %v1511
    %v2954 = vunpack.c.l.b16 %v1512
    %v2955 = vunpack.c.h.b16 %v1512
    %v2956 = vunpack.c.l.b16 %v1513
    %v2957 = vunpack.c.h.b16 %v1513
    %v2958 = vunpack.c.l.b16 %v1514
    %v2959 = vunpack.c.h.b16 %v1514
    %v2960 = vunpack.c.l.b16 %v1515
    %v2961 = vunpack.c.h.b16 %v1515
    %v2962 = vunpack.c.l.b16 %v1516
    %v2963 = vunpack.c.h.b16 %v1516
    %v2964 = vunpack.c.l.b16 %v1517
    %v2965 = vunpack.c.h.b16 %v1517
    %v2966 = vunpack.c.l.b16 %v1518
    %v2967 = vunpack.c.h.b16 %v1518
    %v2968 = vunpack.c.l.b16 %v1519
    %v2969 = vunpack.c.h.b16 %v1519
    %v2970 = vunpack.c.l.b16 %v1520
    %v2971 = vunpack.c.h.b16 %v1520
    %v2972 = vunpack.c.l.b16 %v1521
    %v2973 = vunpack.c.h.b16 %v1521
    %v2974 = vunpack.c.l.b16 %v1522
    %v2975 = vunpack.c.h.b16 %v1522
    %v2976 = vunpack.c.l.b16 %v1523
    %v2977 = vunpack.c.h.b16 %v1523
    %v2978 = vunpack.c.l.b16 %v1524
    %v2979 = vunpack.c.h.b16 %v1524
    %v2980 = vunpack.c.l.b16 %v1525
    %v2981 = vunpack.c.h.b16 %v1525
    %v2982 = vunpack.c.l.b16 %v1526
    %v2983 = vunpack.c.h.b16 %v1526
    %v2984 = vunpack.c.l.b16 %v1527
    %v2985 = vunpack.c.h.b16 %v1527
    %v2986 = vunpack.c.l.b16 %v1528
    %v2987 = vunpack.c.h.b16 %v1528
    %v2988 = vunpack.c.l.b16 %v1529
    %v2989 = vunpack.c.h.b16 %v1529
    %v2990 = vunpack.c.l.b16 %v1530
    %v2991 = vunpack.c.h.b16 %v1530
    %v2992 = vunpack.c.l.b16 %v1531
    %v2993 = vunpack.c.h.b16 %v1531
    %v2994 = vunpack.c.l.b16 %v1532
    %v2995 = vunpack.c.h.b16 %v1532
    %v2996 = vunpack.c.l.b16 %v1533
    %v2997 = vunpack.c.h.b16 %v1533
    %v2998 = vunpack.c.l.b16 %v1534
    %v2999 = vunpack.c.h.b16 %v1534
    %v3000 = vunpack.c.l.b16 %v1535
    %v3001 = vunpack.c.h.b16 %v1535
    %v3002 = vunpack.c.l.b16 %v1536
    %v3003 = vunpack.c.h.b16 %v1536
    %v3004 = vunpack.c.l.b16 %v1537
    %v3005 = vunpack.c.h.b16 %v1537
    %v3006 = vunpack.c.l.b16 %v1538
    %v3007 = vunpack.c.h.b16 %v1538
    %v3008 = vunpack.c.l.b16 %v1539
    %v3009 = vunpack.c.h.b16 %v1539
    %v3010 = vunpack.c.l.b16 %v1540
    %v3011 = vunpack.c.h.b16 %v1540
    %v3012 = vunpack.c.l.b16 %v1541
    %v3013 = vunpack.c.h.b16 %v1541
    %v3014 = vunpack.c.l.b16 %v1542
    %v3015 = vunpack.c.h.b16 %v1542
    %v3016 = vunpack.c.l.b16 %v1543
    %v3017 = vunpack.c.h.b16 %v1543
    %v3018 = vunpack.c.l.b16 %v1544
    %v3019 = vunpack.c.h.b16 %v1544
    %v3020 = vunpack.c.l.b16 %v1545
    %v3021 = vunpack.c.h.b16 %v1545
    %v3022 = vunpack.c.l.b16 %v1546
    %v3023 = vunpack.c.h.b16 %v1546
    %v3024 = vunpack.c.l.b16 %v1547
    %v3025 = vunpack.c.h.b16 %v1547
    %v3026 = vunpack.c.l.b16 %v1548
    %v3027 = vunpack.c.h.b16 %v1548
    %v3028 = vunpack.c.l.b16 %v1549
    %v3029 = vunpack.c.h.b16 %v1549
    %v3030 = vunpack.c.l.b16 %v1550
    %v3031 = vunpack.c.h.b16 %v1550
    %v3032 = vunpack.c.l.b16 %v1551
    %v3033 = vunpack.c.h.b16 %v1551
    %v3034 = vunpack.c.l.b16 %v1552
    %v3035 = vunpack.c.h.b16 %v1552
    %v3036 = vunpack.c.l.b16 %v1553
    %v3037 = vunpack.c.h.b16 %v1553
    %v3038 = vunpack.c.l.b16 %v1554
    %v3039 = vunpack.c.h.b16 %v1554
    %v3040 = vunpack.c.l.b16 %v1555
    %v3041 = vunpack.c.h.b16 %v1555
    %v3042 = vunpack.c.l.b16 %v1556
    %v3043 = vunpack.c.h.b16 %v1556
    %v3044 = vunpack.c.l.b16 %v1557
    %v3045 = vunpack.c.h.b16 %v1557
    %v3046 = vunpack.c.l.b16 %v1558
    %v3047 = vunpack.c.h.b16 %v1558
    %v3048 = vunpack.c.l.b16 %v1559
    %v3049 = vunpack.c.h.b16 %v1559
    %v3050 = vunpack.c.l.b16 %v1560
    %v3051 = vunpack.c.h.b16 %v1560
    %v3052 = vunpack.c.l.b16 %v1561
    %v3053 = vunpack.c.h.b16 %v1561
    %v3054 = vunpack.c.l.b16 %v1562
    %v3055 = vunpack.c.h.b16 %v1562
    %v3056 = vunpack.c.l.b16 %v1563
    %v3057 = vunpack.c.h.b16 %v1563
    %v3058 = vunpack.c.l.b16 %v1564
    %v3059 = vunpack.c.h.b16 %v1564
    %v3060 = vunpack.c.l.b16 %v1565
    %v3061 = vunpack.c.h.b16 %v1565
    %v3062 = vunpack.c.l.b16 %v1566
    %v3063 = vunpack.c.h.b16 %v1566
    %v3064 = vunpack.c.l.b16 %v1567
    %v3065 = vunpack.c.h.b16 %v1567
    %v3066 = vunpack.c.l.b16 %v1568
    %v3067 = vunpack.c.h.b16 %v1568
    %v3068 = vunpack.c.l.b16 %v1569
    %v3069 = vunpack.c.h.b16 %v1569
    %v3070 = vunpack.c.l.b16 %v1570
    %v3071 = vunpack.c.h.b16 %v1570
    %v3072 = vunpack.c.l.b16 %v1571
    %v3073 = vunpack.c.h.b16 %v1571
    %v3074 = vunpack.c.l.b16 %v1572
    %v3075 = vunpack.c.h.b16 %v1572
    %v3076 = vunpack.c.l.b16 %v1573
    %v3077 = vunpack.c.h.b16 %v1573
    %v3078 = vunpack.c.l.b16 %v1574
    %v3079 = vunpack.c.h.b16 %v1574
    %v3080 = vunpack.c.l.b16 %v1575
    %v3081 = vunpack.c.h.b16 %v1575
    %v3082 = vunpack.c.l.b16 %v1576
    %v3083 = vunpack.c.h.b16 %v1576
    %v3084 = vunpack.c.l.b16 %v1577
    %v3085 = vunpack.c.h.b16 %v1577
    %v3086 = vunpack.c.l.b16 %v1578
    %v3087 = vunpack.c.h.b16 %v1578
    %v3088 = vunpack.c.l.b16 %v1579
    %v3089 = vunpack.c.h.b16 %v1579
    %v3090 = vunpack.c.l.b16 %v1580
    %v3091 = vunpack.c.h.b16 %v1580
    %v3092 = vunpack.c.l.b16 %v1581
    %v3093 = vunpack.c.h.b16 %v1581
    %v3094 = vunpack.c.l.b16 %v1582
    %v3095 = vunpack.c.h.b16 %v1582
    %v3096 = vunpack.c.l.b16 %v1583
    %v3097 = vunpack.c.h.b16 %v1583
    %v3098 = vunpack.c.l.b16 %v1584
    %v3099 = vunpack.c.h.b16 %v1584
    %v3100 = vunpack.c.l.b16 %v1585
    %v3101 = vunpack.c.h.b16 %v1585
    %v3102 = vunpack.c.l.b16 %v1586
    %v3103 = vunpack.c.h.b16 %v1586
    %v3104 = vunpack.c.l.b16 %v1587
    %v3105 = vunpack.c.h.b16 %v1587
    %v3106 = vunpack.c.l.b16 %v1588
    %v3107 = vunpack.c.h.b16 %v1588
    %v3108 = vunpack.c.l.b16 %v1589
    %v3109 = vunpack.c.h.b16 %v1589
    %v3110 = vunpack.c.l.b16 %v1590
    %v3111 = vunpack.c.h.b16 %v1590
    %v3112 = vunpack.c.l.b16 %v1591
    %v3113 = vunpack.c.h.b16 %v1591
    %v3114 = vunpack.c.l.b16 %v1592
    %v3115 = vunpack.c.h.b16 %v1592
    %v3116 = vunpack.c.l.b16 %v1593
    %v3117 = vunpack.c.h.b16 %v1593
    %v3118 = vunpack.c.l.b16 %v1594
    %v3119 = vunpack.c.h.b16 %v1594
    %v3120 = vunpack.c.l.b16 %v1595
    %v3121 = vunpack.c.h.b16 %v1595
    %v3122 = vunpack.c.l.b16 %v1596
    %v3123 = vunpack.c.h.b16 %v1596
    %v3124 = vunpack.c.l.b16 %v1597
    %v3125 = vunpack.c.h.b16 %v1597
    %v3126 = vunpack.c.l.b16 %v1598
    %v3127 = vunpack.c.h.b16 %v1598
    %v3128 = vunpack.c.l.b16 %v1599
    %v3129 = vunpack.c.h.b16 %v1599
    %v3130 = vunpack.c.l.b16 %v1600
    %v3131 = vunpack.c.h.b16 %v1600
    %v3132 = vunpack.c.l.b16 %v1601
    %v3133 = vunpack.c.h.b16 %v1601
    %v3134 = vunpack.c.l.b16 %v1602
    %v3135 = vunpack.c.h.b16 %v1602
    %v3136 = vunpack.c.l.b16 %v1603
    %v3137 = vunpack.c.h.b16 %v1603
    %v3138 = vunpack.c.l.b16 %v1604
    %v3139 = vunpack.c.h.b16 %v1604
    %v3140 = vunpack.c.l.b16 %v1605
    %v3141 = vunpack.c.h.b16 %v1605
    %v3142 = vpack.c.b16 %v2126, %v2118
    %v3143 = vpack.c.b16 %v2127, %v2119
    %v3144 = vpack.c.b16 %v2128, %v2120
    %v3145 = vpack.c.b16 %v2129, %v2121
    %v3146 = vpack.c.b16 %v2130, %v2122
    %v3147 = vpack.c.b16 %v2131, %v2123
    %v3148 = vpack.c.b16 %v2132, %v2124
    %v3149 = vpack.c.b16 %v2133, %v2125
    %v3150 = vpack.c.b16 %v2142, %v2134
    %v3151 = vpack.c.b16 %v2143, %v2135
    %v3152 = vpack.c.b16 %v2144, %v2136
    %v3153 = vpack.c.b16 %v2145, %v2137
    %v3154 = vpack.c.b16 %v2146, %v2138
    %v3155 = vpack.c.b16 %v2147, %v2139
    %v3156 = vpack.c.b16 %v2148, %v2140
    %v3157 = vpack.c.b16 %v2149, %v2141
    %v3158 = vpack.c.b16 %v2158, %v2150
    %v3159 = vpack.c.b16 %v2159, %v2151
    %v3160 = vpack.c.b16 %v2160, %v2152
    %v3161 = vpack.c.b16 %v2161, %v2153
    %v3162 = vpack.c.b16 %v2162, %v2154
    %v3163 = vpack.c.b16 %v2163, %v2155
    %v3164 = vpack.c.b16 %v2164, %v2156
    %v3165 = vpack.c.b16 %v2165, %v2157
    %v3166 = vpack.c.b16 %v2174, %v2166
    %v3167 = vpack.c.b16 %v2175, %v2167
    %v3168 = vpack.c.b16 %v2176, %v2168
    %v3169 = vpack.c.b16 %v2177, %v2169
    %v3170 = vpack.c.b16 %v2178, %v2170
    %v3171 = vpack.c.b16 %v2179, %v2171
    %v3172 = vpack.c.b16 %v2180, %v2172
    %v3173 = vpack.c.b16 %v2181, %v2173
    %v3174 = vpack.c.b16 %v2190, %v2182
    %v3175 = vpack.c.b16 %v2191, %v2183
    %v3176 = vpack.c.b16 %v2192, %v2184
    %v3177 = vpack.c.b16 %v2193, %v2185
    %v3178 = vpack.c.b16 %v2194, %v2186
    %v3179 = vpack.c.b16 %v2195, %v2187
    %v3180 = vpack.c.b16 %v2196, %v2188
    %v3181 = vpack.c.b16 %v2197, %v2189
    %v3182 = vpack.c.b16 %v2206, %v2198
    %v3183 = vpack.c.b16 %v2207, %v2199
    %v3184 = vpack.c.b16 %v2208, %v2200
    %v3185 = vpack.c.b16 %v2209, %v2201
    %v3186 = vpack.c.b16 %v2210, %v2202
    %v3187 = vpack.c.b16 %v2211, %v2203
    %v3188 = vpack.c.b16 %v2212, %v2204
    %v3189 = vpack.c.b16 %v2213, %v2205
    %v3190 = vpack.c.b16 %v2222, %v2214
    %v3191 = vpack.c.b16 %v2223, %v2215
    %v3192 = vpack.c.b16 %v2224, %v2216
    %v3193 = vpack.c.b16 %v2225, %v2217
    %v3194 = vpack.c.b16 %v2226, %v2218
    %v3195 = vpack.c.b16 %v2227, %v2219
    %v3196 = vpack.c.b16 %v2228, %v2220
    %v3197 = vpack.c.b16 %v2229, %v2221
    %v3198 = vpack.c.b16 %v2238, %v2230
    %v3199 = vpack.c.b16 %v2239, %v2231
    %v3200 = vpack.c.b16 %v2240, %v2232
    %v3201 = vpack.c.b16 %v2241, %v2233
    %v3202 = vpack.c.b16 %v2242, %v2234
    %v3203 = vpack.c.b16 %v2243, %v2235
    %v3204 = vpack.c.b16 %v2244, %v2236
    %v3205 = vpack.c.b16 %v2245, %v2237
    %v3206 = vpack.c.b16 %v2254, %v2246
    %v3207 = vpack.c.b16 %v2255, %v2247
    %v3208 = vpack.c.b16 %v2256, %v2248
    %v3209 = vpack.c.b16 %v2257, %v2249
    %v3210 = vpack.c.b16 %v2258, %v2250
    %v3211 = vpack.c.b16 %v2259, %v2251
    %v3212 = vpack.c.b16 %v2260, %v2252
    %v3213 = vpack.c.b16 %v2261, %v2253
    %v3214 = vpack.c.b16 %v2270, %v2262
    %v3215 = vpack.c.b16 %v2271, %v2263
    %v3216 = vpack.c.b16 %v2272, %v2264
    %v3217 = vpack.c.b16 %v2273, %v2265
    %v3218 = vpack.c.b16 %v2274, %v2266
    %v3219 = vpack.c.b16 %v2275, %v2267
    %v3220 = vpack.c.b16 %v2276, %v2268
    %v3221 = vpack.c.b16 %v2277, %v2269
    %v3222 = vpack.c.b16 %v2286, %v2278
    %v3223 = vpack.c.b16 %v2287, %v2279
    %v3224 = vpack.c.b16 %v2288, %v2280
    %v3225 = vpack.c.b16 %v2289, %v2281
    %v3226 = vpack.c.b16 %v2290, %v2282
    %v3227 = vpack.c.b16 %v2291, %v2283
    %v3228 = vpack.c.b16 %v2292, %v2284
    %v3229 = vpack.c.b16 %v2293, %v2285
    %v3230 = vpack.c.b16 %v2302, %v2294
    %v3231 = vpack.c.b16 %v2303, %v2295
    %v3232 = vpack.c.b16 %v2304, %v2296
    %v3233 = vpack.c.b16 %v2305, %v2297
    %v3234 = vpack.c.b16 %v2306, %v2298
    %v3235 = vpack.c.b16 %v2307, %v2299
    %v3236 = vpack.c.b16 %v2308, %v2300
    %v3237 = vpack.c.b16 %v2309, %v2301
    %v3238 = vpack.c.b16 %v2318, %v2310
    %v3239 = vpack.c.b16 %v2319, %v2311
    %v3240 = vpack.c.b16 %v2320, %v2312
    %v3241 = vpack.c.b16 %v2321, %v2313
    %v3242 = vpack.c.b16 %v2322, %v2314
    %v3243 = vpack.c.b16 %v2323, %v2315
    %v3244 = vpack.c.b16 %v2324, %v2316
    %v3245 = vpack.c.b16 %v2325, %v2317
    %v3246 = vpack.c.b16 %v2334, %v2326
    %v3247 = vpack.c.b16 %v2335, %v2327
    %v3248 = vpack.c.b16 %v2336, %v2328
    %v3249 = vpack.c.b16 %v2337, %v2329
    %v3250 = vpack.c.b16 %v2338, %v2330
    %v3251 = vpack.c.b16 %v2339, %v2331
    %v3252 = vpack.c.b16 %v2340, %v2332
    %v3253 = vpack.c.b16 %v2341, %v2333
    %v3254 = vpack.c.b16 %v2350, %v2342
    %v3255 = vpack.c.b16 %v2351, %v2343
    %v3256 = vpack.c.b16 %v2352, %v2344
    %v3257 = vpack.c.b16 %v2353, %v2345
    %v3258 = vpack.c.b16 %v2354, %v2346
    %v3259 = vpack.c.b16 %v2355, %v2347
    %v3260 = vpack.c.b16 %v2356, %v2348
    %v3261 = vpack.c.b16 %v2357, %v2349
    %v3262 = vpack.c.b16 %v2366, %v2358
    %v3263 = vpack.c.b16 %v2367, %v2359
    %v3264 = vpack.c.b16 %v2368, %v2360
    %v3265 = vpack.c.b16 %v2369, %v2361
    %v3266 = vpack.c.b16 %v2370, %v2362
    %v3267 = vpack.c.b16 %v2371, %v2363
    %v3268 = vpack.c.b16 %v2372, %v2364
    %v3269 = vpack.c.b16 %v2373, %v2365
    %v3270 = vpack.c.b16 %v2382, %v2374
    %v3271 = vpack.c.b16 %v2383, %v2375
    %v3272 = vpack.c.b16 %v2384, %v2376
    %v3273 = vpack.c.b16 %v2385, %v2377
    %v3274 = vpack.c.b16 %v2386, %v2378
    %v3275 = vpack.c.b16 %v2387, %v2379
    %v3276 = vpack.c.b16 %v2388, %v2380
    %v3277 = vpack.c.b16 %v2389, %v2381
    %v3278 = vpack.c.b16 %v2398, %v2390
    %v3279 = vpack.c.b16 %v2399, %v2391
    %v3280 = vpack.c.b16 %v2400, %v2392
    %v3281 = vpack.c.b16 %v2401, %v2393
    %v3282 = vpack.c.b16 %v2402, %v2394
    %v3283 = vpack.c.b16 %v2403, %v2395
    %v3284 = vpack.c.b16 %v2404, %v2396
    %v3285 = vpack.c.b16 %v2405, %v2397
    %v3286 = vpack.c.b16 %v2414, %v2406
    %v3287 = vpack.c.b16 %v2415, %v2407
    %v3288 = vpack.c.b16 %v2416, %v2408
    %v3289 = vpack.c.b16 %v2417, %v2409
    %v3290 = vpack.c.b16 %v2418, %v2410
    %v3291 = vpack.c.b16 %v2419, %v2411
    %v3292 = vpack.c.b16 %v2420, %v2412
    %v3293 = vpack.c.b16 %v2421, %v2413
    %v3294 = vpack.c.b16 %v2430, %v2422
    %v3295 = vpack.c.b16 %v2431, %v2423
    %v3296 = vpack.c.b16 %v2432, %v2424
    %v3297 = vpack.c.b16 %v2433, %v2425
    %v3298 = vpack.c.b16 %v2434, %v2426
    %v3299 = vpack.c.b16 %v2435, %v2427
    %v3300 = vpack.c.b16 %v2436, %v2428
    %v3301 = vpack.c.b16 %v2437, %v2429
    %v3302 = vpack.c.b16 %v2446, %v2438
    %v3303 = vpack.c.b16 %v2447, %v2439
    %v3304 = vpack.c.b16 %v2448, %v2440
    %v3305 = vpack.c.b16 %v2449, %v2441
    %v3306 = vpack.c.b16 %v2450, %v2442
    %v3307 = vpack.c.b16 %v2451, %v2443
    %v3308 = vpack.c.b16 %v2452, %v2444
    %v3309 = vpack.c.b16 %v2453, %v2445
    %v3310 = vpack.c.b16 %v2462, %v2454
    %v3311 = vpack.c.b16 %v2463, %v2455
    %v3312 = vpack.c.b16 %v2464, %v2456
    %v3313 = vpack.c.b16 %v2465, %v2457
    %v3314 = vpack.c.b16 %v2466, %v2458
    %v3315 = vpack.c.b16 %v2467, %v2459
    %v3316 = vpack.c.b16 %v2468, %v2460
    %v3317 = vpack.c.b16 %v2469, %v2461
    %v3318 = vpack.c.b16 %v2478, %v2470
    %v3319 = vpack.c.b16 %v2479, %v2471
    %v3320 = vpack.c.b16 %v2480, %v2472
    %v3321 = vpack.c.b16 %v2481, %v2473
    %v3322 = vpack.c.b16 %v2482, %v2474
    %v3323 = vpack.c.b16 %v2483, %v2475
    %v3324 = vpack.c.b16 %v2484, %v2476
    %v3325 = vpack.c.b16 %v2485, %v2477
    %v3326 = vpack.c.b16 %v2494, %v2486
    %v3327 = vpack.c.b16 %v2495, %v2487
    %v3328 = vpack.c.b16 %v2496, %v2488
    %v3329 = vpack.c.b16 %v2497, %v2489
    %v3330 = vpack.c.b16 %v2498, %v2490
    %v3331 = vpack.c.b16 %v2499, %v2491
    %v3332 = vpack.c.b16 %v2500, %v2492
    %v3333 = vpack.c.b16 %v2501, %v2493
    %v3334 = vpack.c.b16 %v2510, %v2502
    %v3335 = vpack.c.b16 %v2511, %v2503
    %v3336 = vpack.c.b16 %v2512, %v2504
    %v3337 = vpack.c.b16 %v2513, %v2505
    %v3338 = vpack.c.b16 %v2514, %v2506
    %v3339 = vpack.c.b16 %v2515, %v2507
    %v3340 = vpack.c.b16 %v2516, %v2508
    %v3341 = vpack.c.b16 %v2517, %v2509
    %v3342 = vpack.c.b16 %v2526, %v2518
    %v3343 = vpack.c.b16 %v2527, %v2519
    %v3344 = vpack.c.b16 %v2528, %v2520
    %v3345 = vpack.c.b16 %v2529, %v2521
    %v3346 = vpack.c.b16 %v2530, %v2522
    %v3347 = vpack.c.b16 %v2531, %v2523
    %v3348 = vpack.c.b16 %v2532, %v2524
    %v3349 = vpack.c.b16 %v2533, %v2525
    %v3350 = vpack.c.b16 %v2542, %v2534
    %v3351 = vpack.c.b16 %v2543, %v2535
    %v3352 = vpack.c.b16 %v2544, %v2536
    %v3353 = vpack.c.b16 %v2545, %v2537
    %v3354 = vpack.c.b16 %v2546, %v2538
    %v3355 = vpack.c.b16 %v2547, %v2539
    %v3356 = vpack.c.b16 %v2548, %v2540
    %v3357 = vpack.c.b16 %v2549, %v2541
    %v3358 = vpack.c.b16 %v2558, %v2550
    %v3359 = vpack.c.b16 %v2559, %v2551
    %v3360 = vpack.c.b16 %v2560, %v2552
    %v3361 = vpack.c.b16 %v2561, %v2553
    %v3362 = vpack.c.b16 %v2562, %v2554
    %v3363 = vpack.c.b16 %v2563, %v2555
    %v3364 = vpack.c.b16 %v2564, %v2556
    %v3365 = vpack.c.b16 %v2565, %v2557
    %v3366 = vpack.c.b16 %v2574, %v2566
    %v3367 = vpack.c.b16 %v2575, %v2567
    %v3368 = vpack.c.b16 %v2576, %v2568
    %v3369 = vpack.c.b16 %v2577, %v2569
    %v3370 = vpack.c.b16 %v2578, %v2570
    %v3371 = vpack.c.b16 %v2579, %v2571
    %v3372 = vpack.c.b16 %v2580, %v2572
    %v3373 = vpack.c.b16 %v2581, %v2573
    %v3374 = vpack.c.b16 %v2590, %v2582
    %v3375 = vpack.c.b16 %v2591, %v2583
    %v3376 = vpack.c.b16 %v2592, %v2584
    %v3377 = vpack.c.b16 %v2593, %v2585
    %v3378 = vpack.c.b16 %v2594, %v2586
    %v3379 = vpack.c.b16 %v2595, %v2587
    %v3380 = vpack.c.b16 %v2596, %v2588
    %v3381 = vpack.c.b16 %v2597, %v2589
    %v3382 = vpack.c.b16 %v2606, %v2598
    %v3383 = vpack.c.b16 %v2607, %v2599
    %v3384 = vpack.c.b16 %v2608, %v2600
    %v3385 = vpack.c.b16 %v2609, %v2601
    %v3386 = vpack.c.b16 %v2610, %v2602
    %v3387 = vpack.c.b16 %v2611, %v2603
    %v3388 = vpack.c.b16 %v2612, %v2604
    %v3389 = vpack.c.b16 %v2613, %v2605
    %v3390 = vpack.c.b16 %v2622, %v2614
    %v3391 = vpack.c.b16 %v2623, %v2615
    %v3392 = vpack.c.b16 %v2624, %v2616
    %v3393 = vpack.c.b16 %v2625, %v2617
    %v3394 = vpack.c.b16 %v2626, %v2618
    %v3395 = vpack.c.b16 %v2627, %v2619
    %v3396 = vpack.c.b16 %v2628, %v2620
    %v3397 = vpack.c.b16 %v2629, %v2621
    %v3398 = vpack.c.b16 %v2638, %v2630
    %v3399 = vpack.c.b16 %v2639, %v2631
    %v3400 = vpack.c.b16 %v2640, %v2632
    %v3401 = vpack.c.b16 %v2641, %v2633
    %v3402 = vpack.c.b16 %v2642, %v2634
    %v3403 = vpack.c.b16 %v2643, %v2635
    %v3404 = vpack.c.b16 %v2644, %v2636
    %v3405 = vpack.c.b16 %v2645, %v2637
    %v3406 = vpack.c.b16 %v2654, %v2646
    %v3407 = vpack.c.b16 %v2655, %v2647
    %v3408 = vpack.c.b16 %v2656, %v2648
    %v3409 = vpack.c.b16 %v2657, %v2649
    %v3410 = vpack.c.b16 %v2658, %v2650
    %v3411 = vpack.c.b16 %v2659, %v2651
    %v3412 = vpack.c.b16 %v2660, %v2652
    %v3413 = vpack.c.b16 %v2661, %v2653
    %v3414 = vpack.c.b16 %v2670, %v2662
    %v3415 = vpack.c.b16 %v2671, %v2663
    %v3416 = vpack.c.b16 %v2672, %v2664
    %v3417 = vpack.c.b16 %v2673, %v2665
    %v3418 = vpack.c.b16 %v2674, %v2666
    %v3419 = vpack.c.b16 %v2675, %v2667
    %v3420 = vpack.c.b16 %v2676, %v2668
    %v3421 = vpack.c.b16 %v2677, %v2669
    %v3422 = vpack.c.b16 %v2686, %v2678
    %v3423 = vpack.c.b16 %v2687, %v2679
    %v3424 = vpack.c.b16 %v2688, %v2680
    %v3425 = vpack.c.b16 %v2689, %v2681
    %v3426 = vpack.c.b16 %v2690, %v2682
    %v3427 = vpack.c.b16 %v2691, %v2683
    %v3428 = vpack.c.b16 %v2692, %v2684
    %v3429 = vpack.c.b16 %v2693, %v2685
    %v3430 = vpack.c.b16 %v2702, %v2694
    %v3431 = vpack.c.b16 %v2703, %v2695
    %v3432 = vpack.c.b16 %v2704, %v2696
    %v3433 = vpack.c.b16 %v2705, %v2697
    %v3434 = vpack.c.b16 %v2706, %v2698
    %v3435 = vpack.c.b16 %v2707, %v2699
    %v3436 = vpack.c.b16 %v2708, %v2700
    %v3437 = vpack.c.b16 %v2709, %v2701
    %v3438 = vpack.c.b16 %v2718, %v2710
    %v3439 = vpack.c.b16 %v2719, %v2711
    %v3440 = vpack.c.b16 %v2720, %v2712
    %v3441 = vpack.c.b16 %v2721, %v2713
    %v3442 = vpack.c.b16 %v2722, %v2714
    %v3443 = vpack.c.b16 %v2723, %v2715
    %v3444 = vpack.c.b16 %v2724, %v2716
    %v3445 = vpack.c.b16 %v2725, %v2717
    %v3446 = vpack.c.b16 %v2734, %v2726
    %v3447 = vpack.c.b16 %v2735, %v2727
    %v3448 = vpack.c.b16 %v2736, %v2728
    %v3449 = vpack.c.b16 %v2737, %v2729
    %v3450 = vpack.c.b16 %v2738, %v2730
    %v3451 = vpack.c.b16 %v2739, %v2731
    %v3452 = vpack.c.b16 %v2740, %v2732
    %v3453 = vpack.c.b16 %v2741, %v2733
    %v3454 = vpack.c.b16 %v2750, %v2742
    %v3455 = vpack.c.b16 %v2751, %v2743
    %v3456 = vpack.c.b16 %v2752, %v2744
    %v3457 = vpack.c.b16 %v2753, %v2745
    %v3458 = vpack.c.b16 %v2754, %v2746
    %v3459 = vpack.c.b16 %v2755, %v2747
    %v3460 = vpack.c.b16 %v2756, %v2748
    %v3461 = vpack.c.b16 %v2757, %v2749
    %v3462 = vpack.c.b16 %v2766, %v2758
    %v3463 = vpack.c.b16 %v2767, %v2759
    %v3464 = vpack.c.b16 %v2768, %v2760
    %v3465 = vpack.c.b16 %v2769, %v2761
    %v3466 = vpack.c.b16 %v2770, %v2762
    %v3467 = vpack.c.b16 %v2771, %v2763
    %v3468 = vpack.c.b16 %v2772, %v2764
    %v3469 = vpack.c.b16 %v2773, %v2765
    %v3470 = vpack.c.b16 %v2782, %v2774
    %v3471 = vpack.c.b16 %v2783, %v2775
    %v3472 = vpack.c.b16 %v2784, %v2776
    %v3473 = vpack.c.b16 %v2785, %v2777
    %v3474 = vpack.c.b16 %v2786, %v2778
    %v3475 = vpack.c.b16 %v2787, %v2779
    %v3476 = vpack.c.b16 %v2788, %v2780
    %v3477 = vpack.c.b16 %v2789, %v2781
    %v3478 = vpack.c.b16 %v2798, %v2790
    %v3479 = vpack.c.b16 %v2799, %v2791
    %v3480 = vpack.c.b16 %v2800, %v2792
    %v3481 = vpack.c.b16 %v2801, %v2793
    %v3482 = vpack.c.b16 %v2802, %v2794
    %v3483 = vpack.c.b16 %v2803, %v2795
    %v3484 = vpack.c.b16 %v2804, %v2796
    %v3485 = vpack.c.b16 %v2805, %v2797
    %v3486 = vpack.c.b16 %v2814, %v2806
    %v3487 = vpack.c.b16 %v2815, %v2807
    %v3488 = vpack.c.b16 %v2816, %v2808
    %v3489 = vpack.c.b16 %v2817, %v2809
    %v3490 = vpack.c.b16 %v2818, %v2810
    %v3491 = vpack.c.b16 %v2819, %v2811
    %v3492 = vpack.c.b16 %v2820, %v2812
    %v3493 = vpack.c.b16 %v2821, %v2813
    %v3494 = vpack.c.b16 %v2830, %v2822
    %v3495 = vpack.c.b16 %v2831, %v2823
    %v3496 = vpack.c.b16 %v2832, %v2824
    %v3497 = vpack.c.b16 %v2833, %v2825
    %v3498 = vpack.c.b16 %v2834, %v2826
    %v3499 = vpack.c.b16 %v2835, %v2827
    %v3500 = vpack.c.b16 %v2836, %v2828
    %v3501 = vpack.c.b16 %v2837, %v2829
    %v3502 = vpack.c.b16 %v2846, %v2838
    %v3503 = vpack.c.b16 %v2847, %v2839
    %v3504 = vpack.c.b16 %v2848, %v2840
    %v3505 = vpack.c.b16 %v2849, %v2841
    %v3506 = vpack.c.b16 %v2850, %v2842
    %v3507 = vpack.c.b16 %v2851, %v2843
    %v3508 = vpack.c.b16 %v2852, %v2844
    %v3509 = vpack.c.b16 %v2853, %v2845
    %v3510 = vpack.c.b16 %v2862, %v2854
    %v3511 = vpack.c.b16 %v2863, %v2855
    %v3512 = vpack.c.b16 %v2864, %v2856
    %v3513 = vpack.c.b16 %v2865, %v2857
    %v3514 = vpack.c.b16 %v2866, %v2858
    %v3515 = vpack.c.b16 %v2867, %v2859
    %v3516 = vpack.c.b16 %v2868, %v2860
    %v3517 = vpack.c.b16 %v2869, %v2861
    %v3518 = vpack.c.b16 %v2878, %v2870
    %v3519 = vpack.c.b16 %v2879, %v2871
    %v3520 = vpack.c.b16 %v2880, %v2872
    %v3521 = vpack.c.b16 %v2881, %v2873
    %v3522 = vpack.c.b16 %v2882, %v2874
    %v3523 = vpack.c.b16 %v2883, %v2875
    %v3524 = vpack.c.b16 %v2884, %v2876
    %v3525 = vpack.c.b16 %v2885, %v2877
    %v3526 = vpack.c.b16 %v2894, %v2886
    %v3527 = vpack.c.b16 %v2895, %v2887
    %v3528 = vpack.c.b16 %v2896, %v2888
    %v3529 = vpack.c.b16 %v2897, %v2889
    %v3530 = vpack.c.b16 %v2898, %v2890
    %v3531 = vpack.c.b16 %v2899, %v2891
    %v3532 = vpack.c.b16 %v2900, %v2892
    %v3533 = vpack.c.b16 %v2901, %v2893
    %v3534 = vpack.c.b16 %v2910, %v2902
    %v3535 = vpack.c.b16 %v2911, %v2903
    %v3536 = vpack.c.b16 %v2912, %v2904
    %v3537 = vpack.c.b16 %v2913, %v2905
    %v3538 = vpack.c.b16 %v2914, %v2906
    %v3539 = vpack.c.b16 %v2915, %v2907
    %v3540 = vpack.c.b16 %v2916, %v2908
    %v3541 = vpack.c.b16 %v2917, %v2909
    %v3542 = vpack.c.b16 %v2926, %v2918
    %v3543 = vpack.c.b16 %v2927, %v2919
    %v3544 = vpack.c.b16 %v2928, %v2920
    %v3545 = vpack.c.b16 %v2929, %v2921
    %v3546 = vpack.c.b16 %v2930, %v2922
    %v3547 = vpack.c.b16 %v2931, %v2923
    %v3548 = vpack.c.b16 %v2932, %v2924
    %v3549 = vpack.c.b16 %v2933, %v2925
    %v3550 = vpack.c.b16 %v2942, %v2934
    %v3551 = vpack.c.b16 %v2943, %v2935
    %v3552 = vpack.c.b16 %v2944, %v2936
    %v3553 = vpack.c.b16 %v2945, %v2937
    %v3554 = vpack.c.b16 %v2946, %v2938
    %v3555 = vpack.c.b16 %v2947, %v2939
    %v3556 = vpack.c.b16 %v2948, %v2940
    %v3557 = vpack.c.b16 %v2949, %v2941
    %v3558 = vpack.c.b16 %v2958, %v2950
    %v3559 = vpack.c.b16 %v2959, %v2951
    %v3560 = vpack.c.b16 %v2960, %v2952
    %v3561 = vpack.c.b16 %v2961, %v2953
    %v3562 = vpack.c.b16 %v2962, %v2954
    %v3563 = vpack.c.b16 %v2963, %v2955
    %v3564 = vpack.c.b16 %v2964, %v2956
    %v3565 = vpack.c.b16 %v2965, %v2957
    %v3566 = vpack.c.b16 %v2974, %v2966
    %v3567 = vpack.c.b16 %v2975, %v2967
    %v3568 = vpack.c.b16 %v2976, %v2968
    %v3569 = vpack.c.b16 %v2977, %v2969
    %v3570 = vpack.c.b16 %v2978, %v2970
    %v3571 = vpack.c.b16 %v2979, %v2971
    %v3572 = vpack.c.b16 %v2980, %v2972
    %v3573 = vpack.c.b16 %v2981, %v2973
    %v3574 = vpack.c.b16 %v2990, %v2982
    %v3575 = vpack.c.b16 %v2991, %v2983
    %v3576 = vpack.c.b16 %v2992, %v2984
    %v3577 = vpack.c.b16 %v2993, %v2985
    %v3578 = vpack.c.b16 %v2994, %v2986
    %v3579 = vpack.c.b16 %v2995, %v2987
    %v3580 = vpack.c.b16 %v2996, %v2988
    %v3581 = vpack.c.b16 %v2997, %v2989
    %v3582 = vpack.c.b16 %v3006, %v2998
    %v3583 = vpack.c.b16 %v3007, %v2999
    %v3584 = vpack.c.b16 %v3008, %v3000
    %v3585 = vpack.c.b16 %v3009, %v3001
    %v3586 = vpack.c.b16 %v3010, %v3002
    %v3587 = vpack.c.b16 %v3011, %v3003
    %v3588 = vpack.c.b16 %v3012, %v3004
    %v3589 = vpack.c.b16 %v3013, %v3005
    %v3590 = vpack.c.b16 %v3022, %v3014
    %v3591 = vpack.c.b16 %v3023, %v3015
    %v3592 = vpack.c.b16 %v3024, %v3016
    %v3593 = vpack.c.b16 %v3025, %v3017
    %v3594 = vpack.c.b16 %v3026, %v3018
    %v3595 = vpack.c.b16 %v3027, %v3019
    %v3596 = vpack.c.b16 %v3028, %v3020
    %v3597 = vpack.c.b16 %v3029, %v3021
    %v3598 = vpack.c.b16 %v3038, %v3030
    %v3599 = vpack.c.b16 %v3039, %v3031
    %v3600 = vpack.c.b16 %v3040, %v3032
    %v3601 = vpack.c.b16 %v3041, %v3033
    %v3602 = vpack.c.b16 %v3042, %v3034
    %v3603 = vpack.c.b16 %v3043, %v3035
    %v3604 = vpack.c.b16 %v3044, %v3036
    %v3605 = vpack.c.b16 %v3045, %v3037
    %v3606 = vpack.c.b16 %v3054, %v3046
    %v3607 = vpack.c.b16 %v3055, %v3047
    %v3608 = vpack.c.b16 %v3056, %v3048
    %v3609 = vpack.c.b16 %v3057, %v3049
    %v3610 = vpack.c.b16 %v3058, %v3050
    %v3611 = vpack.c.b16 %v3059, %v3051
    %v3612 = vpack.c.b16 %v3060, %v3052
    %v3613 = vpack.c.b16 %v3061, %v3053
    %v3614 = vpack.c.b16 %v3070, %v3062
    %v3615 = vpack.c.b16 %v3071, %v3063
    %v3616 = vpack.c.b16 %v3072, %v3064
    %v3617 = vpack.c.b16 %v3073, %v3065
    %v3618 = vpack.c.b16 %v3074, %v3066
    %v3619 = vpack.c.b16 %v3075, %v3067
    %v3620 = vpack.c.b16 %v3076, %v3068
    %v3621 = vpack.c.b16 %v3077, %v3069
    %v3622 = vpack.c.b16 %v3086, %v3078
    %v3623 = vpack.c.b16 %v3087, %v3079
    %v3624 = vpack.c.b16 %v3088, %v3080
    %v3625 = vpack.c.b16 %v3089, %v3081
    %v3626 = vpack.c.b16 %v3090, %v3082
    %v3627 = vpack.c.b16 %v3091, %v3083
    %v3628 = vpack.c.b16 %v3092, %v3084
    %v3629 = vpack.c.b16 %v3093, %v3085
    %v3630 = vpack.c.b16 %v3102, %v3094
    %v3631 = vpack.c.b16 %v3103, %v3095
    %v3632 = vpack.c.b16 %v3104, %v3096
    %v3633 = vpack.c.b16 %v3105, %v3097
    %v3634 = vpack.c.b16 %v3106, %v3098
    %v3635 = vpack.c.b16 %v3107, %v3099
    %v3636 = vpack.c.b16 %v3108, %v3100
    %v3637 = vpack.c.b16 %v3109, %v3101
    %v3638 = vpack.c.b16 %v3118, %v3110
    %v3639 = vpack.c.b16 %v3119, %v3111
    %v3640 = vpack.c.b16 %v3120, %v3112
    %v3641 = vpack.c.b16 %v3121, %v3113
    %v3642 = vpack.c.b16 %v3122, %v3114
    %v3643 = vpack.c.b16 %v3123, %v3115
    %v3644 = vpack.c.b16 %v3124, %v3116
    %v3645 = vpack.c.b16 %v3125, %v3117
    %v3646 = vpack.c.b16 %v3134, %v3126
    %v3647 = vpack.c.b16 %v3135, %v3127
    %v3648 = vpack.c.b16 %v3136, %v3128
    %v3649 = vpack.c.b16 %v3137, %v3129
    %v3650 = vpack.c.b16 %v3138, %v3130
    %v3651 = vpack.c.b16 %v3139, %v3131
    %v3652 = vpack.c.b16 %v3140, %v3132
    %v3653 = vpack.c.b16 %v3141, %v3133
    %4166 = vmatprep.subr.bf16.mxu0 %v3143
    %4167 = vmatpush1.bf16.msra.mxu0 %v3142
    %4168 = vmatprep.subr.bf16.mxu0 %v3151
    %4169 = vmatpush1.bf16.msra.mxu0 %v3150
    %4170 = vmatprep.subr.bf16.mxu0 %v3159
    %4171 = vmatpush1.bf16.msra.mxu0 %v3158
    %4172 = vmatprep.subr.bf16.mxu0 %v3167
    %4173 = vmatpush1.bf16.msra.mxu0 %v3166
    %4174 = vmatprep.subr.bf16.mxu0 %v3175
    %4175 = vmatpush1.bf16.msra.mxu0 %v3174
    %4176 = vmatprep.subr.bf16.mxu0 %v3183
    %4177 = vmatpush1.bf16.msra.mxu0 %v3182
    %4178 = vmatprep.subr.bf16.mxu0 %v3191
    %4179 = vmatpush1.bf16.msra.mxu0 %v3190
    %4180 = vmatprep.subr.bf16.mxu0 %v3199
    %4181 = vmatpush1.bf16.msra.mxu0 %v3198
    %4182 = vmatprep.subr.bf16.mxu0 %v3207
    %4183 = vmatpush1.bf16.msra.mxu0 %v3206
    %4184 = vmatprep.subr.bf16.mxu0 %v3215
    %4185 = vmatpush1.bf16.msra.mxu0 %v3214
    %4186 = vmatprep.subr.bf16.mxu0 %v3223
    %4187 = vmatpush1.bf16.msra.mxu0 %v3222
    %4188 = vmatprep.subr.bf16.mxu0 %v3231
    %4189 = vmatpush1.bf16.msra.mxu0 %v3230
    %4190 = vmatprep.subr.bf16.mxu0 %v3239
    %4191 = vmatpush1.bf16.msra.mxu0 %v3238
    %4192 = vmatprep.subr.bf16.mxu0 %v3247
    %4193 = vmatpush1.bf16.msra.mxu0 %v3246
    %4194 = vmatprep.subr.bf16.mxu0 %v3255
    %4195 = vmatpush1.bf16.msra.mxu0 %v3254
    %4196 = vmatprep.subr.bf16.mxu0 %v3263
    %4197 = vmatpush1.bf16.msra.mxu0 %v3262
    %4198 = vmatprep.mubr.bf16.mxu0 %v1087
    %4199 = vmatmul.mubr.bf16.gmra.mrb[0].mxu0 %v1086
    %v4200 = vpop.f32.mrb[0].mxu0
    %v4201 = vadd.f32 0.0, %v4200
    %v4202 = vpop.f32.mrb[0].mxu0
    %v4203 = vadd.f32 0.0, %v4202
    %v4204 = vpop.f32.mrb[0].mxu0
    %v4205 = vpop.f32.mrb[0].mxu0
    %4206 = vdwg.mxu0
    %4207 = vmatprep.subr.bf16.mxu0 %v3271
    %4208 = vmatpush1.bf16.msra.mxu0 %v3270
    %4209 = vmatprep.subr.bf16.mxu0 %v3279
    %4210 = vmatpush1.bf16.msra.mxu0 %v3278
    %4211 = vmatprep.subr.bf16.mxu0 %v3287
    %4212 = vmatpush1.bf16.msra.mxu0 %v3286
    %4213 = vmatprep.subr.bf16.mxu0 %v3295
    %4214 = vmatpush1.bf16.msra.mxu0 %v3294
    %4215 = vmatprep.subr.bf16.mxu0 %v3303
    %4216 = vmatpush1.bf16.msra.mxu0 %v3302
    %4217 = vmatprep.subr.bf16.mxu0 %v3311
    %4218 = vmatpush1.bf16.msra.mxu0 %v3310
    %4219 = vmatprep.subr.bf16.mxu0 %v3319
    %4220 = vmatpush1.bf16.msra.mxu0 %v3318
    %4221 = vmatprep.subr.bf16.mxu0 %v3327
    %4222 = vmatpush1.bf16.msra.mxu0 %v3326
    %4223 = vmatprep.subr.bf16.mxu0 %v3335
    %4224 = vmatpush1.bf16.msra.mxu0 %v3334
    %4225 = vmatprep.subr.bf16.mxu0 %v3343
    %4226 = vmatpush1.bf16.msra.mxu0 %v3342
    %4227 = vmatprep.subr.bf16.mxu0 %v3351
    %4228 = vmatpush1.bf16.msra.mxu0 %v3350
    %4229 = vmatprep.subr.bf16.mxu0 %v3359
    %4230 = vmatpush1.bf16.msra.mxu0 %v3358
    %4231 = vmatprep.subr.bf16.mxu0 %v3367
    %4232 = vmatpush1.bf16.msra.mxu0 %v3366
    %4233 = vmatprep.subr.bf16.mxu0 %v3375
    %4234 = vmatpush1.bf16.msra.mxu0 %v3374
    %4235 = vmatprep.subr.bf16.mxu0 %v3383
    %4236 = vmatpush1.bf16.msra.mxu0 %v3382
    %4237 = vmatprep.subr.bf16.mxu0 %v3391
    %4238 = vmatpush1.bf16.msra.mxu0 %v3390
    %4239 = vmatprep.mubr.bf16.mxu0 %v1089
    %4240 = vmatmul.mubr.bf16.gmra.mrb[0].mxu0 %v1088
    %v4241 = vpop.f32.mrb[0].mxu0
    %v4242 = vadd.f32 %v4201, %v4241
    %v4243 = vpop.f32.mrb[0].mxu0
    %v4244 = vadd.f32 %v4203, %v4243
    %v4245 = vpop.f32.mrb[0].mxu0
    %v4246 = vpop.f32.mrb[0].mxu0
    %4247 = vdwg.mxu0
    %4248 = vmatprep.subr.bf16.mxu0 %v3399
    %4249 = vmatpush1.bf16.msra.mxu0 %v3398
    %4250 = vmatprep.subr.bf16.mxu0 %v3407
    %4251 = vmatpush1.bf16.msra.mxu0 %v3406
    %4252 = vmatprep.subr.bf16.mxu0 %v3415
    %4253 = vmatpush1.bf16.msra.mxu0 %v3414
    %4254 = vmatprep.subr.bf16.mxu0 %v3423
    %4255 = vmatpush1.bf16.msra.mxu0 %v3422
    %4256 = vmatprep.subr.bf16.mxu0 %v3431
    %4257 = vmatpush1.bf16.msra.mxu0 %v3430
    %4258 = vmatprep.subr.bf16.mxu0 %v3439
    %4259 = vmatpush1.bf16.msra.mxu0 %v3438
    %4260 = vmatprep.subr.bf16.mxu0 %v3447
    %4261 = vmatpush1.bf16.msra.mxu0 %v3446
    %4262 = vmatprep.subr.bf16.mxu0 %v3455
    %4263 = vmatpush1.bf16.msra.mxu0 %v3454
    %4264 = vmatprep.subr.bf16.mxu0 %v3463
    %4265 = vmatpush1.bf16.msra.mxu0 %v3462
    %4266 = vmatprep.subr.bf16.mxu0 %v3471
    %4267 = vmatpush1.bf16.msra.mxu0 %v3470
    %4268 = vmatprep.subr.bf16.mxu0 %v3479
    %4269 = vmatpush1.bf16.msra.mxu0 %v3478
    %4270 = vmatprep.subr.bf16.mxu0 %v3487
    %4271 = vmatpush1.bf16.msra.mxu0 %v3486
    %4272 = vmatprep.subr.bf16.mxu0 %v3495
    %4273 = vmatpush1.bf16.msra.mxu0 %v3494
    %4274 = vmatprep.subr.bf16.mxu0 %v3503
    %4275 = vmatpush1.bf16.msra.mxu0 %v3502
    %4276 = vmatprep.subr.bf16.mxu0 %v3511
    %4277 = vmatpush1.bf16.msra.mxu0 %v3510
    %4278 = vmatprep.subr.bf16.mxu0 %v3519
    %4279 = vmatpush1.bf16.msra.mxu0 %v3518
    %4280 = vmatprep.mubr.bf16.mxu0 %v1091
    %4281 = vmatmul.mubr.bf16.gmra.mrb[0].mxu0 %v1090
    %v4282 = vpop.f32.mrb[0].mxu0
    %v4283 = vadd.f32 %v4242, %v4282
    %v4284 = vpop.f32.mrb[0].mxu0
    %v4285 = vadd.f32 %v4244, %v4284
    %v4286 = vpop.f32.mrb[0].mxu0
    %v4287 = vpop.f32.mrb[0].mxu0
    %4288 = vdwg.mxu0
    %4289 = vmatprep.subr.bf16.mxu0 %v3527
    %4290 = vmatpush1.bf16.msra.mxu0 %v3526
    %4291 = vmatprep.subr.bf16.mxu0 %v3535
    %4292 = vmatpush1.bf16.msra.mxu0 %v3534
    %4293 = vmatprep.subr.bf16.mxu0 %v3543
    %4294 = vmatpush1.bf16.msra.mxu0 %v3542
    %4295 = vmatprep.subr.bf16.mxu0 %v3551
    %4296 = vmatpush1.bf16.msra.mxu0 %v3550
    %4297 = vmatprep.subr.bf16.mxu0 %v3559
    %4298 = vmatpush1.bf16.msra.mxu0 %v3558
    %4299 = vmatprep.subr.bf16.mxu0 %v3567
    %4300 = vmatpush1.bf16.msra.mxu0 %v3566
    %4301 = vmatprep.subr.bf16.mxu0 %v3575
    %4302 = vmatpush1.bf16.msra.mxu0 %v3574
    %4303 = vmatprep.subr.bf16.mxu0 %v3583
    %4304 = vmatpush1.bf16.msra.mxu0 %v3582
    %4305 = vmatprep.subr.bf16.mxu0 %v3591
    %4306 = vmatpush1.bf16.msra.mxu0 %v3590
    %4307 = vmatprep.subr.bf16.mxu0 %v3599
    %4308 = vmatpush1.bf16.msra.mxu0 %v3598
    %4309 = vmatprep.subr.bf16.mxu0 %v3607
    %4310 = vmatpush1.bf16.msra.mxu0 %v3606
    %4311 = vmatprep.subr.bf16.mxu0 %v3615
    %4312 = vmatpush1.bf16.msra.mxu0 %v3614
    %4313 = vmatprep.subr.bf16.mxu0 %v3623
    %4314 = vmatpush1.bf16.msra.mxu0 %v3622
    %4315 = vmatprep.subr.bf16.mxu0 %v3631
    %4316 = vmatpush1.bf16.msra.mxu0 %v3630
    %4317 = vmatprep.subr.bf16.mxu0 %v3639
    %4318 = vmatpush1.bf16.msra.mxu0 %v3638
    %4319 = vmatprep.subr.bf16.mxu0 %v3647
    %4320 = vmatpush1.bf16.msra.mxu0 %v3646
    %4321 = vmatprep.mubr.bf16.mxu0 %v1093
    %4322 = vmatmul.mubr.bf16.gmra.mrb[0].mxu0 %v1092
    %v4323 = vpop.f32.mrb[0].mxu0
    %v4324 = vadd.f32 %v4283, %v4323
    %v4325 = vpop.f32.mrb[0].mxu0
    %v4326 = vadd.f32 %v4285, %v4325
    %v4327 = vpop.f32.mrb[0].mxu0
    %v4328 = vpop.f32.mrb[0].mxu0
    %4329 = vdwg.mxu0
    %4330 = vmatprep.subr.bf16.mxu0 %v3145
    %4331 = vmatpush1.bf16.msra.mxu0 %v3144
    %4332 = vmatprep.subr.bf16.mxu0 %v3153
    %4333 = vmatpush1.bf16.msra.mxu0 %v3152
    %4334 = vmatprep.subr.bf16.mxu0 %v3161
    %4335 = vmatpush1.bf16.msra.mxu0 %v3160
    %4336 = vmatprep.subr.bf16.mxu0 %v3169
    %4337 = vmatpush1.bf16.msra.mxu0 %v3168
    %4338 = vmatprep.subr.bf16.mxu0 %v3177
    %4339 = vmatpush1.bf16.msra.mxu0 %v3176
    %4340 = vmatprep.subr.bf16.mxu0 %v3185
    %4341 = vmatpush1.bf16.msra.mxu0 %v3184
    %4342 = vmatprep.subr.bf16.mxu0 %v3193
    %4343 = vmatpush1.bf16.msra.mxu0 %v3192
    %4344 = vmatprep.subr.bf16.mxu0 %v3201
    %4345 = vmatpush1.bf16.msra.mxu0 %v3200
    %4346 = vmatprep.subr.bf16.mxu0 %v3209
    %4347 = vmatpush1.bf16.msra.mxu0 %v3208
    %4348 = vmatprep.subr.bf16.mxu0 %v3217
    %4349 = vmatpush1.bf16.msra.mxu0 %v3216
    %4350 = vmatprep.subr.bf16.mxu0 %v3225
    %4351 = vmatpush1.bf16.msra.mxu0 %v3224
    %4352 = vmatprep.subr.bf16.mxu0 %v3233
    %4353 = vmatpush1.bf16.msra.mxu0 %v3232
    %4354 = vmatprep.subr.bf16.mxu0 %v3241
    %4355 = vmatpush1.bf16.msra.mxu0 %v3240
    %4356 = vmatprep.subr.bf16.mxu0 %v3249
    %4357 = vmatpush1.bf16.msra.mxu0 %v3248
    %4358 = vmatprep.subr.bf16.mxu0 %v3257
    %4359 = vmatpush1.bf16.msra.mxu0 %v3256
    %4360 = vmatprep.subr.bf16.mxu0 %v3265
    %4361 = vmatpush1.bf16.msra.mxu0 %v3264
    %4362 = vmatprep.mubr.bf16.mxu0 %v1087
    %4363 = vmatmul.mubr.bf16.gmra.mrb[0].mxu0 %v1086
    %v4364 = vpop.f32.mrb[0].mxu0
    %v4365 = vadd.f32 0.0, %v4364
    %v4366 = vpop.f32.mrb[0].mxu0
    %v4367 = vadd.f32 0.0, %v4366
    %v4368 = vpop.f32.mrb[0].mxu0
    %v4369 = vpop.f32.mrb[0].mxu0
    %4370 = vdwg.mxu0
    %4371 = vmatprep.subr.bf16.mxu0 %v3273
    %4372 = vmatpush1.bf16.msra.mxu0 %v3272
    %4373 = vmatprep.subr.bf16.mxu0 %v3281
    %4374 = vmatpush1.bf16.msra.mxu0 %v3280
    %4375 = vmatprep.subr.bf16.mxu0 %v3289
    %4376 = vmatpush1.bf16.msra.mxu0 %v3288
    %4377 = vmatprep.subr.bf16.mxu0 %v3297
    %4378 = vmatpush1.bf16.msra.mxu0 %v3296
    %4379 = vmatprep.subr.bf16.mxu0 %v3305
    %4380 = vmatpush1.bf16.msra.mxu0 %v3304
    %4381 = vmatprep.subr.bf16.mxu0 %v3313
    %4382 = vmatpush1.bf16.msra.mxu0 %v3312
    %4383 = vmatprep.subr.bf16.mxu0 %v3321
    %4384 = vmatpush1.bf16.msra.mxu0 %v3320
    %4385 = vmatprep.subr.bf16.mxu0 %v3329
    %4386 = vmatpush1.bf16.msra.mxu0 %v3328
    %4387 = vmatprep.subr.bf16.mxu0 %v3337
    %4388 = vmatpush1.bf16.msra.mxu0 %v3336
    %4389 = vmatprep.subr.bf16.mxu0 %v3345
    %4390 = vmatpush1.bf16.msra.mxu0 %v3344
    %4391 = vmatprep.subr.bf16.mxu0 %v3353
    %4392 = vmatpush1.bf16.msra.mxu0 %v3352
    %4393 = vmatprep.subr.bf16.mxu0 %v3361
    %4394 = vmatpush1.bf16.msra.mxu0 %v3360
    %4395 = vmatprep.subr.bf16.mxu0 %v3369
    %4396 = vmatpush1.bf16.msra.mxu0 %v3368
    %4397 = vmatprep.subr.bf16.mxu0 %v3377
    %4398 = vmatpush1.bf16.msra.mxu0 %v3376
    %4399 = vmatprep.subr.bf16.mxu0 %v3385
    %4400 = vmatpush1.bf16.msra.mxu0 %v3384
    %4401 = vmatprep.subr.bf16.mxu0 %v3393
    %4402 = vmatpush1.bf16.msra.mxu0 %v3392
    %4403 = vmatprep.mubr.bf16.mxu0 %v1089
    %4404 = vmatmul.mubr.bf16.gmra.mrb[0].mxu0 %v1088
    %v4405 = vpop.f32.mrb[0].mxu0
    %v4406 = vadd.f32 %v4365, %v4405
    %v4407 = vpop.f32.mrb[0].mxu0
    %v4408 = vadd.f32 %v4367, %v4407
    %v4409 = vpop.f32.mrb[0].mxu0
    %v4410 = vpop.f32.mrb[0].mxu0
    %4411 = vdwg.mxu0
    %4412 = vmatprep.subr.bf16.mxu0 %v3401
    %4413 = vmatpush1.bf16.msra.mxu0 %v3400
    %4414 = vmatprep.subr.bf16.mxu0 %v3409
    %4415 = vmatpush1.bf16.msra.mxu0 %v3408
    %4416 = vmatprep.subr.bf16.mxu0 %v3417
    %4417 = vmatpush1.bf16.msra.mxu0 %v3416
    %4418 = vmatprep.subr.bf16.mxu0 %v3425
    %4419 = vmatpush1.bf16.msra.mxu0 %v3424
    %4420 = vmatprep.subr.bf16.mxu0 %v3433
    %4421 = vmatpush1.bf16.msra.mxu0 %v3432
    %4422 = vmatprep.subr.bf16.mxu0 %v3441
    %4423 = vmatpush1.bf16.msra.mxu0 %v3440
    %4424 = vmatprep.subr.bf16.mxu0 %v3449
    %4425 = vmatpush1.bf16.msra.mxu0 %v3448
    %4426 = vmatprep.subr.bf16.mxu0 %v3457
    %4427 = vmatpush1.bf16.msra.mxu0 %v3456
    %4428 = vmatprep.subr.bf16.mxu0 %v3465
    %4429 = vmatpush1.bf16.msra.mxu0 %v3464
    %4430 = vmatprep.subr.bf16.mxu0 %v3473
    %4431 = vmatpush1.bf16.msra.mxu0 %v3472
    %4432 = vmatprep.subr.bf16.mxu0 %v3481
    %4433 = vmatpush1.bf16.msra.mxu0 %v3480
    %4434 = vmatprep.subr.bf16.mxu0 %v3489
    %4435 = vmatpush1.bf16.msra.mxu0 %v3488
    %4436 = vmatprep.subr.bf16.mxu0 %v3497
    %4437 = vmatpush1.bf16.msra.mxu0 %v3496
    %4438 = vmatprep.subr.bf16.mxu0 %v3505
    %4439 = vmatpush1.bf16.msra.mxu0 %v3504
    %4440 = vmatprep.subr.bf16.mxu0 %v3513
    %4441 = vmatpush1.bf16.msra.mxu0 %v3512
    %4442 = vmatprep.subr.bf16.mxu0 %v3521
    %4443 = vmatpush1.bf16.msra.mxu0 %v3520
    %4444 = vmatprep.mubr.bf16.mxu0 %v1091
    %4445 = vmatmul.mubr.bf16.gmra.mrb[0].mxu0 %v1090
    %v4446 = vpop.f32.mrb[0].mxu0
    %v4447 = vadd.f32 %v4406, %v4446
    %v4448 = vpop.f32.mrb[0].mxu0
    %v4449 = vadd.f32 %v4408, %v4448
    %v4450 = vpop.f32.mrb[0].mxu0
    %v4451 = vpop.f32.mrb[0].mxu0
    %4452 = vdwg.mxu0
    %4453 = vmatprep.subr.bf16.mxu0 %v3529
    %4454 = vmatpush1.bf16.msra.mxu0 %v3528
    %4455 = vmatprep.subr.bf16.mxu0 %v3537
    %4456 = vmatpush1.bf16.msra.mxu0 %v3536
    %4457 = vmatprep.subr.bf16.mxu0 %v3545
    %4458 = vmatpush1.bf16.msra.mxu0 %v3544
    %4459 = vmatprep.subr.bf16.mxu0 %v3553
    %4460 = vmatpush1.bf16.msra.mxu0 %v3552
    %4461 = vmatprep.subr.bf16.mxu0 %v3561
    %4462 = vmatpush1.bf16.msra.mxu0 %v3560
    %4463 = vmatprep.subr.bf16.mxu0 %v3569
    %4464 = vmatpush1.bf16.msra.mxu0 %v3568
    %4465 = vmatprep.subr.bf16.mxu0 %v3577
    %4466 = vmatpush1.bf16.msra.mxu0 %v3576
    %4467 = vmatprep.subr.bf16.mxu0 %v3585
    %4468 = vmatpush1.bf16.msra.mxu0 %v3584
    %4469 = vmatprep.subr.bf16.mxu0 %v3593
    %4470 = vmatpush1.bf16.msra.mxu0 %v3592
    %4471 = vmatprep.subr.bf16.mxu0 %v3601
    %4472 = vmatpush1.bf16.msra.mxu0 %v3600
    %4473 = vmatprep.subr.bf16.mxu0 %v3609
    %4474 = vmatpush1.bf16.msra.mxu0 %v3608
    %4475 = vmatprep.subr.bf16.mxu0 %v3617
    %4476 = vmatpush1.bf16.msra.mxu0 %v3616
    %4477 = vmatprep.subr.bf16.mxu0 %v3625
    %4478 = vmatpush1.bf16.msra.mxu0 %v3624
    %4479 = vmatprep.subr.bf16.mxu0 %v3633
    %4480 = vmatpush1.bf16.msra.mxu0 %v3632
    %4481 = vmatprep.subr.bf16.mxu0 %v3641
    %4482 = vmatpush1.bf16.msra.mxu0 %v3640
    %4483 = vmatprep.subr.bf16.mxu0 %v3649
    %4484 = vmatpush1.bf16.msra.mxu0 %v3648
    %4485 = vmatprep.mubr.bf16.mxu0 %v1093
    %4486 = vmatmul.mubr.bf16.gmra.mrb[0].mxu0 %v1092
    %v4487 = vpop.f32.mrb[0].mxu0
    %v4488 = vadd.f32 %v4447, %v4487
    %v4489 = vpop.f32.mrb[0].mxu0
    %v4490 = vadd.f32 %v4449, %v4489
    %v4491 = vpop.f32.mrb[0].mxu0
    %v4492 = vpop.f32.mrb[0].mxu0
    %4493 = vdwg.mxu0
    %4494 = vmatprep.subr.bf16.mxu0 %v3147
    %4495 = vmatpush1.bf16.msra.mxu0 %v3146
    %4496 = vmatprep.subr.bf16.mxu0 %v3155
    %4497 = vmatpush1.bf16.msra.mxu0 %v3154
    %4498 = vmatprep.subr.bf16.mxu0 %v3163
    %4499 = vmatpush1.bf16.msra.mxu0 %v3162
    %4500 = vmatprep.subr.bf16.mxu0 %v3171
    %4501 = vmatpush1.bf16.msra.mxu0 %v3170
    %4502 = vmatprep.subr.bf16.mxu0 %v3179
    %4503 = vmatpush1.bf16.msra.mxu0 %v3178
    %4504 = vmatprep.subr.bf16.mxu0 %v3187
    %4505 = vmatpush1.bf16.msra.mxu0 %v3186
    %4506 = vmatprep.subr.bf16.mxu0 %v3195
    %4507 = vmatpush1.bf16.msra.mxu0 %v3194
    %4508 = vmatprep.subr.bf16.mxu0 %v3203
    %4509 = vmatpush1.bf16.msra.mxu0 %v3202
    %4510 = vmatprep.subr.bf16.mxu0 %v3211
    %4511 = vmatpush1.bf16.msra.mxu0 %v3210
    %4512 = vmatprep.subr.bf16.mxu0 %v3219
    %4513 = vmatpush1.bf16.msra.mxu0 %v3218
    %4514 = vmatprep.subr.bf16.mxu0 %v3227
    %4515 = vmatpush1.bf16.msra.mxu0 %v3226
    %4516 = vmatprep.subr.bf16.mxu0 %v3235
    %4517 = vmatpush1.bf16.msra.mxu0 %v3234
    %4518 = vmatprep.subr.bf16.mxu0 %v3243
    %4519 = vmatpush1.bf16.msra.mxu0 %v3242
    %4520 = vmatprep.subr.bf16.mxu0 %v3251
    %4521 = vmatpush1.bf16.msra.mxu0 %v3250
    %4522 = vmatprep.subr.bf16.mxu0 %v3259
    %4523 = vmatpush1.bf16.msra.mxu0 %v3258
    %4524 = vmatprep.subr.bf16.mxu0 %v3267
    %4525 = vmatpush1.bf16.msra.mxu0 %v3266
    %4526 = vmatprep.mubr.bf16.mxu0 %v1087
    %4527 = vmatmul.mubr.bf16.gmra.mrb[0].mxu0 %v1086
    %v4528 = vpop.f32.mrb[0].mxu0
    %v4529 = vadd.f32 0.0, %v4528
    %v4530 = vpop.f32.mrb[0].mxu0
    %v4531 = vadd.f32 0.0, %v4530
    %v4532 = vpop.f32.mrb[0].mxu0
    %v4533 = vpop.f32.mrb[0].mxu0
    %4534 = vdwg.mxu0
    %4535 = vmatprep.subr.bf16.mxu0 %v3275
    %4536 = vmatpush1.bf16.msra.mxu0 %v3274
    %4537 = vmatprep.subr.bf16.mxu0 %v3283
    %4538 = vmatpush1.bf16.msra.mxu0 %v3282
    %4539 = vmatprep.subr.bf16.mxu0 %v3291
    %4540 = vmatpush1.bf16.msra.mxu0 %v3290
    %4541 = vmatprep.subr.bf16.mxu0 %v3299
    %4542 = vmatpush1.bf16.msra.mxu0 %v3298
    %4543 = vmatprep.subr.bf16.mxu0 %v3307
    %4544 = vmatpush1.bf16.msra.mxu0 %v3306
    %4545 = vmatprep.subr.bf16.mxu0 %v3315
    %4546 = vmatpush1.bf16.msra.mxu0 %v3314
    %4547 = vmatprep.subr.bf16.mxu0 %v3323
    %4548 = vmatpush1.bf16.msra.mxu0 %v3322
    %4549 = vmatprep.subr.bf16.mxu0 %v3331
    %4550 = vmatpush1.bf16.msra.mxu0 %v3330
    %4551 = vmatprep.subr.bf16.mxu0 %v3339
    %4552 = vmatpush1.bf16.msra.mxu0 %v3338
    %4553 = vmatprep.subr.bf16.mxu0 %v3347
    %4554 = vmatpush1.bf16.msra.mxu0 %v3346
    %4555 = vmatprep.subr.bf16.mxu0 %v3355
    %4556 = vmatpush1.bf16.msra.mxu0 %v3354
    %4557 = vmatprep.subr.bf16.mxu0 %v3363
    %4558 = vmatpush1.bf16.msra.mxu0 %v3362
    %4559 = vmatprep.subr.bf16.mxu0 %v3371
    %4560 = vmatpush1.bf16.msra.mxu0 %v3370
    %4561 = vmatprep.subr.bf16.mxu0 %v3379
    %4562 = vmatpush1.bf16.msra.mxu0 %v3378
    %4563 = vmatprep.subr.bf16.mxu0 %v3387
    %4564 = vmatpush1.bf16.msra.mxu0 %v3386
    %4565 = vmatprep.subr.bf16.mxu0 %v3395
    %4566 = vmatpush1.bf16.msra.mxu0 %v3394
    %4567 = vmatprep.mubr.bf16.mxu0 %v1089
    %4568 = vmatmul.mubr.bf16.gmra.mrb[0].mxu0 %v1088
    %v4569 = vpop.f32.mrb[0].mxu0
    %v4570 = vadd.f32 %v4529, %v4569
    %v4571 = vpop.f32.mrb[0].mxu0
    %v4572 = vadd.f32 %v4531, %v4571
    %v4573 = vpop.f32.mrb[0].mxu0
    %v4574 = vpop.f32.mrb[0].mxu0
    %4575 = vdwg.mxu0
    %4576 = vmatprep.subr.bf16.mxu0 %v3403
    %4577 = vmatpush1.bf16.msra.mxu0 %v3402
    %4578 = vmatprep.subr.bf16.mxu0 %v3411
    %4579 = vmatpush1.bf16.msra.mxu0 %v3410
    %4580 = vmatprep.subr.bf16.mxu0 %v3419
    %4581 = vmatpush1.bf16.msra.mxu0 %v3418
    %4582 = vmatprep.subr.bf16.mxu0 %v3427
    %4583 = vmatpush1.bf16.msra.mxu0 %v3426
    %4584 = vmatprep.subr.bf16.mxu0 %v3435
    %4585 = vmatpush1.bf16.msra.mxu0 %v3434
    %4586 = vmatprep.subr.bf16.mxu0 %v3443
    %4587 = vmatpush1.bf16.msra.mxu0 %v3442
    %4588 = vmatprep.subr.bf16.mxu0 %v3451
    %4589 = vmatpush1.bf16.msra.mxu0 %v3450
    %4590 = vmatprep.subr.bf16.mxu0 %v3459
    %4591 = vmatpush1.bf16.msra.mxu0 %v3458
    %4592 = vmatprep.subr.bf16.mxu0 %v3467
    %4593 = vmatpush1.bf16.msra.mxu0 %v3466
    %4594 = vmatprep.subr.bf16.mxu0 %v3475
    %4595 = vmatpush1.bf16.msra.mxu0 %v3474
    %4596 = vmatprep.subr.bf16.mxu0 %v3483
    %4597 = vmatpush1.bf16.msra.mxu0 %v3482
    %4598 = vmatprep.subr.bf16.mxu0 %v3491
    %4599 = vmatpush1.bf16.msra.mxu0 %v3490
    %4600 = vmatprep.subr.bf16.mxu0 %v3499
    %4601 = vmatpush1.bf16.msra.mxu0 %v3498
    %4602 = vmatprep.subr.bf16.mxu0 %v3507
    %4603 = vmatpush1.bf16.msra.mxu0 %v3506
    %4604 = vmatprep.subr.bf16.mxu0 %v3515
    %4605 = vmatpush1.bf16.msra.mxu0 %v3514
    %4606 = vmatprep.subr.bf16.mxu0 %v3523
    %4607 = vmatpush1.bf16.msra.mxu0 %v3522
    %4608 = vmatprep.mubr.bf16.mxu0 %v1091
    %4609 = vmatmul.mubr.bf16.gmra.mrb[0].mxu0 %v1090
    %v4610 = vpop.f32.mrb[0].mxu0
    %v4611 = vadd.f32 %v4570, %v4610
    %v4612 = vpop.f32.mrb[0].mxu0
    %v4613 = vadd.f32 %v4572, %v4612
    %v4614 = vpop.f32.mrb[0].mxu0
    %v4615 = vpop.f32.mrb[0].mxu0
    %4616 = vdwg.mxu0
    %4617 = vmatprep.subr.bf16.mxu0 %v3531
    %4618 = vmatpush1.bf16.msra.mxu0 %v3530
    %4619 = vmatprep.subr.bf16.mxu0 %v3539
    %4620 = vmatpush1.bf16.msra.mxu0 %v3538
    %4621 = vmatprep.subr.bf16.mxu0 %v3547
    %4622 = vmatpush1.bf16.msra.mxu0 %v3546
    %4623 = vmatprep.subr.bf16.mxu0 %v3555
    %4624 = vmatpush1.bf16.msra.mxu0 %v3554
    %4625 = vmatprep.subr.bf16.mxu0 %v3563
    %4626 = vmatpush1.bf16.msra.mxu0 %v3562
    %4627 = vmatprep.subr.bf16.mxu0 %v3571
    %4628 = vmatpush1.bf16.msra.mxu0 %v3570
    %4629 = vmatprep.subr.bf16.mxu0 %v3579
    %4630 = vmatpush1.bf16.msra.mxu0 %v3578
    %4631 = vmatprep.subr.bf16.mxu0 %v3587
    %4632 = vmatpush1.bf16.msra.mxu0 %v3586
    %4633 = vmatprep.subr.bf16.mxu0 %v3595
    %4634 = vmatpush1.bf16.msra.mxu0 %v3594
    %4635 = vmatprep.subr.bf16.mxu0 %v3603
    %4636 = vmatpush1.bf16.msra.mxu0 %v3602
    %4637 = vmatprep.subr.bf16.mxu0 %v3611
    %4638 = vmatpush1.bf16.msra.mxu0 %v3610
    %4639 = vmatprep.subr.bf16.mxu0 %v3619
    %4640 = vmatpush1.bf16.msra.mxu0 %v3618
    %4641 = vmatprep.subr.bf16.mxu0 %v3627
    %4642 = vmatpush1.bf16.msra.mxu0 %v3626
    %4643 = vmatprep.subr.bf16.mxu0 %v3635
    %4644 = vmatpush1.bf16.msra.mxu0 %v3634
    %4645 = vmatprep.subr.bf16.mxu0 %v3643
    %4646 = vmatpush1.bf16.msra.mxu0 %v3642
    %4647 = vmatprep.subr.bf16.mxu0 %v3651
    %4648 = vmatpush1.bf16.msra.mxu0 %v3650
    %4649 = vmatprep.mubr.bf16.mxu0 %v1093
    %4650 = vmatmul.mubr.bf16.gmra.mrb[0].mxu0 %v1092
    %v4651 = vpop.f32.mrb[0].mxu0
    %v4652 = vadd.f32 %v4611, %v4651
    %v4653 = vpop.f32.mrb[0].mxu0
    %v4654 = vadd.f32 %v4613, %v4653
    %v4655 = vpop.f32.mrb[0].mxu0
    %v4656 = vpop.f32.mrb[0].mxu0
    %4657 = vdwg.mxu0
    %4658 = vmatprep.subr.bf16.mxu0 %v3149
    %4659 = vmatpush1.bf16.msra.mxu0 %v3148
    %4660 = vmatprep.subr.bf16.mxu0 %v3157
    %4661 = vmatpush1.bf16.msra.mxu0 %v3156
    %4662 = vmatprep.subr.bf16.mxu0 %v3165
    %4663 = vmatpush1.bf16.msra.mxu0 %v3164
    %4664 = vmatprep.subr.bf16.mxu0 %v3173
    %4665 = vmatpush1.bf16.msra.mxu0 %v3172
    %4666 = vmatprep.subr.bf16.mxu0 %v3181
    %4667 = vmatpush1.bf16.msra.mxu0 %v3180
    %4668 = vmatprep.subr.bf16.mxu0 %v3189
    %4669 = vmatpush1.bf16.msra.mxu0 %v3188
    %4670 = vmatprep.subr.bf16.mxu0 %v3197
    %4671 = vmatpush1.bf16.msra.mxu0 %v3196
    %4672 = vmatprep.subr.bf16.mxu0 %v3205
    %4673 = vmatpush1.bf16.msra.mxu0 %v3204
    %4674 = vmatprep.subr.bf16.mxu0 %v3213
    %4675 = vmatpush1.bf16.msra.mxu0 %v3212
    %4676 = vmatprep.subr.bf16.mxu0 %v3221
    %4677 = vmatpush1.bf16.msra.mxu0 %v3220
    %4678 = vmatprep.subr.bf16.mxu0 %v3229
    %4679 = vmatpush1.bf16.msra.mxu0 %v3228
    %4680 = vmatprep.subr.bf16.mxu0 %v3237
    %4681 = vmatpush1.bf16.msra.mxu0 %v3236
    %4682 = vmatprep.subr.bf16.mxu0 %v3245
    %4683 = vmatpush1.bf16.msra.mxu0 %v3244
    %4684 = vmatprep.subr.bf16.mxu0 %v3253
    %4685 = vmatpush1.bf16.msra.mxu0 %v3252
    %4686 = vmatprep.subr.bf16.mxu0 %v3261
    %4687 = vmatpush1.bf16.msra.mxu0 %v3260
    %4688 = vmatprep.subr.bf16.mxu0 %v3269
    %4689 = vmatpush1.bf16.msra.mxu0 %v3268
    %4690 = vmatprep.mubr.bf16.mxu0 %v1087
    %4691 = vmatmul.mubr.bf16.gmra.mrb[0].mxu0 %v1086
    %v4692 = vpop.f32.mrb[0].mxu0
    %v4693 = vadd.f32 0.0, %v4692
    %v4694 = vpop.f32.mrb[0].mxu0
    %v4695 = vadd.f32 0.0, %v4694
    %v4696 = vpop.f32.mrb[0].mxu0
    %v4697 = vpop.f32.mrb[0].mxu0
    %4698 = vdwg.mxu0
    %4699 = vmatprep.subr.bf16.mxu0 %v3277
    %4700 = vmatpush1.bf16.msra.mxu0 %v3276
    %4701 = vmatprep.subr.bf16.mxu0 %v3285
    %4702 = vmatpush1.bf16.msra.mxu0 %v3284
    %4703 = vmatprep.subr.bf16.mxu0 %v3293
    %4704 = vmatpush1.bf16.msra.mxu0 %v3292
    %4705 = vmatprep.subr.bf16.mxu0 %v3301
    %4706 = vmatpush1.bf16.msra.mxu0 %v3300
    %4707 = vmatprep.subr.bf16.mxu0 %v3309
    %4708 = vmatpush1.bf16.msra.mxu0 %v3308
    %4709 = vmatprep.subr.bf16.mxu0 %v3317
    %4710 = vmatpush1.bf16.msra.mxu0 %v3316
    %4711 = vmatprep.subr.bf16.mxu0 %v3325
    %4712 = vmatpush1.bf16.msra.mxu0 %v3324
    %4713 = vmatprep.subr.bf16.mxu0 %v3333
    %4714 = vmatpush1.bf16.msra.mxu0 %v3332
    %4715 = vmatprep.subr.bf16.mxu0 %v3341
    %4716 = vmatpush1.bf16.msra.mxu0 %v3340
    %4717 = vmatprep.subr.bf16.mxu0 %v3349
    %4718 = vmatpush1.bf16.msra.mxu0 %v3348
    %4719 = vmatprep.subr.bf16.mxu0 %v3357
    %4720 = vmatpush1.bf16.msra.mxu0 %v3356
    %4721 = vmatprep.subr.bf16.mxu0 %v3365
    %4722 = vmatpush1.bf16.msra.mxu0 %v3364
    %4723 = vmatprep.subr.bf16.mxu0 %v3373
    %4724 = vmatpush1.bf16.msra.mxu0 %v3372
    %4725 = vmatprep.subr.bf16.mxu0 %v3381
    %4726 = vmatpush1.bf16.msra.mxu0 %v3380
    %4727 = vmatprep.subr.bf16.mxu0 %v3389
    %4728 = vmatpush1.bf16.msra.mxu0 %v3388
    %4729 = vmatprep.subr.bf16.mxu0 %v3397
    %4730 = vmatpush1.bf16.msra.mxu0 %v3396
    %4731 = vmatprep.mubr.bf16.mxu0 %v1089
    %4732 = vmatmul.mubr.bf16.gmra.mrb[0].mxu0 %v1088
    %v4733 = vpop.f32.mrb[0].mxu0
    %v4734 = vadd.f32 %v4693, %v4733
    %v4735 = vpop.f32.mrb[0].mxu0
    %v4736 = vadd.f32 %v4695, %v4735
    %v4737 = vpop.f32.mrb[0].mxu0
    %v4738 = vpop.f32.mrb[0].mxu0
    %4739 = vdwg.mxu0
    %4740 = vmatprep.subr.bf16.mxu0 %v3405
    %4741 = vmatpush1.bf16.msra.mxu0 %v3404
    %4742 = vmatprep.subr.bf16.mxu0 %v3413
    %4743 = vmatpush1.bf16.msra.mxu0 %v3412
    %4744 = vmatprep.subr.bf16.mxu0 %v3421
    %4745 = vmatpush1.bf16.msra.mxu0 %v3420
    %4746 = vmatprep.subr.bf16.mxu0 %v3429
    %4747 = vmatpush1.bf16.msra.mxu0 %v3428
    %4748 = vmatprep.subr.bf16.mxu0 %v3437
    %4749 = vmatpush1.bf16.msra.mxu0 %v3436
    %4750 = vmatprep.subr.bf16.mxu0 %v3445
    %4751 = vmatpush1.bf16.msra.mxu0 %v3444
    %4752 = vmatprep.subr.bf16.mxu0 %v3453
    %4753 = vmatpush1.bf16.msra.mxu0 %v3452
    %4754 = vmatprep.subr.bf16.mxu0 %v3461
    %4755 = vmatpush1.bf16.msra.mxu0 %v3460
    %4756 = vmatprep.subr.bf16.mxu0 %v3469
    %4757 = vmatpush1.bf16.msra.mxu0 %v3468
    %4758 = vmatprep.subr.bf16.mxu0 %v3477
    %4759 = vmatpush1.bf16.msra.mxu0 %v3476
    %4760 = vmatprep.subr.bf16.mxu0 %v3485
    %4761 = vmatpush1.bf16.msra.mxu0 %v3484
    %4762 = vmatprep.subr.bf16.mxu0 %v3493
    %4763 = vmatpush1.bf16.msra.mxu0 %v3492
    %4764 = vmatprep.subr.bf16.mxu0 %v3501
    %4765 = vmatpush1.bf16.msra.mxu0 %v3500
    %4766 = vmatprep.subr.bf16.mxu0 %v3509
    %4767 = vmatpush1.bf16.msra.mxu0 %v3508
    %4768 = vmatprep.subr.bf16.mxu0 %v3517
    %4769 = vmatpush1.bf16.msra.mxu0 %v3516
    %4770 = vmatprep.subr.bf16.mxu0 %v3525
    %4771 = vmatpush1.bf16.msra.mxu0 %v3524
    %4772 = vmatprep.mubr.bf16.mxu0 %v1091
    %4773 = vmatmul.mubr.bf16.gmra.mrb[0].mxu0 %v1090
    %v4774 = vpop.f32.mrb[0].mxu0
    %v4775 = vadd.f32 %v4734, %v4774
    %v4776 = vpop.f32.mrb[0].mxu0
    %v4777 = vadd.f32 %v4736, %v4776
    %v4778 = vpop.f32.mrb[0].mxu0
    %v4779 = vpop.f32.mrb[0].mxu0
    %4780 = vdwg.mxu0
    %4781 = vmatprep.subr.bf16.mxu0 %v3533
    %4782 = vmatpush1.bf16.msra.mxu0 %v3532
    %4783 = vmatprep.subr.bf16.mxu0 %v3541
    %4784 = vmatpush1.bf16.msra.mxu0 %v3540
    %4785 = vmatprep.subr.bf16.mxu0 %v3549
    %4786 = vmatpush1.bf16.msra.mxu0 %v3548
    %4787 = vmatprep.subr.bf16.mxu0 %v3557
    %4788 = vmatpush1.bf16.msra.mxu0 %v3556
    %4789 = vmatprep.subr.bf16.mxu0 %v3565
    %4790 = vmatpush1.bf16.msra.mxu0 %v3564
    %4791 = vmatprep.subr.bf16.mxu0 %v3573
    %4792 = vmatpush1.bf16.msra.mxu0 %v3572
    %4793 = vmatprep.subr.bf16.mxu0 %v3581
    %4794 = vmatpush1.bf16.msra.mxu0 %v3580
    %4795 = vmatprep.subr.bf16.mxu0 %v3589
    %4796 = vmatpush1.bf16.msra.mxu0 %v3588
    %4797 = vmatprep.subr.bf16.mxu0 %v3597
    %4798 = vmatpush1.bf16.msra.mxu0 %v3596
    %4799 = vmatprep.subr.bf16.mxu0 %v3605
    %4800 = vmatpush1.bf16.msra.mxu0 %v3604
    %4801 = vmatprep.subr.bf16.mxu0 %v3613
    %4802 = vmatpush1.bf16.msra.mxu0 %v3612
    %4803 = vmatprep.subr.bf16.mxu0 %v3621
    %4804 = vmatpush1.bf16.msra.mxu0 %v3620
    %4805 = vmatprep.subr.bf16.mxu0 %v3629
    %4806 = vmatpush1.bf16.msra.mxu0 %v3628
    %4807 = vmatprep.subr.bf16.mxu0 %v3637
    %4808 = vmatpush1.bf16.msra.mxu0 %v3636
    %4809 = vmatprep.subr.bf16.mxu0 %v3645
    %4810 = vmatpush1.bf16.msra.mxu0 %v3644
    %4811 = vmatprep.subr.bf16.mxu0 %v3653
    %4812 = vmatpush1.bf16.msra.mxu0 %v3652
    %4813 = vmatprep.mubr.bf16.mxu0 %v1093
    %4814 = vmatmul.mubr.bf16.gmra.mrb[0].mxu0 %v1092
    %v4815 = vpop.f32.mrb[0].mxu0
    %v4816 = vadd.f32 %v4775, %v4815
    %v4817 = vpop.f32.mrb[0].mxu0
    %v4818 = vadd.f32 %v4777, %v4817
    %v4819 = vpop.f32.mrb[0].mxu0
    %v4820 = vpop.f32.mrb[0].mxu0
    %4821 = vdwg.mxu0
    %v4822 = vmul.f32 %v1043, %v4324
    %v4823 = vmul.f32 %v1049, %v4326
    %v4824 = vmul.f32 %v1055, %v4488
    %v4825 = vmul.f32 %v1061, %v4490
    %v4826 = vmul.f32 %v1067, %v4652
    %v4827 = vmul.f32 %v1073, %v4654
    %v4828 = vmul.f32 %v1079, %v4816
    %v4829 = vmul.f32 %v1085, %v4818
    %v4830 = vadd.f32 %v4822, %v4823
    %v4831 = vadd.f32 %v4830, %v4824
    %v4832 = vadd.f32 %v4831, %v4825
    %v4833 = vadd.f32 %v4832, %v4826
    %v4834 = vadd.f32 %v4833, %v4827
    %v4835 = vadd.f32 %v4834, %v4828
    %v4836 = vadd.f32 %v4835, %v4829
    %4837 = vadd.xlane.f32.xlu0 %v4836
    %v4838 = vpop.xlane.xlu0 %4837
    %v4839 = vld [vmem:[#allocation10] sm:$0x1]
    %v4841 = vlaneseq
    %v4842 = vshrl.u32 %v4841, 7
    %v4843 = vsub.s32 0, %v4842
    %v4844 = vrot.slane %v4839, %v4843
    %v4846 = vmul.f32 %v4838, %v4844
    %v4847 = vld [vmem:[#allocation11] sm:$0x1]
    %v4849 = vlaneseq
    %v4850 = vshrl.u32 %v4849, 7
    %v4851 = vsub.s32 0, %v4850
    %v4852 = vrot.slane %v4847, %v4851
    %v4854 = vadd.f32 %v4846, %v4852
    %vm4855 = vcmask 80896
    %v4856 = vsel %vm4855, %v4854, -inf
    %4857 = vmax.xlane.f32.xlu0 %v4856
    %v4858 = vpop.xlane.xlu0 %4857
    %v4859 = vsub.f32 %v4854, %v4858
    %v4860 = vmul.f32 %v4859, 1.442695
    %v4861 = vpow.pop %v4860
    %v4862 = vsel %vm4855, %v4861, 0.0
    %4863 = vadd.xlane.f32.xlu0 %v4862
    %v4864 = vpop.xlane.xlu0 %4863
    %v4865 = vlog2.pop %v4864
    %v4866 = vmul.f32 %v4865, 0.6931472
    %v4867 = vadd.f32 %v4866, %v4858
    %v4868 = vsub.f32 %v4854, %v4867
    %4869 = vst.msk [vmem:[#allocation13] sm:$0xff] %vm4855, %v4868
    // Predicated region
    $region54: #{tpu_custom_call.1} parent=1 // pred_check
      _
    $region55: #{tpu_custom_call.1} parent=1 // pred_check_branch
      %4871 = sbr.rel (0) target = $region57
    $region56: #{tpu_custom_call.1} parent=1 // pred_region
      %s4873 = ssub.s32 128, 128
      %4874 = vsyncadd [#allocation4], %s4873
      %s4876 = sshll.u32 [#allocation13], 4
      %s4877 = int_to_ptr.vmem [resolvable:$true] %s4876
      %4879 = dma.vmem_to_hbm [thread:$0]  %s4877, 128, %s7, [#allocation4]
    $region57: #{tpu_custom_call.1} parent=1 // pred_fallthru
      _
    // Predicated region
    $region58: #{tpu_custom_call.1} parent=1 // pred_check
      _
    $region59: #{tpu_custom_call.1} parent=1 // pred_check_branch
      %4881 = sbr.rel (0) target = $region61
    $region60: #{tpu_custom_call.1} parent=1 // pred_region
      %4882 = dma.done [#allocation4], 128
    $region61: #{tpu_custom_call.1} parent=1 // pred_fallthru
      _
    %4883 = vsyncpa [#allocation3], 1
    %4884 = vsyncpa [#allocation6], 1
    %4885 = vsyncpa [#allocation9], 1
    %4886 = vsyncpa [#allocation12], 1
    %4887 = vsyncpa [#allocation4], 1

</llo_original>
